<compile_context>
chip_gen: v6e
topology: v6e:2x2x1
jax: 0.10.0
libtpu: 0.0.40
codegen_flags: <defaults>
</compile_context>

<pallas_src>
import functools

import jax
import jax.numpy as jnp
from jax.experimental import pallas as pl
from jax.experimental.pallas import tpu as pltpu


def _head_kernel(feat_ref, w1_ref, b1_ref, w2_ref, b2_ref, out_ref, *, inv_hw):
    """One grid step computes the logits contribution of one hidden-dim slice.

    feat_ref : (N, HW, C)   backbone features, channels-last, f32
    w1_ref   : (C, H1s)     slice of fc weight (torch fc.weight.T), bf16
    b1_ref   : (1, H1s)     slice of fc bias, f32
    w2_ref   : (H1s, Cpad)  slice of fc2 weight (torch fc2.weight.T, lane-padded), bf16
    b2_ref   : (1, 1, Cpad) fc2 bias for step 0, zeros for the other steps, f32
    out_ref  : (1, N, Cpad) partial logits for this hidden slice, f32
    """
    # Global average pool: spatial reduction over sublanes, channels stay on lanes.
    pooled = jnp.sum(feat_ref[...], axis=1) * inv_hw                    # (N, C) f32

    # fc (this hidden slice) + bias + ReLU.  bf16 MXU operands, f32 accumulate.
    h = jnp.dot(pooled.astype(jnp.bfloat16), w1_ref[...],
                preferred_element_type=jnp.float32) + b1_ref[...]       # (N, H1s)
    h = jnp.maximum(h, 0.0)

    # fc2 partial contraction over this hidden slice (+ bias on step 0 only).
    logits_part = jnp.dot(h.astype(jnp.bfloat16), w2_ref[...],
                          preferred_element_type=jnp.float32) + b2_ref[0]
    out_ref[0] = logits_part


def prepare_head_params(w1, b1, w2, b2, *, n_split=2):
    """One-time (load-time) head-weight preparation — keep OUT of the hot path.

    w1: (C_feat, H1)   == torch fc.weight.T
    b1: (H1,)
    w2: (H1, classes)  == torch fc2.weight.T
    b2: (classes,)
    """
    c_feat, h1 = w1.shape
    classes = w2.shape[1]
    if h1 % n_split != 0:
        n_split = 1
    cpad = ((classes + 127) // 128) * 128          # lane-dense class dim

    w1_bf = jnp.asarray(w1, jnp.bfloat16)
    b1_f = jnp.asarray(b1, jnp.float32).reshape(1, h1)
    w2_pad = jnp.zeros((h1, cpad), jnp.bfloat16).at[:, :classes].set(
        jnp.asarray(w2, jnp.bfloat16))
    b2_row = jnp.zeros((1, 1, cpad), jnp.float32).at[0, 0, :classes].set(
        jnp.asarray(b2, jnp.float32))
    # Row 0 carries the real fc2 bias; the other parallel slices add zeros so the
    # wrapper-side partial sum applies the bias exactly once.
    b2_stacked = jnp.concatenate(
        [b2_row] + [jnp.zeros_like(b2_row)] * (n_split - 1), axis=0)   # (n_split,1,Cpad)
    return w1_bf, b1_f, w2_pad, b2_stacked


@functools.partial(jax.jit, static_argnames=("classes",))
def efficientnet_mart_head(feat_nhwc, w1_bf, b1_f, w2_pad, b2_stacked, *, classes):
    """feat_nhwc: (N, H, W, C_feat) backbone features in TPU-native channels-last."""
    n, h, w, c = feat_nhwc.shape
    hw = h * w
    h1 = w1_bf.shape[1]
    cpad = w2_pad.shape[1]
    n_split = b2_stacked.shape[0]
    h1s = h1 // n_split

    feat = feat_nhwc.reshape(n, hw, c)             # free: collapses middle dims only

    kernel = functools.partial(_head_kernel, inv_hw=1.0 / float(hw))
    partials = pl.pallas_call(
        kernel,
        out_shape=jax.ShapeDtypeStruct((n_split, n, cpad), jnp.float32),
        grid_spec=pltpu.PrefetchScalarGridSpec(
            num_scalar_prefetch=0,
            grid=(n_split,),
            in_specs=[
                pl.BlockSpec((n, hw, c), lambda p: (0, 0, 0)),       # features
                pl.BlockSpec((c, h1s), lambda p: (0, p)),            # fc weight slice
                pl.BlockSpec((1, h1s), lambda p: (0, p)),            # fc bias slice
                pl.BlockSpec((h1s, cpad), lambda p: (p, 0)),         # fc2 weight slice
                pl.BlockSpec((1, 1, cpad), lambda p: (p, 0, 0)),     # fc2 bias (step 0)
            ],
            out_specs=pl.BlockSpec((1, n, cpad), lambda p: (p, 0, 0)),
        ),
        compiler_params=pltpu.CompilerParams(
            dimension_semantics=("parallel",)),
    )(feat, w1_bf, b1_f, w2_pad, b2_stacked)

    logits = jnp.sum(partials, axis=0)             # combine hidden-dim halves
    return logits[:, :classes]


def _reference(feat_nhwc, w1, b1, w2, b2):
    pooled = jnp.mean(feat_nhwc.astype(jnp.float32), axis=(1, 2))     # (N, C)
    hcc = jnp.maximum(pooled @ w1 + b1, 0.0)
    return hcc @ w2 + b2


if __name__ == "__main__":
    # Module defaults: structure='b4' -> features_shape=1792, hidden_size=1024,
    # classCount=20, dropout=None, batch_norm=False (inference semantics).
    N, C_FEAT, H, W = 2, 1792, 4, 4
    HIDDEN, CLASSES = 1024, 20

    key = jax.random.PRNGKey(0)
    k_feat, k_w1, k_b1, k_w2, k_b2 = jax.random.split(key, 5)

    # Backbone feature map (stand-in for EfficientNet-b4.extract_features output,
    # handed over in TPU-native channels-last layout).
    feat = jax.random.normal(k_feat, (N, H, W, C_FEAT), dtype=jnp.float32)

    # Head parameters (torch Linear shapes, stored transposed).
    w1 = jax.random.normal(k_w1, (C_FEAT, HIDDEN), dtype=jnp.float32) * 0.02
    b1 = jax.random.normal(k_b1, (HIDDEN,), dtype=jnp.float32) * 0.02
    w2 = jax.random.normal(k_w2, (HIDDEN, CLASSES), dtype=jnp.float32) * 0.02
    b2 = jax.random.normal(k_b2, (CLASSES,), dtype=jnp.float32) * 0.02

    # One-time weight prep (bf16 cast / padding) outside the per-call hot path.
    params = prepare_head_params(w1, b1, w2, b2)

    out = efficientnet_mart_head(feat, *params, classes=CLASSES)
    out = jax.block_until_ready(out)

    ref = _reference(feat, w1, b1, w2, b2)
    assert out.shape == (N, CLASSES), out.shape
    # bf16 weight/activation streaming -> slightly loosened tolerance vs. f32 ref.
    assert jnp.allclose(out, ref, atol=2e-2, rtol=2e-2), \
        float(jnp.max(jnp.abs(out - ref)))
    print("KERNEL_OK")
</pallas_src>

<mosaic_0001>
module attributes {stable_mosaic.version = 11 : i64} {
  func.func @_head_kernel(%arg0: i32, %arg1: memref<2x16x1792xf32, #tpu.memory_space<vmem>>, %arg2: memref<1792x512xbf16, #tpu.memory_space<vmem>>, %arg3: memref<1x512xf32, #tpu.memory_space<vmem>>, %arg4: memref<512x128xbf16, #tpu.memory_space<vmem>>, %arg5: memref<1x1x128xf32, #tpu.memory_space<vmem>>, %arg6: memref<1x2x128xf32, #tpu.memory_space<vmem>>) attributes {dimension_semantics = [#tpu.dimension_semantics<parallel>], iteration_bounds = array<i64: 2>, scalar_prefetch = 0 : i64, scratch_operands = 0 : i64, tpu.core_type = #tpu.core_type<tc>, window_params = [{pipeline_mode = #tpu.pipeline_mode<synchronous>, transform_indices = @transform_0, window_bounds = array<i64: 2, 16, 1792>}, {transform_indices = @transform_1, window_bounds = array<i64: 1792, 512>}, {transform_indices = @transform_2, window_bounds = array<i64: 1, 512>}, {transform_indices = @transform_3, window_bounds = array<i64: 512, 128>}, {transform_indices = @transform_4, window_bounds = array<i64: 1, 1, 128>}, {transform_indices = @transform_5, window_bounds = array<i64: 1, 2, 128>}]} {
    %c0 = arith.constant 0 : index
    %c0_0 = arith.constant 0 : index
    %c0_1 = arith.constant 0 : index
    %0 = vector.load %arg1[%c0, %c0_0, %c0_1] : memref<2x16x1792xf32, #tpu.memory_space<vmem>>, vector<2x16x1792xf32>
    %cst = arith.constant dense<0.000000e+00> : vector<2x1792xf32>
    %1 = vector.multi_reduction <add>, %0, %cst [1] : vector<2x16x1792xf32> to vector<2x1792xf32>
    %cst_2 = arith.constant 6.250000e-02 : f32
    %2 = vector.broadcast %cst_2 : f32 to vector<2x1792xf32>
    %3 = arith.mulf %1, %2 : vector<2x1792xf32>
    %4 = arith.truncf %3 : vector<2x1792xf32> to vector<2x1792xbf16>
    %c0_3 = arith.constant 0 : index
    %c0_4 = arith.constant 0 : index
    %5 = vector.load %arg2[%c0_3, %c0_4] : memref<1792x512xbf16, #tpu.memory_space<vmem>>, vector<1792x512xbf16>
    %cst_5 = arith.constant dense<0.000000e+00> : vector<2x512xf32>
    %6 = tpu.matmul %4, %5, %cst_5 {dimension_numbers = #tpu.dot_dimension_numbers<[1], [0], [0], [1], [0, 0, 1, 1], [], []>} : vector<2x1792xbf16>, vector<1792x512xbf16>, vector<2x512xf32> -> vector<2x512xf32>
    %c0_6 = arith.constant 0 : index
    %c0_7 = arith.constant 0 : index
    %7 = vector.load %arg3[%c0_6, %c0_7] : memref<1x512xf32, #tpu.memory_space<vmem>>, vector<1x512xf32>
    %8 = vector.broadcast %7 : vector<1x512xf32> to vector<2x512xf32>
    %9 = arith.addf %6, %8 : vector<2x512xf32>
    %cst_8 = arith.constant 0.000000e+00 : f32
    %10 = vector.broadcast %cst_8 : f32 to vector<2x512xf32>
    %11 = arith.maximumf %9, %10 : vector<2x512xf32>
    %12 = arith.truncf %11 : vector<2x512xf32> to vector<2x512xbf16>
    %c0_9 = arith.constant 0 : index
    %c0_10 = arith.constant 0 : index
    %13 = vector.load %arg4[%c0_9, %c0_10] : memref<512x128xbf16, #tpu.memory_space<vmem>>, vector<512x128xbf16>
    %cst_11 = arith.constant dense<0.000000e+00> : vector<2x128xf32>
    %14 = tpu.matmul %12, %13, %cst_11 {dimension_numbers = #tpu.dot_dimension_numbers<[1], [0], [0], [1], [0, 0, 1, 1], [], []>} : vector<2x512xbf16>, vector<512x128xbf16>, vector<2x128xf32> -> vector<2x128xf32>
    %c0_12 = arith.constant 0 : index
    %c0_13 = arith.constant 0 : index
    %c0_14 = arith.constant 0 : index
    %15 = vector.load %arg5[%c0_12, %c0_13, %c0_14] : memref<1x1x128xf32, #tpu.memory_space<vmem>>, vector<1x1x128xf32>
    %16 = vector.shape_cast %15 : vector<1x1x128xf32> to vector<1x128xf32>
    %17 = vector.broadcast %16 : vector<1x128xf32> to vector<2x128xf32>
    %18 = arith.addf %14, %17 : vector<2x128xf32>
    %c0_15 = arith.constant 0 : index
    %c0_16 = arith.constant 0 : index
    %c0_17 = arith.constant 0 : index
    %19 = vector.load %arg6[%c0_15, %c0_16, %c0_17] : memref<1x2x128xf32, #tpu.memory_space<vmem>>, vector<1x2x128xf32>
    %20 = vector.shape_cast %19 : vector<1x2x128xf32> to vector<2x128xf32>
    %21 = vector.shape_cast %18 : vector<2x128xf32> to vector<1x2x128xf32>
    tpu.vector_store %arg6[%c0_15, %c0_16, %c0_17], %21 {strides = array<i32>} : memref<1x2x128xf32, #tpu.memory_space<vmem>>, vector<1x2x128xf32>,
    return
  }
  func.func @transform_0(%arg0: i32) -> (i32, i32, i32) {
    %c0_i32 = arith.constant 0 : i32
    %c0_i32_0 = arith.constant 0 : i32
    %c0_i32_1 = arith.constant 0 : i32
    %c0_i32_2 = arith.constant 0 : i32
    return %c0_i32, %c0_i32_0, %c0_i32_1 : i32, i32, i32
  }
  func.func @transform_1(%arg0: i32) -> (i32, i32) {
    %c0_i32 = arith.constant 0 : i32
    %c0_i32_0 = arith.constant 0 : i32
    return %c0_i32, %arg0 : i32, i32
  }
  func.func @transform_2(%arg0: i32) -> (i32, i32) {
    %c0_i32 = arith.constant 0 : i32
    %c0_i32_0 = arith.constant 0 : i32
    return %c0_i32, %arg0 : i32, i32
  }
  func.func @transform_3(%arg0: i32) -> (i32, i32) {
    %c0_i32 = arith.constant 0 : i32
    %c0_i32_0 = arith.constant 0 : i32
    return %arg0, %c0_i32 : i32, i32
  }
  func.func @transform_4(%arg0: i32) -> (i32, i32, i32) {
    %c0_i32 = arith.constant 0 : i32
    %c0_i32_0 = arith.constant 0 : i32
    %c0_i32_1 = arith.constant 0 : i32
    return %arg0, %c0_i32, %c0_i32_0 : i32, i32, i32
  }
  func.func @transform_5(%arg0: i32) -> (i32, i32, i32) {
    %c0_i32 = arith.constant 0 : i32
    %c0_i32_0 = arith.constant 0 : i32
    %c0_i32_1 = arith.constant 0 : i32
    return %arg0, %c0_i32, %c0_i32_0 : i32, i32, i32
  }
}

</mosaic_0001>

<llo_original>
// kernel: efficientnet_mart_head.1
$region0: #{efficientnet_mart_head.1}
  #allocation0 [shape = 'u32[]', space=smem, size = 0x4, offset = 0x4, fixed_abs, tag = 'smem constant byte address 0x4 - core index']
  #allocation1 [shape = 'u32[144,128]{1,0:T(1,128)}', space=vmem, size = 0x12000, scoped, tag = 'internal scratch']
  %s0 = inlined_call_operand.vmem [shape: f32[2,16,1792], index: 0, kind: input, shape index: {}]
  %s1 = inlined_call_operand.hbm [shape: bf16[1792,1024], index: 1, kind: input, shape index: {}]
  %s2 = inlined_call_operand.hbm [shape: f32[1,1024], index: 2, kind: input, shape index: {}]
  %s3 = inlined_call_operand.hbm [shape: bf16[1024,128], index: 3, kind: input, shape index: {}]
  %s4 = inlined_call_operand.hbm [shape: f32[2,1,128], index: 4, kind: input, shape index: {}]
  %s5 = inlined_call_operand.vmem [shape: f32[2,2,128], index: 5, kind: output, shape index: {}]
  %s6 = sld [smem:[#allocation0]]
  $region69: #{efficientnet_mart_head.1} parent=0
    _
  %s8 = ssub.s32 1, %s6
  %s9 = scalar_select 0, %s8, %s6
  $region1: #{efficientnet_mart_head.1} parent=0
    #allocation2 [shape = 'u8[3670016]{0}', space=vmem, size = 0x380000, scoped, tag = 'input window, operand 1']
    #allocation3 [shape = 's32[2]{0}', space=sflag, size = 0x8, scoped, tag = 'scoped memory for efficientnet_mart_head.1']
    #allocation4 [shape = 'u8[4096]{0}', space=vmem, size = 0x1000, scoped, tag = 'input window, operand 2']
    #allocation5 [shape = 's32[2]{0}', space=sflag, size = 0x8, scoped, tag = 'scoped memory for efficientnet_mart_head.1']
    #allocation6 [shape = 'u8[262144]{0}', space=vmem, size = 0x40000, scoped, tag = 'input window, operand 3']
    #allocation7 [shape = 'u8[1024]{0}', space=vmem, size = 0x400, scoped, tag = 'input window, operand 4']
    #allocation8 [shape = 's32[2]{0}', space=sflag, size = 0x8, scoped, tag = 'scoped memory for efficientnet_mart_head.1']
    %10 = vsyncpa [#allocation3], 0
    %s11 = scalar_lea.sflag [#allocation3], 1
    %12 = vsyncpa %s11, 0
    %13 = vsyncpa [#allocation5], 0
    %s14 = scalar_lea.sflag [#allocation5], 1
    %15 = vsyncpa %s14, 0
    %16 = vsyncpa [#allocation8], 0
    %s17 = scalar_lea.sflag [#allocation8], 1
    %18 = vsyncpa %s17, 0
    loop: start=0, step=1, limit=4
    $region2: #{efficientnet_mart_head.1} parent=1 // loop_pre_header
      _
    $region3: #{efficientnet_mart_head.1} parent=1 // loop_header
      %s20 = sphi 0, %s24
      %p21 = scmp.ge.s32.totalorder %s20, 4
      %s28 = sphi 0, %s28
      %s30 = sphi 0, %s28
      %s31 = sphi 0, %s30
      %s45 = sphi 0, %s31
      %s51 = sphi 0, %s53
      %s54 = sphi 0, %s51
      %s55 = sphi 0, %s54
      %s71 = sphi 0, %s55
      %s77 = sphi 0, %s79
      %s80 = sphi 0, %s77
      %s81 = sphi 0, %s80
      %s97 = sphi 0, %s81
      %s103 = sphi 0, %s105
      %s106 = sphi 0, %s103
      %s107 = sphi 0, %s106
      %s123 = sphi 0, %s107
      %s129 = sphi 0, %s131
      %s132 = sphi 0, %s129
      %s133 = sphi 0, %s132
      %s149 = sphi 0, %s133
      %s155 = sphi 0, %s157
      %s158 = sphi 0, %s155
      %s159 = sphi 0, %s158
      %s175 = sphi 0, %s159
    $region4: #{efficientnet_mart_head.1} parent=1 // loop_header_branch
      %23 = sbr.rel (%p21) target = $region8
    $region5: #{efficientnet_mart_head.1} parent=1 // loop_body
      %s25 = ssub.s32 %s20, 1
      %s26 = ssub.s32 %s20, 2
      %s27 = sadd.s32 %s20, 1
      %s29 = sadd.s32 %s28, 1
      %p32 = scmp.eq.s32.totalorder %s20, 1
      %p33 = scmp.ne.s32.totalorder %s28, %s30
      %p34 = scmp.eq.s32.totalorder %s20, 0
      %p35 = por %p33, %p34
      %p36 = scmp.ne.s32.totalorder %s28, %s30
      %p37 = scmp.eq.s32.totalorder %s25, 1
      %p38 = por %p36, %p37
      %p39 = scmp.ne.s32.totalorder %s30, %s31
      %p40 = scmp.eq.s32.totalorder %s25, 0
      %p41 = por %p39, %p40
      %p42 = scmp.ne.s32.totalorder %s30, %s31
      %p43 = scmp.eq.s32.totalorder %s26, 1
      %p44 = por %p42, %p43
      %p46 = scmp.ne.s32.totalorder %s31, %s45
      %p47 = scmp.eq.s32.totalorder %s26, 0
      %p48 = por %p46, %p47
      %s49 = ssub.s32 %s20, %s27
      %p50 = scmp.eq.s32.totalorder %s49, 0
      %s52 = sadd.s32 %s51, 1
      %s53 = scalar_select %p50, %s51, %s52
      %p56 = pneg %p50
      %p57 = scmp.eq.s32.totalorder %s20, 1
      %p58 = por %p56, %p57
      %p59 = scmp.ne.s32.totalorder %s51, %s54
      %p60 = scmp.eq.s32.totalorder %s20, 0
      %p61 = por %p59, %p60
      %p62 = scmp.ne.s32.totalorder %s51, %s54
      %p63 = scmp.eq.s32.totalorder %s25, 1
      %p64 = por %p62, %p63
      %p65 = scmp.ne.s32.totalorder %s54, %s55
      %p66 = scmp.eq.s32.totalorder %s25, 0
      %p67 = por %p65, %p66
      %p68 = scmp.ne.s32.totalorder %s54, %s55
      %p69 = scmp.eq.s32.totalorder %s26, 1
      %p70 = por %p68, %p69
      %p72 = scmp.ne.s32.totalorder %s55, %s71
      %p73 = scmp.eq.s32.totalorder %s26, 0
      %p74 = por %p72, %p73
      %s75 = ssub.s32 %s20, %s27
      %p76 = scmp.eq.s32.totalorder %s75, 0
      %s78 = sadd.s32 %s77, 1
      %s79 = scalar_select %p76, %s77, %s78
      %p82 = pneg %p76
      %p83 = scmp.eq.s32.totalorder %s20, 1
      %p84 = por %p82, %p83
      %p85 = scmp.ne.s32.totalorder %s77, %s80
      %p86 = scmp.eq.s32.totalorder %s20, 0
      %p87 = por %p85, %p86
      %p88 = scmp.ne.s32.totalorder %s77, %s80
      %p89 = scmp.eq.s32.totalorder %s25, 1
      %p90 = por %p88, %p89
      %p91 = scmp.ne.s32.totalorder %s80, %s81
      %p92 = scmp.eq.s32.totalorder %s25, 0
      %p93 = por %p91, %p92
      %p94 = scmp.ne.s32.totalorder %s80, %s81
      %p95 = scmp.eq.s32.totalorder %s26, 1
      %p96 = por %p94, %p95
      %p98 = scmp.ne.s32.totalorder %s81, %s97
      %p99 = scmp.eq.s32.totalorder %s26, 0
      %p100 = por %p98, %p99
      %s101 = ssub.s32 %s20, %s27
      %p102 = scmp.eq.s32.totalorder %s101, 0
      %s104 = sadd.s32 %s103, 1
      %s105 = scalar_select %p102, %s103, %s104
      %p108 = pneg %p102
      %p109 = scmp.eq.s32.totalorder %s20, 1
      %p110 = por %p108, %p109
      %p111 = scmp.ne.s32.totalorder %s103, %s106
      %p112 = scmp.eq.s32.totalorder %s20, 0
      %p113 = por %p111, %p112
      %p114 = scmp.ne.s32.totalorder %s103, %s106
      %p115 = scmp.eq.s32.totalorder %s25, 1
      %p116 = por %p114, %p115
      %p117 = scmp.ne.s32.totalorder %s106, %s107
      %p118 = scmp.eq.s32.totalorder %s25, 0
      %p119 = por %p117, %p118
      %p120 = scmp.ne.s32.totalorder %s106, %s107
      %p121 = scmp.eq.s32.totalorder %s26, 1
      %p122 = por %p120, %p121
      %p124 = scmp.ne.s32.totalorder %s107, %s123
      %p125 = scmp.eq.s32.totalorder %s26, 0
      %p126 = por %p124, %p125
      %s127 = ssub.s32 %s20, %s27
      %p128 = scmp.eq.s32.totalorder %s127, 0
      %s130 = sadd.s32 %s129, 1
      %s131 = scalar_select %p128, %s129, %s130
      %p134 = pneg %p128
      %p135 = scmp.eq.s32.totalorder %s20, 1
      %p136 = por %p134, %p135
      %p137 = scmp.ne.s32.totalorder %s129, %s132
      %p138 = scmp.eq.s32.totalorder %s20, 0
      %p139 = por %p137, %p138
      %p140 = scmp.ne.s32.totalorder %s129, %s132
      %p141 = scmp.eq.s32.totalorder %s25, 1
      %p142 = por %p140, %p141
      %p143 = scmp.ne.s32.totalorder %s132, %s133
      %p144 = scmp.eq.s32.totalorder %s25, 0
      %p145 = por %p143, %p144
      %p146 = scmp.ne.s32.totalorder %s132, %s133
      %p147 = scmp.eq.s32.totalorder %s26, 1
      %p148 = por %p146, %p147
      %p150 = scmp.ne.s32.totalorder %s133, %s149
      %p151 = scmp.eq.s32.totalorder %s26, 0
      %p152 = por %p150, %p151
      %s153 = ssub.s32 %s20, %s27
      %p154 = scmp.eq.s32.totalorder %s153, 0
      %s156 = sadd.s32 %s155, 1
      %s157 = scalar_select %p154, %s155, %s156
      %p160 = pneg %p154
      %p161 = scmp.eq.s32.totalorder %s20, 1
      %p162 = por %p160, %p161
      %p163 = scmp.ne.s32.totalorder %s155, %s158
      %p164 = scmp.eq.s32.totalorder %s20, 0
      %p165 = por %p163, %p164
      %p166 = scmp.ne.s32.totalorder %s155, %s158
      %p167 = scmp.eq.s32.totalorder %s25, 1
      %p168 = por %p166, %p167
      %p169 = scmp.ne.s32.totalorder %s158, %s159
      %p170 = scmp.eq.s32.totalorder %s25, 0
      %p171 = por %p169, %p170
      %p172 = scmp.ne.s32.totalorder %s158, %s159
      %p173 = scmp.eq.s32.totalorder %s26, 1
      %p174 = por %p172, %p173
      %p176 = scmp.ne.s32.totalorder %s159, %s175
      %p177 = scmp.eq.s32.totalorder %s26, 0
      %p178 = por %p176, %p177
      %p179 = scmp.le.s32.totalorder 1, %s20
      %p180 = scmp.lt.s32.totalorder %s20, 3
      %p181 = pnand %p179, %p180
      %p182 = pneg %p181
      // Predicated region
      $region9: #{efficientnet_mart_head.1} parent=5 // pred_check
        _
      $region10: #{efficientnet_mart_head.1} parent=5 // pred_check_branch
        %184 = sbr.rel (%p181) target = $region12
      $region11: #{efficientnet_mart_head.1} parent=5 // pred_region
        %s185 = ssub.s32 %s20, 1
        // Predicated region
        $region13: #{efficientnet_mart_head.1} parent=11 // pred_check
          %p186 = pneg %p41
        $region14: #{efficientnet_mart_head.1} parent=11 // pred_check_branch
          %188 = sbr.rel (%p186) target = $region16
        $region15: #{efficientnet_mart_head.1} parent=11 // pred_region
          _
        $region16: #{efficientnet_mart_head.1} parent=11 // pred_fallthru
          _
      $region12: #{efficientnet_mart_head.1} parent=5 // pred_fallthru
        _
      %p189 = scmp.lt.s32.totalorder %s20, 2
      // Predicated region
      $region17: #{efficientnet_mart_head.1} parent=5 // pred_check
        %p190 = pneg %p189
      $region18: #{efficientnet_mart_head.1} parent=5 // pred_check_branch
        %192 = sbr.rel (%p190) target = $region20
      $region19: #{efficientnet_mart_head.1} parent=5 // pred_region
        // Predicated region
        $region21: #{efficientnet_mart_head.1} parent=19 // pred_check
          %p193 = pneg %p61
        $region22: #{efficientnet_mart_head.1} parent=19 // pred_check_branch
          %195 = sbr.rel (%p193) target = $region24
        $region23: #{efficientnet_mart_head.1} parent=19 // pred_region
          %s196 = sand.u32 %s51, 1
          %s197 = scalar_lea.sflag [#allocation3], %s196
          %s198 = sand.u32 %s51, 1
          %s199 = smul.addr %s198, 3584
          %s200 = scalar_lea.vmem [#allocation2], %s199
          %s201 = smul.u32 4, %s20
          %s203 = ssub.s32 57344, 57344
          %204 = vsyncadd %s197, %s203
          %s205 = smul.addr %s201, 64
          %s206 = scalar_lea.hbm %s1, %s205
          %s207 = sshll.u32 %s200, 4
          %s208 = int_to_ptr.vmem [resolvable:$true] %s207
          %213 = dma.hbm_to_vmem [thread:$0]  %s206, 57344, %s208, %s197, 512, 256, 16
        $region24: #{efficientnet_mart_head.1} parent=19 // pred_fallthru
          _
        // Predicated region
        $region25: #{efficientnet_mart_head.1} parent=19 // pred_check
          %p214 = pneg %p87
        $region26: #{efficientnet_mart_head.1} parent=19 // pred_check_branch
          %216 = sbr.rel (%p214) target = $region28
        $region27: #{efficientnet_mart_head.1} parent=19 // pred_region
          %s217 = sand.u32 %s20, 1
          %s218 = scalar_lea.sflag [#allocation5], %s217
          %s219 = sand.u32 %s77, 1
          %s220 = smul.addr %s219, 4
          %s221 = scalar_lea.vmem [#allocation4], %s220
          %s222 = smul.u32 4, %s20
          %s224 = ssub.s32 64, 64
          %225 = vsyncadd %s218, %s224
          %s226 = smul.addr %s222, 16
          %s227 = scalar_lea.hbm %s2, %s226
          %s229 = sshll.u32 %s221, 4
          %s230 = int_to_ptr.vmem [resolvable:$true] %s229
          %232 = dma.hbm_to_vmem [thread:$0]  %s227, 64, %s230, %s218
        $region28: #{efficientnet_mart_head.1} parent=19 // pred_fallthru
          _
        // Predicated region
        $region29: #{efficientnet_mart_head.1} parent=19 // pred_check
          %p233 = pneg %p113
        $region30: #{efficientnet_mart_head.1} parent=19 // pred_check_branch
          %235 = sbr.rel (%p233) target = $region32
        $region31: #{efficientnet_mart_head.1} parent=19 // pred_region
          %s236 = sand.u32 %s20, 1
          %s237 = scalar_lea.sflag [#allocation5], %s236
          %s238 = sand.u32 %s103, 1
          %s239 = smul.addr %s238, 256
          %s240 = scalar_lea.vmem [#allocation6], %s239
          %s241 = smul.u32 64, %s20
          %s243 = ssub.s32 4096, 4096
          %244 = vsyncadd %s237, %s243
          %s245 = smul.addr %s241, 64
          %s246 = scalar_lea.hbm %s3, %s245
          %s247 = sshll.u32 %s240, 4
          %s248 = int_to_ptr.vmem [resolvable:$true] %s247
          %253 = dma.hbm_to_vmem [thread:$0]  %s246, 4096, %s248, %s237, 64, 64, 4
        $region32: #{efficientnet_mart_head.1} parent=19 // pred_fallthru
          _
        // Predicated region
        $region33: #{efficientnet_mart_head.1} parent=19 // pred_check
          %p254 = pneg %p139
        $region34: #{efficientnet_mart_head.1} parent=19 // pred_check_branch
          %256 = sbr.rel (%p254) target = $region36
        $region35: #{efficientnet_mart_head.1} parent=19 // pred_region
          %s257 = sand.u32 %s129, 1
          %s258 = scalar_lea.sflag [#allocation8], %s257
          %s259 = sand.u32 %s129, 1
          %s260 = scalar_lea.vmem [#allocation7], %s259
          %s262 = ssub.s32 16, 16
          %263 = vsyncadd %s258, %s262
          %s264 = smul.addr %s20, 16
          %s265 = scalar_lea.hbm %s4, %s264
          %s267 = sshll.u32 %s260, 4
          %s268 = int_to_ptr.vmem [resolvable:$true] %s267
          %270 = dma.hbm_to_vmem [thread:$0]  %s265, 16, %s268, %s258
        $region36: #{efficientnet_mart_head.1} parent=19 // pred_fallthru
          _
      $region20: #{efficientnet_mart_head.1} parent=5 // pred_fallthru
        _
      %p271 = scmp.le.s32.totalorder 1, %s20
      %p272 = scmp.lt.s32.totalorder %s20, 3
      %p273 = pnand %p271, %p272
      %p274 = pneg %p273
      // Predicated region
      $region37: #{efficientnet_mart_head.1} parent=5 // pred_check
        _
      $region38: #{efficientnet_mart_head.1} parent=5 // pred_check_branch
        %276 = sbr.rel (%p273) target = $region40
      $region39: #{efficientnet_mart_head.1} parent=5 // pred_region
        %s277 = ssub.s32 %s20, 1
        %s278 = sand.u32 %s54, 1
        %s279 = scalar_lea.sflag [#allocation3], %s278
        %s280 = sand.u32 %s54, 1
        %s281 = smul.addr %s280, 3584
        %s282 = scalar_lea.vmem [#allocation2], %s281
        // Predicated region
        $region41: #{efficientnet_mart_head.1} parent=39 // pred_check
          %p283 = pneg %p67
        $region42: #{efficientnet_mart_head.1} parent=39 // pred_check_branch
          %285 = sbr.rel (%p283) target = $region44
        $region43: #{efficientnet_mart_head.1} parent=39 // pred_region
          %286 = dma.done %s279, 57344
        $region44: #{efficientnet_mart_head.1} parent=39 // pred_fallthru
          _
        %s287 = sand.u32 %s25, 1
        %s288 = scalar_lea.sflag [#allocation5], %s287
        %s289 = sand.u32 %s80, 1
        %s290 = smul.addr %s289, 4
        %s291 = scalar_lea.vmem [#allocation4], %s290
        // Predicated region
        $region45: #{efficientnet_mart_head.1} parent=39 // pred_check
          %p292 = pneg %p93
        $region46: #{efficientnet_mart_head.1} parent=39 // pred_check_branch
          %294 = sbr.rel (%p292) target = $region48
        $region47: #{efficientnet_mart_head.1} parent=39 // pred_region
          %295 = dma.done %s288, 64
        $region48: #{efficientnet_mart_head.1} parent=39 // pred_fallthru
          _
        %s296 = sand.u32 %s25, 1
        %s297 = scalar_lea.sflag [#allocation5], %s296
        %s298 = sand.u32 %s106, 1
        %s299 = smul.addr %s298, 256
        %s300 = scalar_lea.vmem [#allocation6], %s299
        // Predicated region
        $region49: #{efficientnet_mart_head.1} parent=39 // pred_check
          %p301 = pneg %p119
        $region50: #{efficientnet_mart_head.1} parent=39 // pred_check_branch
          %303 = sbr.rel (%p301) target = $region52
        $region51: #{efficientnet_mart_head.1} parent=39 // pred_region
          %304 = dma.done %s297, 4096
        $region52: #{efficientnet_mart_head.1} parent=39 // pred_fallthru
          _
        %s305 = sand.u32 %s132, 1
        %s306 = scalar_lea.sflag [#allocation8], %s305
        %s307 = sand.u32 %s132, 1
        %s308 = scalar_lea.vmem [#allocation7], %s307
        // Predicated region
        $region53: #{efficientnet_mart_head.1} parent=39 // pred_check
          %p309 = pneg %p145
        $region54: #{efficientnet_mart_head.1} parent=39 // pred_check_branch
          %311 = sbr.rel (%p309) target = $region56
        $region55: #{efficientnet_mart_head.1} parent=39 // pred_region
          %312 = dma.done %s306, 16
        $region56: #{efficientnet_mart_head.1} parent=39 // pred_fallthru
          _
        %p313 = pneg %p41
        %p314 = pneg %p38
        %s315 = sand.u32 %s54, 1
        %s316 = scalar_lea.sflag [#allocation3], %s315
        %s317 = sand.u32 %s54, 1
        %s318 = smul.addr %s317, 3584
        %s319 = scalar_lea.vmem [#allocation2], %s318
        %p320 = pneg %p67
        %p321 = pneg %p64
        %s322 = sand.u32 %s25, 1
        %s323 = scalar_lea.sflag [#allocation5], %s322
        %s324 = sand.u32 %s80, 1
        %s325 = smul.addr %s324, 4
        %s326 = scalar_lea.vmem [#allocation4], %s325
        %p327 = pneg %p93
        %p328 = pneg %p90
        %s329 = sand.u32 %s25, 1
        %s330 = scalar_lea.sflag [#allocation5], %s329
        %s331 = sand.u32 %s106, 1
        %s332 = smul.addr %s331, 256
        %s333 = scalar_lea.vmem [#allocation6], %s332
        %p334 = pneg %p119
        %p335 = pneg %p116
        %s336 = sand.u32 %s132, 1
        %s337 = scalar_lea.sflag [#allocation8], %s336
        %s338 = sand.u32 %s132, 1
        %s339 = scalar_lea.vmem [#allocation7], %s338
        %p340 = pneg %p145
        %p341 = pneg %p142
        %p342 = pneg %p171
        %p343 = pneg %p168
        %p344 = scmp.lt.s32.totalorder %s25, 1
        %s345 = scalar_select %p344, %s25, 1
        %s346 = smul.addr %s345, 2
        %s347 = scalar_lea.vmem %s5, %s346
        %s348 = smul.u32 4, %s25
        %s349 = smul.u32 4, %s25
        %s350 = smul.u32 64, %s25
        %p351 = scmp.lt.s32.totalorder %s25, 1
        %s352 = scalar_select %p351, %s25, 1
        %s353 = smul.addr %s352, 2
        %s354 = scalar_lea.vmem %s5, %s353
        %v356 = vld [vmem:[%s0] sm:$0xff]
        %v357 = vld [vmem:[%s0 + $0x8] sm:$0xff]
        %v358 = vld [vmem:[%s0 + $0x10] sm:$0xff]
        %v359 = vld [vmem:[%s0 + $0x18] sm:$0xff]
        %v360 = vld [vmem:[%s0 + $0x20] sm:$0xff]
        %v361 = vld [vmem:[%s0 + $0x28] sm:$0xff]
        %v362 = vld [vmem:[%s0 + $0x30] sm:$0xff]
        %v363 = vld [vmem:[%s0 + $0x38] sm:$0xff]
        %v364 = vld [vmem:[%s0 + $0x40] sm:$0xff]
        %v365 = vld [vmem:[%s0 + $0x48] sm:$0xff]
        %v366 = vld [vmem:[%s0 + $0x50] sm:$0xff]
        %v367 = vld [vmem:[%s0 + $0x58] sm:$0xff]
        %v368 = vld [vmem:[%s0 + $0x60] sm:$0xff]
        %v369 = vld [vmem:[%s0 + $0x68] sm:$0xff]
        %v370 = vld [vmem:[%s0 + $0x70] sm:$0xff]
        %v371 = vld [vmem:[%s0 + $0x78] sm:$0xff]
        %v372 = vld [vmem:[%s0 + $0x80] sm:$0xff]
        %v373 = vld [vmem:[%s0 + $0x88] sm:$0xff]
        %v374 = vld [vmem:[%s0 + $0x90] sm:$0xff]
        %v375 = vld [vmem:[%s0 + $0x98] sm:$0xff]
        %v376 = vld [vmem:[%s0 + $0xa0] sm:$0xff]
        %v377 = vld [vmem:[%s0 + $0xa8] sm:$0xff]
        %v378 = vld [vmem:[%s0 + $0xb0] sm:$0xff]
        %v379 = vld [vmem:[%s0 + $0xb8] sm:$0xff]
        %v380 = vld [vmem:[%s0 + $0xc0] sm:$0xff]
        %v381 = vld [vmem:[%s0 + $0xc8] sm:$0xff]
        %v382 = vld [vmem:[%s0 + $0xd0] sm:$0xff]
        %v383 = vld [vmem:[%s0 + $0xd8] sm:$0xff]
        %v384 = vld [vmem:[%s0 + $0xe0] sm:$0xff]
        %v385 = vld [vmem:[%s0 + $0xe8] sm:$0xff]
        %v386 = vld [vmem:[%s0 + $0xf0] sm:$0xff]
        %v387 = vld [vmem:[%s0 + $0xf8] sm:$0xff]
        %v388 = vld [vmem:[%s0 + $0x100] sm:$0xff]
        %v389 = vld [vmem:[%s0 + $0x108] sm:$0xff]
        %v390 = vld [vmem:[%s0 + $0x110] sm:$0xff]
        %v391 = vld [vmem:[%s0 + $0x118] sm:$0xff]
        %v392 = vld [vmem:[%s0 + $0x120] sm:$0xff]
        %v393 = vld [vmem:[%s0 + $0x128] sm:$0xff]
        %v394 = vld [vmem:[%s0 + $0x130] sm:$0xff]
        %v395 = vld [vmem:[%s0 + $0x138] sm:$0xff]
        %v396 = vld [vmem:[%s0 + $0x140] sm:$0xff]
        %v397 = vld [vmem:[%s0 + $0x148] sm:$0xff]
        %v398 = vld [vmem:[%s0 + $0x150] sm:$0xff]
        %v399 = vld [vmem:[%s0 + $0x158] sm:$0xff]
        %v400 = vld [vmem:[%s0 + $0x160] sm:$0xff]
        %v401 = vld [vmem:[%s0 + $0x168] sm:$0xff]
        %v402 = vld [vmem:[%s0 + $0x170] sm:$0xff]
        %v403 = vld [vmem:[%s0 + $0x178] sm:$0xff]
        %v404 = vld [vmem:[%s0 + $0x180] sm:$0xff]
        %v405 = vld [vmem:[%s0 + $0x188] sm:$0xff]
        %v406 = vld [vmem:[%s0 + $0x190] sm:$0xff]
        %v407 = vld [vmem:[%s0 + $0x198] sm:$0xff]
        %v408 = vld [vmem:[%s0 + $0x1a0] sm:$0xff]
        %v409 = vld [vmem:[%s0 + $0x1a8] sm:$0xff]
        %v410 = vld [vmem:[%s0 + $0x1b0] sm:$0xff]
        %v411 = vld [vmem:[%s0 + $0x1b8] sm:$0xff]
        %v412 = vadd.f32 %v356, %v370
        %v413 = vrot.slane %v412, 4
        %v414 = vadd.f32 %v412, %v413
        %v415 = vrot.slane %v414, 2
        %v416 = vadd.f32 %v414, %v415
        %v417 = vrot.slane %v416, 1
        %v418 = vadd.f32 %v416, %v417
        %v419 = vadd.f32 %v357, %v371
        %v420 = vrot.slane %v419, 4
        %v421 = vadd.f32 %v419, %v420
        %v422 = vrot.slane %v421, 2
        %v423 = vadd.f32 %v421, %v422
        %v424 = vrot.slane %v423, 1
        %v425 = vadd.f32 %v423, %v424
        %v426 = vadd.f32 %v358, %v372
        %v427 = vrot.slane %v426, 4
        %v428 = vadd.f32 %v426, %v427
        %v429 = vrot.slane %v428, 2
        %v430 = vadd.f32 %v428, %v429
        %v431 = vrot.slane %v430, 1
        %v432 = vadd.f32 %v430, %v431
        %v433 = vadd.f32 %v359, %v373
        %v434 = vrot.slane %v433, 4
        %v435 = vadd.f32 %v433, %v434
        %v436 = vrot.slane %v435, 2
        %v437 = vadd.f32 %v435, %v436
        %v438 = vrot.slane %v437, 1
        %v439 = vadd.f32 %v437, %v438
        %v440 = vadd.f32 %v360, %v374
        %v441 = vrot.slane %v440, 4
        %v442 = vadd.f32 %v440, %v441
        %v443 = vrot.slane %v442, 2
        %v444 = vadd.f32 %v442, %v443
        %v445 = vrot.slane %v444, 1
        %v446 = vadd.f32 %v444, %v445
        %v447 = vadd.f32 %v361, %v375
        %v448 = vrot.slane %v447, 4
        %v449 = vadd.f32 %v447, %v448
        %v450 = vrot.slane %v449, 2
        %v451 = vadd.f32 %v449, %v450
        %v452 = vrot.slane %v451, 1
        %v453 = vadd.f32 %v451, %v452
        %v454 = vadd.f32 %v362, %v376
        %v455 = vrot.slane %v454, 4
        %v456 = vadd.f32 %v454, %v455
        %v457 = vrot.slane %v456, 2
        %v458 = vadd.f32 %v456, %v457
        %v459 = vrot.slane %v458, 1
        %v460 = vadd.f32 %v458, %v459
        %v461 = vadd.f32 %v363, %v377
        %v462 = vrot.slane %v461, 4
        %v463 = vadd.f32 %v461, %v462
        %v464 = vrot.slane %v463, 2
        %v465 = vadd.f32 %v463, %v464
        %v466 = vrot.slane %v465, 1
        %v467 = vadd.f32 %v465, %v466
        %v468 = vadd.f32 %v364, %v378
        %v469 = vrot.slane %v468, 4
        %v470 = vadd.f32 %v468, %v469
        %v471 = vrot.slane %v470, 2
        %v472 = vadd.f32 %v470, %v471
        %v473 = vrot.slane %v472, 1
        %v474 = vadd.f32 %v472, %v473
        %v475 = vadd.f32 %v365, %v379
        %v476 = vrot.slane %v475, 4
        %v477 = vadd.f32 %v475, %v476
        %v478 = vrot.slane %v477, 2
        %v479 = vadd.f32 %v477, %v478
        %v480 = vrot.slane %v479, 1
        %v481 = vadd.f32 %v479, %v480
        %v482 = vadd.f32 %v366, %v380
        %v483 = vrot.slane %v482, 4
        %v484 = vadd.f32 %v482, %v483
        %v485 = vrot.slane %v484, 2
        %v486 = vadd.f32 %v484, %v485
        %v487 = vrot.slane %v486, 1
        %v488 = vadd.f32 %v486, %v487
        %v489 = vadd.f32 %v367, %v381
        %v490 = vrot.slane %v489, 4
        %v491 = vadd.f32 %v489, %v490
        %v492 = vrot.slane %v491, 2
        %v493 = vadd.f32 %v491, %v492
        %v494 = vrot.slane %v493, 1
        %v495 = vadd.f32 %v493, %v494
        %v496 = vadd.f32 %v368, %v382
        %v497 = vrot.slane %v496, 4
        %v498 = vadd.f32 %v496, %v497
        %v499 = vrot.slane %v498, 2
        %v500 = vadd.f32 %v498, %v499
        %v501 = vrot.slane %v500, 1
        %v502 = vadd.f32 %v500, %v501
        %v503 = vadd.f32 %v369, %v383
        %v504 = vrot.slane %v503, 4
        %v505 = vadd.f32 %v503, %v504
        %v506 = vrot.slane %v505, 2
        %v507 = vadd.f32 %v505, %v506
        %v508 = vrot.slane %v507, 1
        %v509 = vadd.f32 %v507, %v508
        %v510 = vadd.f32 %v384, %v398
        %v511 = vrot.slane %v510, 4
        %v512 = vadd.f32 %v510, %v511
        %v513 = vrot.slane %v512, 2
        %v514 = vadd.f32 %v512, %v513
        %v515 = vrot.slane %v514, 1
        %v516 = vadd.f32 %v514, %v515
        %v517 = vadd.f32 %v385, %v399
        %v518 = vrot.slane %v517, 4
        %v519 = vadd.f32 %v517, %v518
        %v520 = vrot.slane %v519, 2
        %v521 = vadd.f32 %v519, %v520
        %v522 = vrot.slane %v521, 1
        %v523 = vadd.f32 %v521, %v522
        %v524 = vadd.f32 %v386, %v400
        %v525 = vrot.slane %v524, 4
        %v526 = vadd.f32 %v524, %v525
        %v527 = vrot.slane %v526, 2
        %v528 = vadd.f32 %v526, %v527
        %v529 = vrot.slane %v528, 1
        %v530 = vadd.f32 %v528, %v529
        %v531 = vadd.f32 %v387, %v401
        %v532 = vrot.slane %v531, 4
        %v533 = vadd.f32 %v531, %v532
        %v534 = vrot.slane %v533, 2
        %v535 = vadd.f32 %v533, %v534
        %v536 = vrot.slane %v535, 1
        %v537 = vadd.f32 %v535, %v536
        %v538 = vadd.f32 %v388, %v402
        %v539 = vrot.slane %v538, 4
        %v540 = vadd.f32 %v538, %v539
        %v541 = vrot.slane %v540, 2
        %v542 = vadd.f32 %v540, %v541
        %v543 = vrot.slane %v542, 1
        %v544 = vadd.f32 %v542, %v543
        %v545 = vadd.f32 %v389, %v403
        %v546 = vrot.slane %v545, 4
        %v547 = vadd.f32 %v545, %v546
        %v548 = vrot.slane %v547, 2
        %v549 = vadd.f32 %v547, %v548
        %v550 = vrot.slane %v549, 1
        %v551 = vadd.f32 %v549, %v550
        %v552 = vadd.f32 %v390, %v404
        %v553 = vrot.slane %v552, 4
        %v554 = vadd.f32 %v552, %v553
        %v555 = vrot.slane %v554, 2
        %v556 = vadd.f32 %v554, %v555
        %v557 = vrot.slane %v556, 1
        %v558 = vadd.f32 %v556, %v557
        %v559 = vadd.f32 %v391, %v405
        %v560 = vrot.slane %v559, 4
        %v561 = vadd.f32 %v559, %v560
        %v562 = vrot.slane %v561, 2
        %v563 = vadd.f32 %v561, %v562
        %v564 = vrot.slane %v563, 1
        %v565 = vadd.f32 %v563, %v564
        %v566 = vadd.f32 %v392, %v406
        %v567 = vrot.slane %v566, 4
        %v568 = vadd.f32 %v566, %v567
        %v569 = vrot.slane %v568, 2
        %v570 = vadd.f32 %v568, %v569
        %v571 = vrot.slane %v570, 1
        %v572 = vadd.f32 %v570, %v571
        %v573 = vadd.f32 %v393, %v407
        %v574 = vrot.slane %v573, 4
        %v575 = vadd.f32 %v573, %v574
        %v576 = vrot.slane %v575, 2
        %v577 = vadd.f32 %v575, %v576
        %v578 = vrot.slane %v577, 1
        %v579 = vadd.f32 %v577, %v578
        %v580 = vadd.f32 %v394, %v408
        %v581 = vrot.slane %v580, 4
        %v582 = vadd.f32 %v580, %v581
        %v583 = vrot.slane %v582, 2
        %v584 = vadd.f32 %v582, %v583
        %v585 = vrot.slane %v584, 1
        %v586 = vadd.f32 %v584, %v585
        %v587 = vadd.f32 %v395, %v409
        %v588 = vrot.slane %v587, 4
        %v589 = vadd.f32 %v587, %v588
        %v590 = vrot.slane %v589, 2
        %v591 = vadd.f32 %v589, %v590
        %v592 = vrot.slane %v591, 1
        %v593 = vadd.f32 %v591, %v592
        %v594 = vadd.f32 %v396, %v410
        %v595 = vrot.slane %v594, 4
        %v596 = vadd.f32 %v594, %v595
        %v597 = vrot.slane %v596, 2
        %v598 = vadd.f32 %v596, %v597
        %v599 = vrot.slane %v598, 1
        %v600 = vadd.f32 %v598, %v599
        %v601 = vadd.f32 %v397, %v411
        %v602 = vrot.slane %v601, 4
        %v603 = vadd.f32 %v601, %v602
        %v604 = vrot.slane %v603, 2
        %v605 = vadd.f32 %v603, %v604
        %v606 = vrot.slane %v605, 1
        %v607 = vadd.f32 %v605, %v606
        %v608 = vmul.f32 %v418, 0.0625
        %v609 = vmul.f32 %v425, 0.0625
        %v610 = vmul.f32 %v432, 0.0625
        %v611 = vmul.f32 %v439, 0.0625
        %v612 = vmul.f32 %v446, 0.0625
        %v613 = vmul.f32 %v453, 0.0625
        %v614 = vmul.f32 %v460, 0.0625
        %v615 = vmul.f32 %v467, 0.0625
        %v616 = vmul.f32 %v474, 0.0625
        %v617 = vmul.f32 %v481, 0.0625
        %v618 = vmul.f32 %v488, 0.0625
        %v619 = vmul.f32 %v495, 0.0625
        %v620 = vmul.f32 %v502, 0.0625
        %v621 = vmul.f32 %v509, 0.0625
        %v622 = vmul.f32 %v516, 0.0625
        %v623 = vmul.f32 %v523, 0.0625
        %v624 = vmul.f32 %v530, 0.0625
        %v625 = vmul.f32 %v537, 0.0625
        %v626 = vmul.f32 %v544, 0.0625
        %v627 = vmul.f32 %v551, 0.0625
        %v628 = vmul.f32 %v558, 0.0625
        %v629 = vmul.f32 %v565, 0.0625
        %v630 = vmul.f32 %v572, 0.0625
        %v631 = vmul.f32 %v579, 0.0625
        %v632 = vmul.f32 %v586, 0.0625
        %v633 = vmul.f32 %v593, 0.0625
        %v634 = vmul.f32 %v600, 0.0625
        %v635 = vmul.f32 %v607, 0.0625
        %v636 = vpack.c.bf16 %v608, %v608
        %v637 = vpack.c.bf16 %v609, %v609
        %v638 = vpack.c.bf16 %v610, %v610
        %v639 = vpack.c.bf16 %v611, %v611
        %v640 = vpack.c.bf16 %v612, %v612
        %v641 = vpack.c.bf16 %v613, %v613
        %v642 = vpack.c.bf16 %v614, %v614
        %v643 = vpack.c.bf16 %v615, %v615
        %v644 = vpack.c.bf16 %v616, %v616
        %v645 = vpack.c.bf16 %v617, %v617
        %v646 = vpack.c.bf16 %v618, %v618
        %v647 = vpack.c.bf16 %v619, %v619
        %v648 = vpack.c.bf16 %v620, %v620
        %v649 = vpack.c.bf16 %v621, %v621
        %v650 = vpack.c.bf16 %v622, %v622
        %v651 = vpack.c.bf16 %v623, %v623
        %v652 = vpack.c.bf16 %v624, %v624
        %v653 = vpack.c.bf16 %v625, %v625
        %v654 = vpack.c.bf16 %v626, %v626
        %v655 = vpack.c.bf16 %v627, %v627
        %v656 = vpack.c.bf16 %v628, %v628
        %v657 = vpack.c.bf16 %v629, %v629
        %v658 = vpack.c.bf16 %v630, %v630
        %v659 = vpack.c.bf16 %v631, %v631
        %v660 = vpack.c.bf16 %v632, %v632
        %v661 = vpack.c.bf16 %v633, %v633
        %v662 = vpack.c.bf16 %v634, %v634
        %v663 = vpack.c.bf16 %v635, %v635
        %v664 = vld [vmem:[%s282] sm:$0xff]
        %v665 = vld [vmem:[%s282 + $0x8] sm:$0xff]
        %v666 = vld [vmem:[%s282 + $0x10] sm:$0xff]
        %v667 = vld [vmem:[%s282 + $0x18] sm:$0xff]
        %v668 = vld [vmem:[%s282 + $0x20] sm:$0xff]
        %v669 = vld [vmem:[%s282 + $0x28] sm:$0xff]
        %v670 = vld [vmem:[%s282 + $0x30] sm:$0xff]
        %v671 = vld [vmem:[%s282 + $0x38] sm:$0xff]
        %v672 = vld [vmem:[%s282 + $0x40] sm:$0xff]
        %v673 = vld [vmem:[%s282 + $0x48] sm:$0xff]
        %v674 = vld [vmem:[%s282 + $0x50] sm:$0xff]
        %v675 = vld [vmem:[%s282 + $0x58] sm:$0xff]
        %v676 = vld [vmem:[%s282 + $0x60] sm:$0xff]
        %v677 = vld [vmem:[%s282 + $0x68] sm:$0xff]
        %v678 = vld [vmem:[%s282 + $0x70] sm:$0xff]
        %v679 = vld [vmem:[%s282 + $0x78] sm:$0xff]
        %v680 = vld [vmem:[%s282 + $0x80] sm:$0xff]
        %v681 = vld [vmem:[%s282 + $0x88] sm:$0xff]
        %v682 = vld [vmem:[%s282 + $0x90] sm:$0xff]
        %v683 = vld [vmem:[%s282 + $0x98] sm:$0xff]
        %v684 = vld [vmem:[%s282 + $0xa0] sm:$0xff]
        %v685 = vld [vmem:[%s282 + $0xa8] sm:$0xff]
        %v686 = vld [vmem:[%s282 + $0xb0] sm:$0xff]
        %v687 = vld [vmem:[%s282 + $0xb8] sm:$0xff]
        %v688 = vld [vmem:[%s282 + $0xc0] sm:$0xff]
        %v689 = vld [vmem:[%s282 + $0xc8] sm:$0xff]
        %v690 = vld [vmem:[%s282 + $0xd0] sm:$0xff]
        %v691 = vld [vmem:[%s282 + $0xd8] sm:$0xff]
        %v692 = vld [vmem:[%s282 + $0xe0] sm:$0xff]
        %v693 = vld [vmem:[%s282 + $0xe8] sm:$0xff]
        %v694 = vld [vmem:[%s282 + $0xf0] sm:$0xff]
        %v695 = vld [vmem:[%s282 + $0xf8] sm:$0xff]
        %v696 = vld [vmem:[%s282 + $0x100] sm:$0xff]
        %v697 = vld [vmem:[%s282 + $0x108] sm:$0xff]
        %v698 = vld [vmem:[%s282 + $0x110] sm:$0xff]
        %v699 = vld [vmem:[%s282 + $0x118] sm:$0xff]
        %v700 = vld [vmem:[%s282 + $0x120] sm:$0xff]
        %v701 = vld [vmem:[%s282 + $0x128] sm:$0xff]
        %v702 = vld [vmem:[%s282 + $0x130] sm:$0xff]
        %v703 = vld [vmem:[%s282 + $0x138] sm:$0xff]
        %v704 = vld [vmem:[%s282 + $0x140] sm:$0xff]
        %v705 = vld [vmem:[%s282 + $0x148] sm:$0xff]
        %v706 = vld [vmem:[%s282 + $0x150] sm:$0xff]
        %v707 = vld [vmem:[%s282 + $0x158] sm:$0xff]
        %v708 = vld [vmem:[%s282 + $0x160] sm:$0xff]
        %v709 = vld [vmem:[%s282 + $0x168] sm:$0xff]
        %v710 = vld [vmem:[%s282 + $0x170] sm:$0xff]
        %v711 = vld [vmem:[%s282 + $0x178] sm:$0xff]
        %v712 = vld [vmem:[%s282 + $0x180] sm:$0xff]
        %v713 = vld [vmem:[%s282 + $0x188] sm:$0xff]
        %v714 = vld [vmem:[%s282 + $0x190] sm:$0xff]
        %v715 = vld [vmem:[%s282 + $0x198] sm:$0xff]
        %v716 = vld [vmem:[%s282 + $0x1a0] sm:$0xff]
        %v717 = vld [vmem:[%s282 + $0x1a8] sm:$0xff]
        %v718 = vld [vmem:[%s282 + $0x1b0] sm:$0xff]
        %v719 = vld [vmem:[%s282 + $0x1b8] sm:$0xff]
        %v720 = vld [vmem:[%s282 + $0x1c0] sm:$0xff]
        %v721 = vld [vmem:[%s282 + $0x1c8] sm:$0xff]
        %v722 = vld [vmem:[%s282 + $0x1d0] sm:$0xff]
        %v723 = vld [vmem:[%s282 + $0x1d8] sm:$0xff]
        %v724 = vld [vmem:[%s282 + $0x1e0] sm:$0xff]
        %v725 = vld [vmem:[%s282 + $0x1e8] sm:$0xff]
        %v726 = vld [vmem:[%s282 + $0x1f0] sm:$0xff]
        %v727 = vld [vmem:[%s282 + $0x1f8] sm:$0xff]
        %v728 = vld [vmem:[%s282 + $0x200] sm:$0xff]
        %v729 = vld [vmem:[%s282 + $0x208] sm:$0xff]
        %v730 = vld [vmem:[%s282 + $0x210] sm:$0xff]
        %v731 = vld [vmem:[%s282 + $0x218] sm:$0xff]
        %v732 = vld [vmem:[%s282 + $0x220] sm:$0xff]
        %v733 = vld [vmem:[%s282 + $0x228] sm:$0xff]
        %v734 = vld [vmem:[%s282 + $0x230] sm:$0xff]
        %v735 = vld [vmem:[%s282 + $0x238] sm:$0xff]
        %v736 = vld [vmem:[%s282 + $0x240] sm:$0xff]
        %v737 = vld [vmem:[%s282 + $0x248] sm:$0xff]
        %v738 = vld [vmem:[%s282 + $0x250] sm:$0xff]
        %v739 = vld [vmem:[%s282 + $0x258] sm:$0xff]
        %v740 = vld [vmem:[%s282 + $0x260] sm:$0xff]
        %v741 = vld [vmem:[%s282 + $0x268] sm:$0xff]
        %v742 = vld [vmem:[%s282 + $0x270] sm:$0xff]
        %v743 = vld [vmem:[%s282 + $0x278] sm:$0xff]
        %v744 = vld [vmem:[%s282 + $0x280] sm:$0xff]
        %v745 = vld [vmem:[%s282 + $0x288] sm:$0xff]
        %v746 = vld [vmem:[%s282 + $0x290] sm:$0xff]
        %v747 = vld [vmem:[%s282 + $0x298] sm:$0xff]
        %v748 = vld [vmem:[%s282 + $0x2a0] sm:$0xff]
        %v749 = vld [vmem:[%s282 + $0x2a8] sm:$0xff]
        %v750 = vld [vmem:[%s282 + $0x2b0] sm:$0xff]
        %v751 = vld [vmem:[%s282 + $0x2b8] sm:$0xff]
        %v752 = vld [vmem:[%s282 + $0x2c0] sm:$0xff]
        %v753 = vld [vmem:[%s282 + $0x2c8] sm:$0xff]
        %v754 = vld [vmem:[%s282 + $0x2d0] sm:$0xff]
        %v755 = vld [vmem:[%s282 + $0x2d8] sm:$0xff]
        %v756 = vld [vmem:[%s282 + $0x2e0] sm:$0xff]
        %v757 = vld [vmem:[%s282 + $0x2e8] sm:$0xff]
        %v758 = vld [vmem:[%s282 + $0x2f0] sm:$0xff]
        %v759 = vld [vmem:[%s282 + $0x2f8] sm:$0xff]
        %v760 = vld [vmem:[%s282 + $0x300] sm:$0xff]
        %v761 = vld [vmem:[%s282 + $0x308] sm:$0xff]
        %v762 = vld [vmem:[%s282 + $0x310] sm:$0xff]
        %v763 = vld [vmem:[%s282 + $0x318] sm:$0xff]
        %v764 = vld [vmem:[%s282 + $0x320] sm:$0xff]
        %v765 = vld [vmem:[%s282 + $0x328] sm:$0xff]
        %v766 = vld [vmem:[%s282 + $0x330] sm:$0xff]
        %v767 = vld [vmem:[%s282 + $0x338] sm:$0xff]
        %v768 = vld [vmem:[%s282 + $0x340] sm:$0xff]
        %v769 = vld [vmem:[%s282 + $0x348] sm:$0xff]
        %v770 = vld [vmem:[%s282 + $0x350] sm:$0xff]
        %v771 = vld [vmem:[%s282 + $0x358] sm:$0xff]
        %v772 = vld [vmem:[%s282 + $0x360] sm:$0xff]
        %v773 = vld [vmem:[%s282 + $0x368] sm:$0xff]
        %v774 = vld [vmem:[%s282 + $0x370] sm:$0xff]
        %v775 = vld [vmem:[%s282 + $0x378] sm:$0xff]
        %v776 = vld [vmem:[%s282 + $0x380] sm:$0xff]
        %v777 = vld [vmem:[%s282 + $0x388] sm:$0xff]
        %v778 = vld [vmem:[%s282 + $0x390] sm:$0xff]
        %v779 = vld [vmem:[%s282 + $0x398] sm:$0xff]
        %v780 = vld [vmem:[%s282 + $0x3a0] sm:$0xff]
        %v781 = vld [vmem:[%s282 + $0x3a8] sm:$0xff]
        %v782 = vld [vmem:[%s282 + $0x3b0] sm:$0xff]
        %v783 = vld [vmem:[%s282 + $0x3b8] sm:$0xff]
        %v784 = vld [vmem:[%s282 + $0x3c0] sm:$0xff]
        %v785 = vld [vmem:[%s282 + $0x3c8] sm:$0xff]
        %v786 = vld [vmem:[%s282 + $0x3d0] sm:$0xff]
        %v787 = vld [vmem:[%s282 + $0x3d8] sm:$0xff]
        %v788 = vld [vmem:[%s282 + $0x3e0] sm:$0xff]
        %v789 = vld [vmem:[%s282 + $0x3e8] sm:$0xff]
        %v790 = vld [vmem:[%s282 + $0x3f0] sm:$0xff]
        %v791 = vld [vmem:[%s282 + $0x3f8] sm:$0xff]
        %v792 = vld [vmem:[%s282 + $0x400] sm:$0xff]
        %v793 = vld [vmem:[%s282 + $0x408] sm:$0xff]
        %v794 = vld [vmem:[%s282 + $0x410] sm:$0xff]
        %v795 = vld [vmem:[%s282 + $0x418] sm:$0xff]
        %v796 = vld [vmem:[%s282 + $0x420] sm:$0xff]
        %v797 = vld [vmem:[%s282 + $0x428] sm:$0xff]
        %v798 = vld [vmem:[%s282 + $0x430] sm:$0xff]
        %v799 = vld [vmem:[%s282 + $0x438] sm:$0xff]
        %v800 = vld [vmem:[%s282 + $0x440] sm:$0xff]
        %v801 = vld [vmem:[%s282 + $0x448] sm:$0xff]
        %v802 = vld [vmem:[%s282 + $0x450] sm:$0xff]
        %v803 = vld [vmem:[%s282 + $0x458] sm:$0xff]
        %v804 = vld [vmem:[%s282 + $0x460] sm:$0xff]
        %v805 = vld [vmem:[%s282 + $0x468] sm:$0xff]
        %v806 = vld [vmem:[%s282 + $0x470] sm:$0xff]
        %v807 = vld [vmem:[%s282 + $0x478] sm:$0xff]
        %v808 = vld [vmem:[%s282 + $0x480] sm:$0xff]
        %v809 = vld [vmem:[%s282 + $0x488] sm:$0xff]
        %v810 = vld [vmem:[%s282 + $0x490] sm:$0xff]
        %v811 = vld [vmem:[%s282 + $0x498] sm:$0xff]
        %v812 = vld [vmem:[%s282 + $0x4a0] sm:$0xff]
        %v813 = vld [vmem:[%s282 + $0x4a8] sm:$0xff]
        %v814 = vld [vmem:[%s282 + $0x4b0] sm:$0xff]
        %v815 = vld [vmem:[%s282 + $0x4b8] sm:$0xff]
        %v816 = vld [vmem:[%s282 + $0x4c0] sm:$0xff]
        %v817 = vld [vmem:[%s282 + $0x4c8] sm:$0xff]
        %v818 = vld [vmem:[%s282 + $0x4d0] sm:$0xff]
        %v819 = vld [vmem:[%s282 + $0x4d8] sm:$0xff]
        %v820 = vld [vmem:[%s282 + $0x4e0] sm:$0xff]
        %v821 = vld [vmem:[%s282 + $0x4e8] sm:$0xff]
        %v822 = vld [vmem:[%s282 + $0x4f0] sm:$0xff]
        %v823 = vld [vmem:[%s282 + $0x4f8] sm:$0xff]
        %v824 = vld [vmem:[%s282 + $0x500] sm:$0xff]
        %v825 = vld [vmem:[%s282 + $0x508] sm:$0xff]
        %v826 = vld [vmem:[%s282 + $0x510] sm:$0xff]
        %v827 = vld [vmem:[%s282 + $0x518] sm:$0xff]
        %v828 = vld [vmem:[%s282 + $0x520] sm:$0xff]
        %v829 = vld [vmem:[%s282 + $0x528] sm:$0xff]
        %v830 = vld [vmem:[%s282 + $0x530] sm:$0xff]
        %v831 = vld [vmem:[%s282 + $0x538] sm:$0xff]
        %v832 = vld [vmem:[%s282 + $0x540] sm:$0xff]
        %v833 = vld [vmem:[%s282 + $0x548] sm:$0xff]
        %v834 = vld [vmem:[%s282 + $0x550] sm:$0xff]
        %v835 = vld [vmem:[%s282 + $0x558] sm:$0xff]
        %v836 = vld [vmem:[%s282 + $0x560] sm:$0xff]
        %v837 = vld [vmem:[%s282 + $0x568] sm:$0xff]
        %v838 = vld [vmem:[%s282 + $0x570] sm:$0xff]
        %v839 = vld [vmem:[%s282 + $0x578] sm:$0xff]
        %v840 = vld [vmem:[%s282 + $0x580] sm:$0xff]
        %v841 = vld [vmem:[%s282 + $0x588] sm:$0xff]
        %v842 = vld [vmem:[%s282 + $0x590] sm:$0xff]
        %v843 = vld [vmem:[%s282 + $0x598] sm:$0xff]
        %v844 = vld [vmem:[%s282 + $0x5a0] sm:$0xff]
        %v845 = vld [vmem:[%s282 + $0x5a8] sm:$0xff]
        %v846 = vld [vmem:[%s282 + $0x5b0] sm:$0xff]
        %v847 = vld [vmem:[%s282 + $0x5b8] sm:$0xff]
        %v848 = vld [vmem:[%s282 + $0x5c0] sm:$0xff]
        %v849 = vld [vmem:[%s282 + $0x5c8] sm:$0xff]
        %v850 = vld [vmem:[%s282 + $0x5d0] sm:$0xff]
        %v851 = vld [vmem:[%s282 + $0x5d8] sm:$0xff]
        %v852 = vld [vmem:[%s282 + $0x5e0] sm:$0xff]
        %v853 = vld [vmem:[%s282 + $0x5e8] sm:$0xff]
        %v854 = vld [vmem:[%s282 + $0x5f0] sm:$0xff]
        %v855 = vld [vmem:[%s282 + $0x5f8] sm:$0xff]
        %v856 = vld [vmem:[%s282 + $0x600] sm:$0xff]
        %v857 = vld [vmem:[%s282 + $0x608] sm:$0xff]
        %v858 = vld [vmem:[%s282 + $0x610] sm:$0xff]
        %v859 = vld [vmem:[%s282 + $0x618] sm:$0xff]
        %v860 = vld [vmem:[%s282 + $0x620] sm:$0xff]
        %v861 = vld [vmem:[%s282 + $0x628] sm:$0xff]
        %v862 = vld [vmem:[%s282 + $0x630] sm:$0xff]
        %v863 = vld [vmem:[%s282 + $0x638] sm:$0xff]
        %v864 = vld [vmem:[%s282 + $0x640] sm:$0xff]
        %v865 = vld [vmem:[%s282 + $0x648] sm:$0xff]
        %v866 = vld [vmem:[%s282 + $0x650] sm:$0xff]
        %v867 = vld [vmem:[%s282 + $0x658] sm:$0xff]
        %v868 = vld [vmem:[%s282 + $0x660] sm:$0xff]
        %v869 = vld [vmem:[%s282 + $0x668] sm:$0xff]
        %v870 = vld [vmem:[%s282 + $0x670] sm:$0xff]
        %v871 = vld [vmem:[%s282 + $0x678] sm:$0xff]
        %v872 = vld [vmem:[%s282 + $0x680] sm:$0xff]
        %v873 = vld [vmem:[%s282 + $0x688] sm:$0xff]
        %v874 = vld [vmem:[%s282 + $0x690] sm:$0xff]
        %v875 = vld [vmem:[%s282 + $0x698] sm:$0xff]
        %v876 = vld [vmem:[%s282 + $0x6a0] sm:$0xff]
        %v877 = vld [vmem:[%s282 + $0x6a8] sm:$0xff]
        %v878 = vld [vmem:[%s282 + $0x6b0] sm:$0xff]
        %v879 = vld [vmem:[%s282 + $0x6b8] sm:$0xff]
        %v880 = vld [vmem:[%s282 + $0x6c0] sm:$0xff]
        %v881 = vld [vmem:[%s282 + $0x6c8] sm:$0xff]
        %v882 = vld [vmem:[%s282 + $0x6d0] sm:$0xff]
        %v883 = vld [vmem:[%s282 + $0x6d8] sm:$0xff]
        %v884 = vld [vmem:[%s282 + $0x6e0] sm:$0xff]
        %v885 = vld [vmem:[%s282 + $0x6e8] sm:$0xff]
        %v886 = vld [vmem:[%s282 + $0x6f0] sm:$0xff]
        %v887 = vld [vmem:[%s282 + $0x6f8] sm:$0xff]
        %v888 = vld [vmem:[%s282 + $0x700] sm:$0xff]
        %v889 = vld [vmem:[%s282 + $0x708] sm:$0xff]
        %v890 = vld [vmem:[%s282 + $0x710] sm:$0xff]
        %v891 = vld [vmem:[%s282 + $0x718] sm:$0xff]
        %v892 = vld [vmem:[%s282 + $0x720] sm:$0xff]
        %v893 = vld [vmem:[%s282 + $0x728] sm:$0xff]
        %v894 = vld [vmem:[%s282 + $0x730] sm:$0xff]
        %v895 = vld [vmem:[%s282 + $0x738] sm:$0xff]
        %v896 = vld [vmem:[%s282 + $0x740] sm:$0xff]
        %v897 = vld [vmem:[%s282 + $0x748] sm:$0xff]
        %v898 = vld [vmem:[%s282 + $0x750] sm:$0xff]
        %v899 = vld [vmem:[%s282 + $0x758] sm:$0xff]
        %v900 = vld [vmem:[%s282 + $0x760] sm:$0xff]
        %v901 = vld [vmem:[%s282 + $0x768] sm:$0xff]
        %v902 = vld [vmem:[%s282 + $0x770] sm:$0xff]
        %v903 = vld [vmem:[%s282 + $0x778] sm:$0xff]
        %v904 = vld [vmem:[%s282 + $0x780] sm:$0xff]
        %v905 = vld [vmem:[%s282 + $0x788] sm:$0xff]
        %v906 = vld [vmem:[%s282 + $0x790] sm:$0xff]
        %v907 = vld [vmem:[%s282 + $0x798] sm:$0xff]
        %v908 = vld [vmem:[%s282 + $0x7a0] sm:$0xff]
        %v909 = vld [vmem:[%s282 + $0x7a8] sm:$0xff]
        %v910 = vld [vmem:[%s282 + $0x7b0] sm:$0xff]
        %v911 = vld [vmem:[%s282 + $0x7b8] sm:$0xff]
        %v912 = vld [vmem:[%s282 + $0x7c0] sm:$0xff]
        %v913 = vld [vmem:[%s282 + $0x7c8] sm:$0xff]
        %v914 = vld [vmem:[%s282 + $0x7d0] sm:$0xff]
        %v915 = vld [vmem:[%s282 + $0x7d8] sm:$0xff]
        %v916 = vld [vmem:[%s282 + $0x7e0] sm:$0xff]
        %v917 = vld [vmem:[%s282 + $0x7e8] sm:$0xff]
        %v918 = vld [vmem:[%s282 + $0x7f0] sm:$0xff]
        %v919 = vld [vmem:[%s282 + $0x7f8] sm:$0xff]
        %v920 = vld [vmem:[%s282 + $0x800] sm:$0xff]
        %v921 = vld [vmem:[%s282 + $0x808] sm:$0xff]
        %v922 = vld [vmem:[%s282 + $0x810] sm:$0xff]
        %v923 = vld [vmem:[%s282 + $0x818] sm:$0xff]
        %v924 = vld [vmem:[%s282 + $0x820] sm:$0xff]
        %v925 = vld [vmem:[%s282 + $0x828] sm:$0xff]
        %v926 = vld [vmem:[%s282 + $0x830] sm:$0xff]
        %v927 = vld [vmem:[%s282 + $0x838] sm:$0xff]
        %v928 = vld [vmem:[%s282 + $0x840] sm:$0xff]
        %v929 = vld [vmem:[%s282 + $0x848] sm:$0xff]
        %v930 = vld [vmem:[%s282 + $0x850] sm:$0xff]
        %v931 = vld [vmem:[%s282 + $0x858] sm:$0xff]
        %v932 = vld [vmem:[%s282 + $0x860] sm:$0xff]
        %v933 = vld [vmem:[%s282 + $0x868] sm:$0xff]
        %v934 = vld [vmem:[%s282 + $0x870] sm:$0xff]
        %v935 = vld [vmem:[%s282 + $0x878] sm:$0xff]
        %v936 = vld [vmem:[%s282 + $0x880] sm:$0xff]
        %v937 = vld [vmem:[%s282 + $0x888] sm:$0xff]
        %v938 = vld [vmem:[%s282 + $0x890] sm:$0xff]
        %v939 = vld [vmem:[%s282 + $0x898] sm:$0xff]
        %v940 = vld [vmem:[%s282 + $0x8a0] sm:$0xff]
        %v941 = vld [vmem:[%s282 + $0x8a8] sm:$0xff]
        %v942 = vld [vmem:[%s282 + $0x8b0] sm:$0xff]
        %v943 = vld [vmem:[%s282 + $0x8b8] sm:$0xff]
        %v944 = vld [vmem:[%s282 + $0x8c0] sm:$0xff]
        %v945 = vld [vmem:[%s282 + $0x8c8] sm:$0xff]
        %v946 = vld [vmem:[%s282 + $0x8d0] sm:$0xff]
        %v947 = vld [vmem:[%s282 + $0x8d8] sm:$0xff]
        %v948 = vld [vmem:[%s282 + $0x8e0] sm:$0xff]
        %v949 = vld [vmem:[%s282 + $0x8e8] sm:$0xff]
        %v950 = vld [vmem:[%s282 + $0x8f0] sm:$0xff]
        %v951 = vld [vmem:[%s282 + $0x8f8] sm:$0xff]
        %v952 = vld [vmem:[%s282 + $0x900] sm:$0xff]
        %v953 = vld [vmem:[%s282 + $0x908] sm:$0xff]
        %v954 = vld [vmem:[%s282 + $0x910] sm:$0xff]
        %v955 = vld [vmem:[%s282 + $0x918] sm:$0xff]
        %v956 = vld [vmem:[%s282 + $0x920] sm:$0xff]
        %v957 = vld [vmem:[%s282 + $0x928] sm:$0xff]
        %v958 = vld [vmem:[%s282 + $0x930] sm:$0xff]
        %v959 = vld [vmem:[%s282 + $0x938] sm:$0xff]
        %v960 = vld [vmem:[%s282 + $0x940] sm:$0xff]
        %v961 = vld [vmem:[%s282 + $0x948] sm:$0xff]
        %v962 = vld [vmem:[%s282 + $0x950] sm:$0xff]
        %v963 = vld [vmem:[%s282 + $0x958] sm:$0xff]
        %v964 = vld [vmem:[%s282 + $0x960] sm:$0xff]
        %v965 = vld [vmem:[%s282 + $0x968] sm:$0xff]
        %v966 = vld [vmem:[%s282 + $0x970] sm:$0xff]
        %v967 = vld [vmem:[%s282 + $0x978] sm:$0xff]
        %v968 = vld [vmem:[%s282 + $0x980] sm:$0xff]
        %v969 = vld [vmem:[%s282 + $0x988] sm:$0xff]
        %v970 = vld [vmem:[%s282 + $0x990] sm:$0xff]
        %v971 = vld [vmem:[%s282 + $0x998] sm:$0xff]
        %v972 = vld [vmem:[%s282 + $0x9a0] sm:$0xff]
        %v973 = vld [vmem:[%s282 + $0x9a8] sm:$0xff]
        %v974 = vld [vmem:[%s282 + $0x9b0] sm:$0xff]
        %v975 = vld [vmem:[%s282 + $0x9b8] sm:$0xff]
        %v976 = vld [vmem:[%s282 + $0x9c0] sm:$0xff]
        %v977 = vld [vmem:[%s282 + $0x9c8] sm:$0xff]
        %v978 = vld [vmem:[%s282 + $0x9d0] sm:$0xff]
        %v979 = vld [vmem:[%s282 + $0x9d8] sm:$0xff]
        %v980 = vld [vmem:[%s282 + $0x9e0] sm:$0xff]
        %v981 = vld [vmem:[%s282 + $0x9e8] sm:$0xff]
        %v982 = vld [vmem:[%s282 + $0x9f0] sm:$0xff]
        %v983 = vld [vmem:[%s282 + $0x9f8] sm:$0xff]
        %v984 = vld [vmem:[%s282 + $0xa00] sm:$0xff]
        %v985 = vld [vmem:[%s282 + $0xa08] sm:$0xff]
        %v986 = vld [vmem:[%s282 + $0xa10] sm:$0xff]
        %v987 = vld [vmem:[%s282 + $0xa18] sm:$0xff]
        %v988 = vld [vmem:[%s282 + $0xa20] sm:$0xff]
        %v989 = vld [vmem:[%s282 + $0xa28] sm:$0xff]
        %v990 = vld [vmem:[%s282 + $0xa30] sm:$0xff]
        %v991 = vld [vmem:[%s282 + $0xa38] sm:$0xff]
        %v992 = vld [vmem:[%s282 + $0xa40] sm:$0xff]
        %v993 = vld [vmem:[%s282 + $0xa48] sm:$0xff]
        %v994 = vld [vmem:[%s282 + $0xa50] sm:$0xff]
        %v995 = vld [vmem:[%s282 + $0xa58] sm:$0xff]
        %v996 = vld [vmem:[%s282 + $0xa60] sm:$0xff]
        %v997 = vld [vmem:[%s282 + $0xa68] sm:$0xff]
        %v998 = vld [vmem:[%s282 + $0xa70] sm:$0xff]
        %v999 = vld [vmem:[%s282 + $0xa78] sm:$0xff]
        %v1000 = vld [vmem:[%s282 + $0xa80] sm:$0xff]
        %v1001 = vld [vmem:[%s282 + $0xa88] sm:$0xff]
        %v1002 = vld [vmem:[%s282 + $0xa90] sm:$0xff]
        %v1003 = vld [vmem:[%s282 + $0xa98] sm:$0xff]
        %v1004 = vld [vmem:[%s282 + $0xaa0] sm:$0xff]
        %v1005 = vld [vmem:[%s282 + $0xaa8] sm:$0xff]
        %v1006 = vld [vmem:[%s282 + $0xab0] sm:$0xff]
        %v1007 = vld [vmem:[%s282 + $0xab8] sm:$0xff]
        %v1008 = vld [vmem:[%s282 + $0xac0] sm:$0xff]
        %v1009 = vld [vmem:[%s282 + $0xac8] sm:$0xff]
        %v1010 = vld [vmem:[%s282 + $0xad0] sm:$0xff]
        %v1011 = vld [vmem:[%s282 + $0xad8] sm:$0xff]
        %v1012 = vld [vmem:[%s282 + $0xae0] sm:$0xff]
        %v1013 = vld [vmem:[%s282 + $0xae8] sm:$0xff]
        %v1014 = vld [vmem:[%s282 + $0xaf0] sm:$0xff]
        %v1015 = vld [vmem:[%s282 + $0xaf8] sm:$0xff]
        %v1016 = vld [vmem:[%s282 + $0xb00] sm:$0xff]
        %v1017 = vld [vmem:[%s282 + $0xb08] sm:$0xff]
        %v1018 = vld [vmem:[%s282 + $0xb10] sm:$0xff]
        %v1019 = vld [vmem:[%s282 + $0xb18] sm:$0xff]
        %v1020 = vld [vmem:[%s282 + $0xb20] sm:$0xff]
        %v1021 = vld [vmem:[%s282 + $0xb28] sm:$0xff]
        %v1022 = vld [vmem:[%s282 + $0xb30] sm:$0xff]
        %v1023 = vld [vmem:[%s282 + $0xb38] sm:$0xff]
        %v1024 = vld [vmem:[%s282 + $0xb40] sm:$0xff]
        %v1025 = vld [vmem:[%s282 + $0xb48] sm:$0xff]
        %v1026 = vld [vmem:[%s282 + $0xb50] sm:$0xff]
        %v1027 = vld [vmem:[%s282 + $0xb58] sm:$0xff]
        %v1028 = vld [vmem:[%s282 + $0xb60] sm:$0xff]
        %v1029 = vld [vmem:[%s282 + $0xb68] sm:$0xff]
        %v1030 = vld [vmem:[%s282 + $0xb70] sm:$0xff]
        %v1031 = vld [vmem:[%s282 + $0xb78] sm:$0xff]
        %v1032 = vld [vmem:[%s282 + $0xb80] sm:$0xff]
        %v1033 = vld [vmem:[%s282 + $0xb88] sm:$0xff]
        %v1034 = vld [vmem:[%s282 + $0xb90] sm:$0xff]
        %v1035 = vld [vmem:[%s282 + $0xb98] sm:$0xff]
        %v1036 = vld [vmem:[%s282 + $0xba0] sm:$0xff]
        %v1037 = vld [vmem:[%s282 + $0xba8] sm:$0xff]
        %v1038 = vld [vmem:[%s282 + $0xbb0] sm:$0xff]
        %v1039 = vld [vmem:[%s282 + $0xbb8] sm:$0xff]
        %v1040 = vld [vmem:[%s282 + $0xbc0] sm:$0xff]
        %v1041 = vld [vmem:[%s282 + $0xbc8] sm:$0xff]
        %v1042 = vld [vmem:[%s282 + $0xbd0] sm:$0xff]
        %v1043 = vld [vmem:[%s282 + $0xbd8] sm:$0xff]
        %v1044 = vld [vmem:[%s282 + $0xbe0] sm:$0xff]
        %v1045 = vld [vmem:[%s282 + $0xbe8] sm:$0xff]
        %v1046 = vld [vmem:[%s282 + $0xbf0] sm:$0xff]
        %v1047 = vld [vmem:[%s282 + $0xbf8] sm:$0xff]
        %v1048 = vld [vmem:[%s282 + $0xc00] sm:$0xff]
        %v1049 = vld [vmem:[%s282 + $0xc08] sm:$0xff]
        %v1050 = vld [vmem:[%s282 + $0xc10] sm:$0xff]
        %v1051 = vld [vmem:[%s282 + $0xc18] sm:$0xff]
        %v1052 = vld [vmem:[%s282 + $0xc20] sm:$0xff]
        %v1053 = vld [vmem:[%s282 + $0xc28] sm:$0xff]
        %v1054 = vld [vmem:[%s282 + $0xc30] sm:$0xff]
        %v1055 = vld [vmem:[%s282 + $0xc38] sm:$0xff]
        %v1056 = vld [vmem:[%s282 + $0xc40] sm:$0xff]
        %v1057 = vld [vmem:[%s282 + $0xc48] sm:$0xff]
        %v1058 = vld [vmem:[%s282 + $0xc50] sm:$0xff]
        %v1059 = vld [vmem:[%s282 + $0xc58] sm:$0xff]
        %v1060 = vld [vmem:[%s282 + $0xc60] sm:$0xff]
        %v1061 = vld [vmem:[%s282 + $0xc68] sm:$0xff]
        %v1062 = vld [vmem:[%s282 + $0xc70] sm:$0xff]
        %v1063 = vld [vmem:[%s282 + $0xc78] sm:$0xff]
        %v1064 = vld [vmem:[%s282 + $0xc80] sm:$0xff]
        %v1065 = vld [vmem:[%s282 + $0xc88] sm:$0xff]
        %v1066 = vld [vmem:[%s282 + $0xc90] sm:$0xff]
        %v1067 = vld [vmem:[%s282 + $0xc98] sm:$0xff]
        %v1068 = vld [vmem:[%s282 + $0xca0] sm:$0xff]
        %v1069 = vld [vmem:[%s282 + $0xca8] sm:$0xff]
        %v1070 = vld [vmem:[%s282 + $0xcb0] sm:$0xff]
        %v1071 = vld [vmem:[%s282 + $0xcb8] sm:$0xff]
        %v1072 = vld [vmem:[%s282 + $0xcc0] sm:$0xff]
        %v1073 = vld [vmem:[%s282 + $0xcc8] sm:$0xff]
        %v1074 = vld [vmem:[%s282 + $0xcd0] sm:$0xff]
        %v1075 = vld [vmem:[%s282 + $0xcd8] sm:$0xff]
        %v1076 = vld [vmem:[%s282 + $0xce0] sm:$0xff]
        %v1077 = vld [vmem:[%s282 + $0xce8] sm:$0xff]
        %v1078 = vld [vmem:[%s282 + $0xcf0] sm:$0xff]
        %v1079 = vld [vmem:[%s282 + $0xcf8] sm:$0xff]
        %v1080 = vld [vmem:[%s282 + $0xd00] sm:$0xff]
        %v1081 = vld [vmem:[%s282 + $0xd08] sm:$0xff]
        %v1082 = vld [vmem:[%s282 + $0xd10] sm:$0xff]
        %v1083 = vld [vmem:[%s282 + $0xd18] sm:$0xff]
        %v1084 = vld [vmem:[%s282 + $0xd20] sm:$0xff]
        %v1085 = vld [vmem:[%s282 + $0xd28] sm:$0xff]
        %v1086 = vld [vmem:[%s282 + $0xd30] sm:$0xff]
        %v1087 = vld [vmem:[%s282 + $0xd38] sm:$0xff]
        %v1088 = vld [vmem:[%s282 + $0xd40] sm:$0xff]
        %v1089 = vld [vmem:[%s282 + $0xd48] sm:$0xff]
        %v1090 = vld [vmem:[%s282 + $0xd50] sm:$0xff]
        %v1091 = vld [vmem:[%s282 + $0xd58] sm:$0xff]
        %v1092 = vld [vmem:[%s282 + $0xd60] sm:$0xff]
        %v1093 = vld [vmem:[%s282 + $0xd68] sm:$0xff]
        %v1094 = vld [vmem:[%s282 + $0xd70] sm:$0xff]
        %v1095 = vld [vmem:[%s282 + $0xd78] sm:$0xff]
        %v1096 = vld [vmem:[%s282 + $0xd80] sm:$0xff]
        %v1097 = vld [vmem:[%s282 + $0xd88] sm:$0xff]
        %v1098 = vld [vmem:[%s282 + $0xd90] sm:$0xff]
        %v1099 = vld [vmem:[%s282 + $0xd98] sm:$0xff]
        %v1100 = vld [vmem:[%s282 + $0xda0] sm:$0xff]
        %v1101 = vld [vmem:[%s282 + $0xda8] sm:$0xff]
        %v1102 = vld [vmem:[%s282 + $0xdb0] sm:$0xff]
        %v1103 = vld [vmem:[%s282 + $0xdb8] sm:$0xff]
        %v1104 = vld [vmem:[%s282 + $0xdc0] sm:$0xff]
        %v1105 = vld [vmem:[%s282 + $0xdc8] sm:$0xff]
        %v1106 = vld [vmem:[%s282 + $0xdd0] sm:$0xff]
        %v1107 = vld [vmem:[%s282 + $0xdd8] sm:$0xff]
        %v1108 = vld [vmem:[%s282 + $0xde0] sm:$0xff]
        %v1109 = vld [vmem:[%s282 + $0xde8] sm:$0xff]
        %v1110 = vld [vmem:[%s282 + $0xdf0] sm:$0xff]
        %v1111 = vld [vmem:[%s282 + $0xdf8] sm:$0xff]
        %v1112 = vld [vmem:[%s291] sm:$0xf]
        %v1114 = vlaneseq
        %v1115 = vshrl.u32 %v1114, 7
        %v1116 = vsub.s32 0, %v1115
        %v1117 = vrot.slane %v1112, %v1116
        %v1118 = vlaneseq
        %v1119 = vshrl.u32 %v1118, 7
        %v1120 = vsub.s32 1, %v1119
        %v1121 = vrot.slane %v1112, %v1120
        %v1122 = vlaneseq
        %v1123 = vshrl.u32 %v1122, 7
        %v1124 = vsub.s32 2, %v1123
        %v1125 = vrot.slane %v1112, %v1124
        %v1126 = vlaneseq
        %v1127 = vshrl.u32 %v1126, 7
        %v1128 = vsub.s32 3, %v1127
        %v1129 = vrot.slane %v1112, %v1128
        %v1162 = vunpack.c.l.b16 %v636
        %v1163 = vunpack.c.l.b16 %v637
        %v1164 = vunpack.c.l.b16 %v638
        %v1165 = vunpack.c.l.b16 %v639
        %v1166 = vunpack.c.l.b16 %v640
        %v1167 = vunpack.c.l.b16 %v641
        %v1168 = vunpack.c.l.b16 %v642
        %v1169 = vunpack.c.l.b16 %v643
        %v1170 = vunpack.c.l.b16 %v644
        %v1171 = vunpack.c.l.b16 %v645
        %v1172 = vunpack.c.l.b16 %v646
        %v1173 = vunpack.c.l.b16 %v647
        %v1174 = vunpack.c.l.b16 %v648
        %v1175 = vunpack.c.l.b16 %v649
        %v1176 = vunpack.c.l.b16 %v650
        %v1177 = vunpack.c.l.b16 %v651
        %v1178 = vunpack.c.l.b16 %v652
        %v1179 = vunpack.c.l.b16 %v653
        %v1180 = vunpack.c.l.b16 %v654
        %v1181 = vunpack.c.l.b16 %v655
        %v1182 = vunpack.c.l.b16 %v656
        %v1183 = vunpack.c.l.b16 %v657
        %v1184 = vunpack.c.l.b16 %v658
        %v1185 = vunpack.c.l.b16 %v659
        %v1186 = vunpack.c.l.b16 %v660
        %v1187 = vunpack.c.l.b16 %v661
        %v1188 = vunpack.c.l.b16 %v662
        %v1189 = vunpack.c.l.b16 %v663
        %vm1190 = vcmask 1041409
        %v1191 = vsel %vm1190, %v1176, %v1162
        %v1192 = vsel %vm1190, %v1177, %v1163
        %v1193 = vsel %vm1190, %v1178, %v1164
        %v1194 = vsel %vm1190, %v1179, %v1165
        %v1195 = vsel %vm1190, %v1180, %v1166
        %v1196 = vsel %vm1190, %v1181, %v1167
        %v1197 = vsel %vm1190, %v1182, %v1168
        %v1198 = vsel %vm1190, %v1183, %v1169
        %v1199 = vsel %vm1190, %v1184, %v1170
        %v1200 = vsel %vm1190, %v1185, %v1171
        %v1201 = vsel %vm1190, %v1186, %v1172
        %v1202 = vsel %vm1190, %v1187, %v1173
        %v1203 = vsel %vm1190, %v1188, %v1174
        %v1204 = vsel %vm1190, %v1189, %v1175
        %v1205 = vpack.c.b16 %v1191, %v1191
        %v1206 = vpack.c.b16 %v1192, %v1192
        %v1207 = vpack.c.b16 %v1193, %v1193
        %v1208 = vpack.c.b16 %v1194, %v1194
        %v1209 = vpack.c.b16 %v1195, %v1195
        %v1210 = vpack.c.b16 %v1196, %v1196
        %v1211 = vpack.c.b16 %v1197, %v1197
        %v1212 = vpack.c.b16 %v1198, %v1198
        %v1213 = vpack.c.b16 %v1199, %v1199
        %v1214 = vpack.c.b16 %v1200, %v1200
        %v1215 = vpack.c.b16 %v1201, %v1201
        %v1216 = vpack.c.b16 %v1202, %v1202
        %v1217 = vpack.c.b16 %v1203, %v1203
        %v1218 = vpack.c.b16 %v1204, %v1204
        %v1681 = vunpack.c.l.b16 %v664
        %v1682 = vunpack.c.h.b16 %v664
        %v1683 = vunpack.c.l.b16 %v665
        %v1684 = vunpack.c.h.b16 %v665
        %v1685 = vunpack.c.l.b16 %v666
        %v1686 = vunpack.c.h.b16 %v666
        %v1687 = vunpack.c.l.b16 %v667
        %v1688 = vunpack.c.h.b16 %v667
        %v1689 = vunpack.c.l.b16 %v668
        %v1690 = vunpack.c.h.b16 %v668
        %v1691 = vunpack.c.l.b16 %v669
        %v1692 = vunpack.c.h.b16 %v669
        %v1693 = vunpack.c.l.b16 %v670
        %v1694 = vunpack.c.h.b16 %v670
        %v1695 = vunpack.c.l.b16 %v671
        %v1696 = vunpack.c.h.b16 %v671
        %v1697 = vunpack.c.l.b16 %v672
        %v1698 = vunpack.c.h.b16 %v672
        %v1699 = vunpack.c.l.b16 %v673
        %v1700 = vunpack.c.h.b16 %v673
        %v1701 = vunpack.c.l.b16 %v674
        %v1702 = vunpack.c.h.b16 %v674
        %v1703 = vunpack.c.l.b16 %v675
        %v1704 = vunpack.c.h.b16 %v675
        %v1705 = vunpack.c.l.b16 %v676
        %v1706 = vunpack.c.h.b16 %v676
        %v1707 = vunpack.c.l.b16 %v677
        %v1708 = vunpack.c.h.b16 %v677
        %v1709 = vunpack.c.l.b16 %v678
        %v1710 = vunpack.c.h.b16 %v678
        %v1711 = vunpack.c.l.b16 %v679
        %v1712 = vunpack.c.h.b16 %v679
        %v1713 = vunpack.c.l.b16 %v680
        %v1714 = vunpack.c.h.b16 %v680
        %v1715 = vunpack.c.l.b16 %v681
        %v1716 = vunpack.c.h.b16 %v681
        %v1717 = vunpack.c.l.b16 %v682
        %v1718 = vunpack.c.h.b16 %v682
        %v1719 = vunpack.c.l.b16 %v683
        %v1720 = vunpack.c.h.b16 %v683
        %v1721 = vunpack.c.l.b16 %v684
        %v1722 = vunpack.c.h.b16 %v684
        %v1723 = vunpack.c.l.b16 %v685
        %v1724 = vunpack.c.h.b16 %v685
        %v1725 = vunpack.c.l.b16 %v686
        %v1726 = vunpack.c.h.b16 %v686
        %v1727 = vunpack.c.l.b16 %v687
        %v1728 = vunpack.c.h.b16 %v687
        %v1729 = vunpack.c.l.b16 %v688
        %v1730 = vunpack.c.h.b16 %v688
        %v1731 = vunpack.c.l.b16 %v689
        %v1732 = vunpack.c.h.b16 %v689
        %v1733 = vunpack.c.l.b16 %v690
        %v1734 = vunpack.c.h.b16 %v690
        %v1735 = vunpack.c.l.b16 %v691
        %v1736 = vunpack.c.h.b16 %v691
        %v1737 = vunpack.c.l.b16 %v692
        %v1738 = vunpack.c.h.b16 %v692
        %v1739 = vunpack.c.l.b16 %v693
        %v1740 = vunpack.c.h.b16 %v693
        %v1741 = vunpack.c.l.b16 %v694
        %v1742 = vunpack.c.h.b16 %v694
        %v1743 = vunpack.c.l.b16 %v695
        %v1744 = vunpack.c.h.b16 %v695
        %v1745 = vunpack.c.l.b16 %v696
        %v1746 = vunpack.c.h.b16 %v696
        %v1747 = vunpack.c.l.b16 %v697
        %v1748 = vunpack.c.h.b16 %v697
        %v1749 = vunpack.c.l.b16 %v698
        %v1750 = vunpack.c.h.b16 %v698
        %v1751 = vunpack.c.l.b16 %v699
        %v1752 = vunpack.c.h.b16 %v699
        %v1753 = vunpack.c.l.b16 %v700
        %v1754 = vunpack.c.h.b16 %v700
        %v1755 = vunpack.c.l.b16 %v701
        %v1756 = vunpack.c.h.b16 %v701
        %v1757 = vunpack.c.l.b16 %v702
        %v1758 = vunpack.c.h.b16 %v702
        %v1759 = vunpack.c.l.b16 %v703
        %v1760 = vunpack.c.h.b16 %v703
        %v1761 = vunpack.c.l.b16 %v704
        %v1762 = vunpack.c.h.b16 %v704
        %v1763 = vunpack.c.l.b16 %v705
        %v1764 = vunpack.c.h.b16 %v705
        %v1765 = vunpack.c.l.b16 %v706
        %v1766 = vunpack.c.h.b16 %v706
        %v1767 = vunpack.c.l.b16 %v707
        %v1768 = vunpack.c.h.b16 %v707
        %v1769 = vunpack.c.l.b16 %v708
        %v1770 = vunpack.c.h.b16 %v708
        %v1771 = vunpack.c.l.b16 %v709
        %v1772 = vunpack.c.h.b16 %v709
        %v1773 = vunpack.c.l.b16 %v710
        %v1774 = vunpack.c.h.b16 %v710
        %v1775 = vunpack.c.l.b16 %v711
        %v1776 = vunpack.c.h.b16 %v711
        %v1777 = vunpack.c.l.b16 %v712
        %v1778 = vunpack.c.h.b16 %v712
        %v1779 = vunpack.c.l.b16 %v713
        %v1780 = vunpack.c.h.b16 %v713
        %v1781 = vunpack.c.l.b16 %v714
        %v1782 = vunpack.c.h.b16 %v714
        %v1783 = vunpack.c.l.b16 %v715
        %v1784 = vunpack.c.h.b16 %v715
        %v1785 = vunpack.c.l.b16 %v716
        %v1786 = vunpack.c.h.b16 %v716
        %v1787 = vunpack.c.l.b16 %v717
        %v1788 = vunpack.c.h.b16 %v717
        %v1789 = vunpack.c.l.b16 %v718
        %v1790 = vunpack.c.h.b16 %v718
        %v1791 = vunpack.c.l.b16 %v719
        %v1792 = vunpack.c.h.b16 %v719
        %v1793 = vunpack.c.l.b16 %v720
        %v1794 = vunpack.c.h.b16 %v720
        %v1795 = vunpack.c.l.b16 %v721
        %v1796 = vunpack.c.h.b16 %v721
        %v1797 = vunpack.c.l.b16 %v722
        %v1798 = vunpack.c.h.b16 %v722
        %v1799 = vunpack.c.l.b16 %v723
        %v1800 = vunpack.c.h.b16 %v723
        %v1801 = vunpack.c.l.b16 %v724
        %v1802 = vunpack.c.h.b16 %v724
        %v1803 = vunpack.c.l.b16 %v725
        %v1804 = vunpack.c.h.b16 %v725
        %v1805 = vunpack.c.l.b16 %v726
        %v1806 = vunpack.c.h.b16 %v726
        %v1807 = vunpack.c.l.b16 %v727
        %v1808 = vunpack.c.h.b16 %v727
        %v1809 = vunpack.c.l.b16 %v728
        %v1810 = vunpack.c.h.b16 %v728
        %v1811 = vunpack.c.l.b16 %v729
        %v1812 = vunpack.c.h.b16 %v729
        %v1813 = vunpack.c.l.b16 %v730
        %v1814 = vunpack.c.h.b16 %v730
        %v1815 = vunpack.c.l.b16 %v731
        %v1816 = vunpack.c.h.b16 %v731
        %v1817 = vunpack.c.l.b16 %v732
        %v1818 = vunpack.c.h.b16 %v732
        %v1819 = vunpack.c.l.b16 %v733
        %v1820 = vunpack.c.h.b16 %v733
        %v1821 = vunpack.c.l.b16 %v734
        %v1822 = vunpack.c.h.b16 %v734
        %v1823 = vunpack.c.l.b16 %v735
        %v1824 = vunpack.c.h.b16 %v735
        %v1825 = vunpack.c.l.b16 %v736
        %v1826 = vunpack.c.h.b16 %v736
        %v1827 = vunpack.c.l.b16 %v737
        %v1828 = vunpack.c.h.b16 %v737
        %v1829 = vunpack.c.l.b16 %v738
        %v1830 = vunpack.c.h.b16 %v738
        %v1831 = vunpack.c.l.b16 %v739
        %v1832 = vunpack.c.h.b16 %v739
        %v1833 = vunpack.c.l.b16 %v740
        %v1834 = vunpack.c.h.b16 %v740
        %v1835 = vunpack.c.l.b16 %v741
        %v1836 = vunpack.c.h.b16 %v741
        %v1837 = vunpack.c.l.b16 %v742
        %v1838 = vunpack.c.h.b16 %v742
        %v1839 = vunpack.c.l.b16 %v743
        %v1840 = vunpack.c.h.b16 %v743
        %v1841 = vunpack.c.l.b16 %v744
        %v1842 = vunpack.c.h.b16 %v744
        %v1843 = vunpack.c.l.b16 %v745
        %v1844 = vunpack.c.h.b16 %v745
        %v1845 = vunpack.c.l.b16 %v746
        %v1846 = vunpack.c.h.b16 %v746
        %v1847 = vunpack.c.l.b16 %v747
        %v1848 = vunpack.c.h.b16 %v747
        %v1849 = vunpack.c.l.b16 %v748
        %v1850 = vunpack.c.h.b16 %v748
        %v1851 = vunpack.c.l.b16 %v749
        %v1852 = vunpack.c.h.b16 %v749
        %v1853 = vunpack.c.l.b16 %v750
        %v1854 = vunpack.c.h.b16 %v750
        %v1855 = vunpack.c.l.b16 %v751
        %v1856 = vunpack.c.h.b16 %v751
        %v1857 = vunpack.c.l.b16 %v752
        %v1858 = vunpack.c.h.b16 %v752
        %v1859 = vunpack.c.l.b16 %v753
        %v1860 = vunpack.c.h.b16 %v753
        %v1861 = vunpack.c.l.b16 %v754
        %v1862 = vunpack.c.h.b16 %v754
        %v1863 = vunpack.c.l.b16 %v755
        %v1864 = vunpack.c.h.b16 %v755
        %v1865 = vunpack.c.l.b16 %v756
        %v1866 = vunpack.c.h.b16 %v756
        %v1867 = vunpack.c.l.b16 %v757
        %v1868 = vunpack.c.h.b16 %v757
        %v1869 = vunpack.c.l.b16 %v758
        %v1870 = vunpack.c.h.b16 %v758
        %v1871 = vunpack.c.l.b16 %v759
        %v1872 = vunpack.c.h.b16 %v759
        %v1873 = vunpack.c.l.b16 %v760
        %v1874 = vunpack.c.h.b16 %v760
        %v1875 = vunpack.c.l.b16 %v761
        %v1876 = vunpack.c.h.b16 %v761
        %v1877 = vunpack.c.l.b16 %v762
        %v1878 = vunpack.c.h.b16 %v762
        %v1879 = vunpack.c.l.b16 %v763
        %v1880 = vunpack.c.h.b16 %v763
        %v1881 = vunpack.c.l.b16 %v764
        %v1882 = vunpack.c.h.b16 %v764
        %v1883 = vunpack.c.l.b16 %v765
        %v1884 = vunpack.c.h.b16 %v765
        %v1885 = vunpack.c.l.b16 %v766
        %v1886 = vunpack.c.h.b16 %v766
        %v1887 = vunpack.c.l.b16 %v767
        %v1888 = vunpack.c.h.b16 %v767
        %v1889 = vunpack.c.l.b16 %v768
        %v1890 = vunpack.c.h.b16 %v768
        %v1891 = vunpack.c.l.b16 %v769
        %v1892 = vunpack.c.h.b16 %v769
        %v1893 = vunpack.c.l.b16 %v770
        %v1894 = vunpack.c.h.b16 %v770
        %v1895 = vunpack.c.l.b16 %v771
        %v1896 = vunpack.c.h.b16 %v771
        %v1897 = vunpack.c.l.b16 %v772
        %v1898 = vunpack.c.h.b16 %v772
        %v1899 = vunpack.c.l.b16 %v773
        %v1900 = vunpack.c.h.b16 %v773
        %v1901 = vunpack.c.l.b16 %v774
        %v1902 = vunpack.c.h.b16 %v774
        %v1903 = vunpack.c.l.b16 %v775
        %v1904 = vunpack.c.h.b16 %v775
        %v1905 = vunpack.c.l.b16 %v776
        %v1906 = vunpack.c.h.b16 %v776
        %v1907 = vunpack.c.l.b16 %v777
        %v1908 = vunpack.c.h.b16 %v777
        %v1909 = vunpack.c.l.b16 %v778
        %v1910 = vunpack.c.h.b16 %v778
        %v1911 = vunpack.c.l.b16 %v779
        %v1912 = vunpack.c.h.b16 %v779
        %v1913 = vunpack.c.l.b16 %v780
        %v1914 = vunpack.c.h.b16 %v780
        %v1915 = vunpack.c.l.b16 %v781
        %v1916 = vunpack.c.h.b16 %v781
        %v1917 = vunpack.c.l.b16 %v782
        %v1918 = vunpack.c.h.b16 %v782
        %v1919 = vunpack.c.l.b16 %v783
        %v1920 = vunpack.c.h.b16 %v783
        %v1921 = vunpack.c.l.b16 %v784
        %v1922 = vunpack.c.h.b16 %v784
        %v1923 = vunpack.c.l.b16 %v785
        %v1924 = vunpack.c.h.b16 %v785
        %v1925 = vunpack.c.l.b16 %v786
        %v1926 = vunpack.c.h.b16 %v786
        %v1927 = vunpack.c.l.b16 %v787
        %v1928 = vunpack.c.h.b16 %v787
        %v1929 = vunpack.c.l.b16 %v788
        %v1930 = vunpack.c.h.b16 %v788
        %v1931 = vunpack.c.l.b16 %v789
        %v1932 = vunpack.c.h.b16 %v789
        %v1933 = vunpack.c.l.b16 %v790
        %v1934 = vunpack.c.h.b16 %v790
        %v1935 = vunpack.c.l.b16 %v791
        %v1936 = vunpack.c.h.b16 %v791
        %v1937 = vunpack.c.l.b16 %v792
        %v1938 = vunpack.c.h.b16 %v792
        %v1939 = vunpack.c.l.b16 %v793
        %v1940 = vunpack.c.h.b16 %v793
        %v1941 = vunpack.c.l.b16 %v794
        %v1942 = vunpack.c.h.b16 %v794
        %v1943 = vunpack.c.l.b16 %v795
        %v1944 = vunpack.c.h.b16 %v795
        %v1945 = vunpack.c.l.b16 %v796
        %v1946 = vunpack.c.h.b16 %v796
        %v1947 = vunpack.c.l.b16 %v797
        %v1948 = vunpack.c.h.b16 %v797
        %v1949 = vunpack.c.l.b16 %v798
        %v1950 = vunpack.c.h.b16 %v798
        %v1951 = vunpack.c.l.b16 %v799
        %v1952 = vunpack.c.h.b16 %v799
        %v1953 = vunpack.c.l.b16 %v800
        %v1954 = vunpack.c.h.b16 %v800
        %v1955 = vunpack.c.l.b16 %v801
        %v1956 = vunpack.c.h.b16 %v801
        %v1957 = vunpack.c.l.b16 %v802
        %v1958 = vunpack.c.h.b16 %v802
        %v1959 = vunpack.c.l.b16 %v803
        %v1960 = vunpack.c.h.b16 %v803
        %v1961 = vunpack.c.l.b16 %v804
        %v1962 = vunpack.c.h.b16 %v804
        %v1963 = vunpack.c.l.b16 %v805
        %v1964 = vunpack.c.h.b16 %v805
        %v1965 = vunpack.c.l.b16 %v806
        %v1966 = vunpack.c.h.b16 %v806
        %v1967 = vunpack.c.l.b16 %v807
        %v1968 = vunpack.c.h.b16 %v807
        %v1969 = vunpack.c.l.b16 %v808
        %v1970 = vunpack.c.h.b16 %v808
        %v1971 = vunpack.c.l.b16 %v809
        %v1972 = vunpack.c.h.b16 %v809
        %v1973 = vunpack.c.l.b16 %v810
        %v1974 = vunpack.c.h.b16 %v810
        %v1975 = vunpack.c.l.b16 %v811
        %v1976 = vunpack.c.h.b16 %v811
        %v1977 = vunpack.c.l.b16 %v812
        %v1978 = vunpack.c.h.b16 %v812
        %v1979 = vunpack.c.l.b16 %v813
        %v1980 = vunpack.c.h.b16 %v813
        %v1981 = vunpack.c.l.b16 %v814
        %v1982 = vunpack.c.h.b16 %v814
        %v1983 = vunpack.c.l.b16 %v815
        %v1984 = vunpack.c.h.b16 %v815
        %v1985 = vunpack.c.l.b16 %v816
        %v1986 = vunpack.c.h.b16 %v816
        %v1987 = vunpack.c.l.b16 %v817
        %v1988 = vunpack.c.h.b16 %v817
        %v1989 = vunpack.c.l.b16 %v818
        %v1990 = vunpack.c.h.b16 %v818
        %v1991 = vunpack.c.l.b16 %v819
        %v1992 = vunpack.c.h.b16 %v819
        %v1993 = vunpack.c.l.b16 %v820
        %v1994 = vunpack.c.h.b16 %v820
        %v1995 = vunpack.c.l.b16 %v821
        %v1996 = vunpack.c.h.b16 %v821
        %v1997 = vunpack.c.l.b16 %v822
        %v1998 = vunpack.c.h.b16 %v822
        %v1999 = vunpack.c.l.b16 %v823
        %v2000 = vunpack.c.h.b16 %v823
        %v2001 = vunpack.c.l.b16 %v824
        %v2002 = vunpack.c.h.b16 %v824
        %v2003 = vunpack.c.l.b16 %v825
        %v2004 = vunpack.c.h.b16 %v825
        %v2005 = vunpack.c.l.b16 %v826
        %v2006 = vunpack.c.h.b16 %v826
        %v2007 = vunpack.c.l.b16 %v827
        %v2008 = vunpack.c.h.b16 %v827
        %v2009 = vunpack.c.l.b16 %v828
        %v2010 = vunpack.c.h.b16 %v828
        %v2011 = vunpack.c.l.b16 %v829
        %v2012 = vunpack.c.h.b16 %v829
        %v2013 = vunpack.c.l.b16 %v830
        %v2014 = vunpack.c.h.b16 %v830
        %v2015 = vunpack.c.l.b16 %v831
        %v2016 = vunpack.c.h.b16 %v831
        %v2017 = vunpack.c.l.b16 %v832
        %v2018 = vunpack.c.h.b16 %v832
        %v2019 = vunpack.c.l.b16 %v833
        %v2020 = vunpack.c.h.b16 %v833
        %v2021 = vunpack.c.l.b16 %v834
        %v2022 = vunpack.c.h.b16 %v834
        %v2023 = vunpack.c.l.b16 %v835
        %v2024 = vunpack.c.h.b16 %v835
        %v2025 = vunpack.c.l.b16 %v836
        %v2026 = vunpack.c.h.b16 %v836
        %v2027 = vunpack.c.l.b16 %v837
        %v2028 = vunpack.c.h.b16 %v837
        %v2029 = vunpack.c.l.b16 %v838
        %v2030 = vunpack.c.h.b16 %v838
        %v2031 = vunpack.c.l.b16 %v839
        %v2032 = vunpack.c.h.b16 %v839
        %v2033 = vunpack.c.l.b16 %v840
        %v2034 = vunpack.c.h.b16 %v840
        %v2035 = vunpack.c.l.b16 %v841
        %v2036 = vunpack.c.h.b16 %v841
        %v2037 = vunpack.c.l.b16 %v842
        %v2038 = vunpack.c.h.b16 %v842
        %v2039 = vunpack.c.l.b16 %v843
        %v2040 = vunpack.c.h.b16 %v843
        %v2041 = vunpack.c.l.b16 %v844
        %v2042 = vunpack.c.h.b16 %v844
        %v2043 = vunpack.c.l.b16 %v845
        %v2044 = vunpack.c.h.b16 %v845
        %v2045 = vunpack.c.l.b16 %v846
        %v2046 = vunpack.c.h.b16 %v846
        %v2047 = vunpack.c.l.b16 %v847
        %v2048 = vunpack.c.h.b16 %v847
        %v2049 = vunpack.c.l.b16 %v848
        %v2050 = vunpack.c.h.b16 %v848
        %v2051 = vunpack.c.l.b16 %v849
        %v2052 = vunpack.c.h.b16 %v849
        %v2053 = vunpack.c.l.b16 %v850
        %v2054 = vunpack.c.h.b16 %v850
        %v2055 = vunpack.c.l.b16 %v851
        %v2056 = vunpack.c.h.b16 %v851
        %v2057 = vunpack.c.l.b16 %v852
        %v2058 = vunpack.c.h.b16 %v852
        %v2059 = vunpack.c.l.b16 %v853
        %v2060 = vunpack.c.h.b16 %v853
        %v2061 = vunpack.c.l.b16 %v854
        %v2062 = vunpack.c.h.b16 %v854
        %v2063 = vunpack.c.l.b16 %v855
        %v2064 = vunpack.c.h.b16 %v855
        %v2065 = vunpack.c.l.b16 %v856
        %v2066 = vunpack.c.h.b16 %v856
        %v2067 = vunpack.c.l.b16 %v857
        %v2068 = vunpack.c.h.b16 %v857
        %v2069 = vunpack.c.l.b16 %v858
        %v2070 = vunpack.c.h.b16 %v858
        %v2071 = vunpack.c.l.b16 %v859
        %v2072 = vunpack.c.h.b16 %v859
        %v2073 = vunpack.c.l.b16 %v860
        %v2074 = vunpack.c.h.b16 %v860
        %v2075 = vunpack.c.l.b16 %v861
        %v2076 = vunpack.c.h.b16 %v861
        %v2077 = vunpack.c.l.b16 %v862
        %v2078 = vunpack.c.h.b16 %v862
        %v2079 = vunpack.c.l.b16 %v863
        %v2080 = vunpack.c.h.b16 %v863
        %v2081 = vunpack.c.l.b16 %v864
        %v2082 = vunpack.c.h.b16 %v864
        %v2083 = vunpack.c.l.b16 %v865
        %v2084 = vunpack.c.h.b16 %v865
        %v2085 = vunpack.c.l.b16 %v866
        %v2086 = vunpack.c.h.b16 %v866
        %v2087 = vunpack.c.l.b16 %v867
        %v2088 = vunpack.c.h.b16 %v867
        %v2089 = vunpack.c.l.b16 %v868
        %v2090 = vunpack.c.h.b16 %v868
        %v2091 = vunpack.c.l.b16 %v869
        %v2092 = vunpack.c.h.b16 %v869
        %v2093 = vunpack.c.l.b16 %v870
        %v2094 = vunpack.c.h.b16 %v870
        %v2095 = vunpack.c.l.b16 %v871
        %v2096 = vunpack.c.h.b16 %v871
        %v2097 = vunpack.c.l.b16 %v872
        %v2098 = vunpack.c.h.b16 %v872
        %v2099 = vunpack.c.l.b16 %v873
        %v2100 = vunpack.c.h.b16 %v873
        %v2101 = vunpack.c.l.b16 %v874
        %v2102 = vunpack.c.h.b16 %v874
        %v2103 = vunpack.c.l.b16 %v875
        %v2104 = vunpack.c.h.b16 %v875
        %v2105 = vunpack.c.l.b16 %v876
        %v2106 = vunpack.c.h.b16 %v876
        %v2107 = vunpack.c.l.b16 %v877
        %v2108 = vunpack.c.h.b16 %v877
        %v2109 = vunpack.c.l.b16 %v878
        %v2110 = vunpack.c.h.b16 %v878
        %v2111 = vunpack.c.l.b16 %v879
        %v2112 = vunpack.c.h.b16 %v879
        %v2113 = vunpack.c.l.b16 %v880
        %v2114 = vunpack.c.h.b16 %v880
        %v2115 = vunpack.c.l.b16 %v881
        %v2116 = vunpack.c.h.b16 %v881
        %v2117 = vunpack.c.l.b16 %v882
        %v2118 = vunpack.c.h.b16 %v882
        %v2119 = vunpack.c.l.b16 %v883
        %v2120 = vunpack.c.h.b16 %v883
        %v2121 = vunpack.c.l.b16 %v884
        %v2122 = vunpack.c.h.b16 %v884
        %v2123 = vunpack.c.l.b16 %v885
        %v2124 = vunpack.c.h.b16 %v885
        %v2125 = vunpack.c.l.b16 %v886
        %v2126 = vunpack.c.h.b16 %v886
        %v2127 = vunpack.c.l.b16 %v887
        %v2128 = vunpack.c.h.b16 %v887
        %v2129 = vunpack.c.l.b16 %v888
        %v2130 = vunpack.c.h.b16 %v888
        %v2131 = vunpack.c.l.b16 %v889
        %v2132 = vunpack.c.h.b16 %v889
        %v2133 = vunpack.c.l.b16 %v890
        %v2134 = vunpack.c.h.b16 %v890
        %v2135 = vunpack.c.l.b16 %v891
        %v2136 = vunpack.c.h.b16 %v891
        %v2137 = vunpack.c.l.b16 %v892
        %v2138 = vunpack.c.h.b16 %v892
        %v2139 = vunpack.c.l.b16 %v893
        %v2140 = vunpack.c.h.b16 %v893
        %v2141 = vunpack.c.l.b16 %v894
        %v2142 = vunpack.c.h.b16 %v894
        %v2143 = vunpack.c.l.b16 %v895
        %v2144 = vunpack.c.h.b16 %v895
        %v2145 = vunpack.c.l.b16 %v896
        %v2146 = vunpack.c.h.b16 %v896
        %v2147 = vunpack.c.l.b16 %v897
        %v2148 = vunpack.c.h.b16 %v897
        %v2149 = vunpack.c.l.b16 %v898
        %v2150 = vunpack.c.h.b16 %v898
        %v2151 = vunpack.c.l.b16 %v899
        %v2152 = vunpack.c.h.b16 %v899
        %v2153 = vunpack.c.l.b16 %v900
        %v2154 = vunpack.c.h.b16 %v900
        %v2155 = vunpack.c.l.b16 %v901
        %v2156 = vunpack.c.h.b16 %v901
        %v2157 = vunpack.c.l.b16 %v902
        %v2158 = vunpack.c.h.b16 %v902
        %v2159 = vunpack.c.l.b16 %v903
        %v2160 = vunpack.c.h.b16 %v903
        %v2161 = vunpack.c.l.b16 %v904
        %v2162 = vunpack.c.h.b16 %v904
        %v2163 = vunpack.c.l.b16 %v905
        %v2164 = vunpack.c.h.b16 %v905
        %v2165 = vunpack.c.l.b16 %v906
        %v2166 = vunpack.c.h.b16 %v906
        %v2167 = vunpack.c.l.b16 %v907
        %v2168 = vunpack.c.h.b16 %v907
        %v2169 = vunpack.c.l.b16 %v908
        %v2170 = vunpack.c.h.b16 %v908
        %v2171 = vunpack.c.l.b16 %v909
        %v2172 = vunpack.c.h.b16 %v909
        %v2173 = vunpack.c.l.b16 %v910
        %v2174 = vunpack.c.h.b16 %v910
        %v2175 = vunpack.c.l.b16 %v911
        %v2176 = vunpack.c.h.b16 %v911
        %v2177 = vunpack.c.l.b16 %v912
        %v2178 = vunpack.c.h.b16 %v912
        %v2179 = vunpack.c.l.b16 %v913
        %v2180 = vunpack.c.h.b16 %v913
        %v2181 = vunpack.c.l.b16 %v914
        %v2182 = vunpack.c.h.b16 %v914
        %v2183 = vunpack.c.l.b16 %v915
        %v2184 = vunpack.c.h.b16 %v915
        %v2185 = vunpack.c.l.b16 %v916
        %v2186 = vunpack.c.h.b16 %v916
        %v2187 = vunpack.c.l.b16 %v917
        %v2188 = vunpack.c.h.b16 %v917
        %v2189 = vunpack.c.l.b16 %v918
        %v2190 = vunpack.c.h.b16 %v918
        %v2191 = vunpack.c.l.b16 %v919
        %v2192 = vunpack.c.h.b16 %v919
        %v2193 = vunpack.c.l.b16 %v920
        %v2194 = vunpack.c.h.b16 %v920
        %v2195 = vunpack.c.l.b16 %v921
        %v2196 = vunpack.c.h.b16 %v921
        %v2197 = vunpack.c.l.b16 %v922
        %v2198 = vunpack.c.h.b16 %v922
        %v2199 = vunpack.c.l.b16 %v923
        %v2200 = vunpack.c.h.b16 %v923
        %v2201 = vunpack.c.l.b16 %v924
        %v2202 = vunpack.c.h.b16 %v924
        %v2203 = vunpack.c.l.b16 %v925
        %v2204 = vunpack.c.h.b16 %v925
        %v2205 = vunpack.c.l.b16 %v926
        %v2206 = vunpack.c.h.b16 %v926
        %v2207 = vunpack.c.l.b16 %v927
        %v2208 = vunpack.c.h.b16 %v927
        %v2209 = vunpack.c.l.b16 %v928
        %v2210 = vunpack.c.h.b16 %v928
        %v2211 = vunpack.c.l.b16 %v929
        %v2212 = vunpack.c.h.b16 %v929
        %v2213 = vunpack.c.l.b16 %v930
        %v2214 = vunpack.c.h.b16 %v930
        %v2215 = vunpack.c.l.b16 %v931
        %v2216 = vunpack.c.h.b16 %v931
        %v2217 = vunpack.c.l.b16 %v932
        %v2218 = vunpack.c.h.b16 %v932
        %v2219 = vunpack.c.l.b16 %v933
        %v2220 = vunpack.c.h.b16 %v933
        %v2221 = vunpack.c.l.b16 %v934
        %v2222 = vunpack.c.h.b16 %v934
        %v2223 = vunpack.c.l.b16 %v935
        %v2224 = vunpack.c.h.b16 %v935
        %v2225 = vunpack.c.l.b16 %v936
        %v2226 = vunpack.c.h.b16 %v936
        %v2227 = vunpack.c.l.b16 %v937
        %v2228 = vunpack.c.h.b16 %v937
        %v2229 = vunpack.c.l.b16 %v938
        %v2230 = vunpack.c.h.b16 %v938
        %v2231 = vunpack.c.l.b16 %v939
        %v2232 = vunpack.c.h.b16 %v939
        %v2233 = vunpack.c.l.b16 %v940
        %v2234 = vunpack.c.h.b16 %v940
        %v2235 = vunpack.c.l.b16 %v941
        %v2236 = vunpack.c.h.b16 %v941
        %v2237 = vunpack.c.l.b16 %v942
        %v2238 = vunpack.c.h.b16 %v942
        %v2239 = vunpack.c.l.b16 %v943
        %v2240 = vunpack.c.h.b16 %v943
        %v2241 = vunpack.c.l.b16 %v944
        %v2242 = vunpack.c.h.b16 %v944
        %v2243 = vunpack.c.l.b16 %v945
        %v2244 = vunpack.c.h.b16 %v945
        %v2245 = vunpack.c.l.b16 %v946
        %v2246 = vunpack.c.h.b16 %v946
        %v2247 = vunpack.c.l.b16 %v947
        %v2248 = vunpack.c.h.b16 %v947
        %v2249 = vunpack.c.l.b16 %v948
        %v2250 = vunpack.c.h.b16 %v948
        %v2251 = vunpack.c.l.b16 %v949
        %v2252 = vunpack.c.h.b16 %v949
        %v2253 = vunpack.c.l.b16 %v950
        %v2254 = vunpack.c.h.b16 %v950
        %v2255 = vunpack.c.l.b16 %v951
        %v2256 = vunpack.c.h.b16 %v951
        %v2257 = vunpack.c.l.b16 %v952
        %v2258 = vunpack.c.h.b16 %v952
        %v2259 = vunpack.c.l.b16 %v953
        %v2260 = vunpack.c.h.b16 %v953
        %v2261 = vunpack.c.l.b16 %v954
        %v2262 = vunpack.c.h.b16 %v954
        %v2263 = vunpack.c.l.b16 %v955
        %v2264 = vunpack.c.h.b16 %v955
        %v2265 = vunpack.c.l.b16 %v956
        %v2266 = vunpack.c.h.b16 %v956
        %v2267 = vunpack.c.l.b16 %v957
        %v2268 = vunpack.c.h.b16 %v957
        %v2269 = vunpack.c.l.b16 %v958
        %v2270 = vunpack.c.h.b16 %v958
        %v2271 = vunpack.c.l.b16 %v959
        %v2272 = vunpack.c.h.b16 %v959
        %v2273 = vunpack.c.l.b16 %v960
        %v2274 = vunpack.c.h.b16 %v960
        %v2275 = vunpack.c.l.b16 %v961
        %v2276 = vunpack.c.h.b16 %v961
        %v2277 = vunpack.c.l.b16 %v962
        %v2278 = vunpack.c.h.b16 %v962
        %v2279 = vunpack.c.l.b16 %v963
        %v2280 = vunpack.c.h.b16 %v963
        %v2281 = vunpack.c.l.b16 %v964
        %v2282 = vunpack.c.h.b16 %v964
        %v2283 = vunpack.c.l.b16 %v965
        %v2284 = vunpack.c.h.b16 %v965
        %v2285 = vunpack.c.l.b16 %v966
        %v2286 = vunpack.c.h.b16 %v966
        %v2287 = vunpack.c.l.b16 %v967
        %v2288 = vunpack.c.h.b16 %v967
        %v2289 = vunpack.c.l.b16 %v968
        %v2290 = vunpack.c.h.b16 %v968
        %v2291 = vunpack.c.l.b16 %v969
        %v2292 = vunpack.c.h.b16 %v969
        %v2293 = vunpack.c.l.b16 %v970
        %v2294 = vunpack.c.h.b16 %v970
        %v2295 = vunpack.c.l.b16 %v971
        %v2296 = vunpack.c.h.b16 %v971
        %v2297 = vunpack.c.l.b16 %v972
        %v2298 = vunpack.c.h.b16 %v972
        %v2299 = vunpack.c.l.b16 %v973
        %v2300 = vunpack.c.h.b16 %v973
        %v2301 = vunpack.c.l.b16 %v974
        %v2302 = vunpack.c.h.b16 %v974
        %v2303 = vunpack.c.l.b16 %v975
        %v2304 = vunpack.c.h.b16 %v975
        %v2305 = vunpack.c.l.b16 %v976
        %v2306 = vunpack.c.h.b16 %v976
        %v2307 = vunpack.c.l.b16 %v977
        %v2308 = vunpack.c.h.b16 %v977
        %v2309 = vunpack.c.l.b16 %v978
        %v2310 = vunpack.c.h.b16 %v978
        %v2311 = vunpack.c.l.b16 %v979
        %v2312 = vunpack.c.h.b16 %v979
        %v2313 = vunpack.c.l.b16 %v980
        %v2314 = vunpack.c.h.b16 %v980
        %v2315 = vunpack.c.l.b16 %v981
        %v2316 = vunpack.c.h.b16 %v981
        %v2317 = vunpack.c.l.b16 %v982
        %v2318 = vunpack.c.h.b16 %v982
        %v2319 = vunpack.c.l.b16 %v983
        %v2320 = vunpack.c.h.b16 %v983
        %v2321 = vunpack.c.l.b16 %v984
        %v2322 = vunpack.c.h.b16 %v984
        %v2323 = vunpack.c.l.b16 %v985
        %v2324 = vunpack.c.h.b16 %v985
        %v2325 = vunpack.c.l.b16 %v986
        %v2326 = vunpack.c.h.b16 %v986
        %v2327 = vunpack.c.l.b16 %v987
        %v2328 = vunpack.c.h.b16 %v987
        %v2329 = vunpack.c.l.b16 %v988
        %v2330 = vunpack.c.h.b16 %v988
        %v2331 = vunpack.c.l.b16 %v989
        %v2332 = vunpack.c.h.b16 %v989
        %v2333 = vunpack.c.l.b16 %v990
        %v2334 = vunpack.c.h.b16 %v990
        %v2335 = vunpack.c.l.b16 %v991
        %v2336 = vunpack.c.h.b16 %v991
        %v2337 = vunpack.c.l.b16 %v992
        %v2338 = vunpack.c.h.b16 %v992
        %v2339 = vunpack.c.l.b16 %v993
        %v2340 = vunpack.c.h.b16 %v993
        %v2341 = vunpack.c.l.b16 %v994
        %v2342 = vunpack.c.h.b16 %v994
        %v2343 = vunpack.c.l.b16 %v995
        %v2344 = vunpack.c.h.b16 %v995
        %v2345 = vunpack.c.l.b16 %v996
        %v2346 = vunpack.c.h.b16 %v996
        %v2347 = vunpack.c.l.b16 %v997
        %v2348 = vunpack.c.h.b16 %v997
        %v2349 = vunpack.c.l.b16 %v998
        %v2350 = vunpack.c.h.b16 %v998
        %v2351 = vunpack.c.l.b16 %v999
        %v2352 = vunpack.c.h.b16 %v999
        %v2353 = vunpack.c.l.b16 %v1000
        %v2354 = vunpack.c.h.b16 %v1000
        %v2355 = vunpack.c.l.b16 %v1001
        %v2356 = vunpack.c.h.b16 %v1001
        %v2357 = vunpack.c.l.b16 %v1002
        %v2358 = vunpack.c.h.b16 %v1002
        %v2359 = vunpack.c.l.b16 %v1003
        %v2360 = vunpack.c.h.b16 %v1003
        %v2361 = vunpack.c.l.b16 %v1004
        %v2362 = vunpack.c.h.b16 %v1004
        %v2363 = vunpack.c.l.b16 %v1005
        %v2364 = vunpack.c.h.b16 %v1005
        %v2365 = vunpack.c.l.b16 %v1006
        %v2366 = vunpack.c.h.b16 %v1006
        %v2367 = vunpack.c.l.b16 %v1007
        %v2368 = vunpack.c.h.b16 %v1007
        %v2369 = vunpack.c.l.b16 %v1008
        %v2370 = vunpack.c.h.b16 %v1008
        %v2371 = vunpack.c.l.b16 %v1009
        %v2372 = vunpack.c.h.b16 %v1009
        %v2373 = vunpack.c.l.b16 %v1010
        %v2374 = vunpack.c.h.b16 %v1010
        %v2375 = vunpack.c.l.b16 %v1011
        %v2376 = vunpack.c.h.b16 %v1011
        %v2377 = vunpack.c.l.b16 %v1012
        %v2378 = vunpack.c.h.b16 %v1012
        %v2379 = vunpack.c.l.b16 %v1013
        %v2380 = vunpack.c.h.b16 %v1013
        %v2381 = vunpack.c.l.b16 %v1014
        %v2382 = vunpack.c.h.b16 %v1014
        %v2383 = vunpack.c.l.b16 %v1015
        %v2384 = vunpack.c.h.b16 %v1015
        %v2385 = vunpack.c.l.b16 %v1016
        %v2386 = vunpack.c.h.b16 %v1016
        %v2387 = vunpack.c.l.b16 %v1017
        %v2388 = vunpack.c.h.b16 %v1017
        %v2389 = vunpack.c.l.b16 %v1018
        %v2390 = vunpack.c.h.b16 %v1018
        %v2391 = vunpack.c.l.b16 %v1019
        %v2392 = vunpack.c.h.b16 %v1019
        %v2393 = vunpack.c.l.b16 %v1020
        %v2394 = vunpack.c.h.b16 %v1020
        %v2395 = vunpack.c.l.b16 %v1021
        %v2396 = vunpack.c.h.b16 %v1021
        %v2397 = vunpack.c.l.b16 %v1022
        %v2398 = vunpack.c.h.b16 %v1022
        %v2399 = vunpack.c.l.b16 %v1023
        %v2400 = vunpack.c.h.b16 %v1023
        %v2401 = vunpack.c.l.b16 %v1024
        %v2402 = vunpack.c.h.b16 %v1024
        %v2403 = vunpack.c.l.b16 %v1025
        %v2404 = vunpack.c.h.b16 %v1025
        %v2405 = vunpack.c.l.b16 %v1026
        %v2406 = vunpack.c.h.b16 %v1026
        %v2407 = vunpack.c.l.b16 %v1027
        %v2408 = vunpack.c.h.b16 %v1027
        %v2409 = vunpack.c.l.b16 %v1028
        %v2410 = vunpack.c.h.b16 %v1028
        %v2411 = vunpack.c.l.b16 %v1029
        %v2412 = vunpack.c.h.b16 %v1029
        %v2413 = vunpack.c.l.b16 %v1030
        %v2414 = vunpack.c.h.b16 %v1030
        %v2415 = vunpack.c.l.b16 %v1031
        %v2416 = vunpack.c.h.b16 %v1031
        %v2417 = vunpack.c.l.b16 %v1032
        %v2418 = vunpack.c.h.b16 %v1032
        %v2419 = vunpack.c.l.b16 %v1033
        %v2420 = vunpack.c.h.b16 %v1033
        %v2421 = vunpack.c.l.b16 %v1034
        %v2422 = vunpack.c.h.b16 %v1034
        %v2423 = vunpack.c.l.b16 %v1035
        %v2424 = vunpack.c.h.b16 %v1035
        %v2425 = vunpack.c.l.b16 %v1036
        %v2426 = vunpack.c.h.b16 %v1036
        %v2427 = vunpack.c.l.b16 %v1037
        %v2428 = vunpack.c.h.b16 %v1037
        %v2429 = vunpack.c.l.b16 %v1038
        %v2430 = vunpack.c.h.b16 %v1038
        %v2431 = vunpack.c.l.b16 %v1039
        %v2432 = vunpack.c.h.b16 %v1039
        %v2433 = vunpack.c.l.b16 %v1040
        %v2434 = vunpack.c.h.b16 %v1040
        %v2435 = vunpack.c.l.b16 %v1041
        %v2436 = vunpack.c.h.b16 %v1041
        %v2437 = vunpack.c.l.b16 %v1042
        %v2438 = vunpack.c.h.b16 %v1042
        %v2439 = vunpack.c.l.b16 %v1043
        %v2440 = vunpack.c.h.b16 %v1043
        %v2441 = vunpack.c.l.b16 %v1044
        %v2442 = vunpack.c.h.b16 %v1044
        %v2443 = vunpack.c.l.b16 %v1045
        %v2444 = vunpack.c.h.b16 %v1045
        %v2445 = vunpack.c.l.b16 %v1046
        %v2446 = vunpack.c.h.b16 %v1046
        %v2447 = vunpack.c.l.b16 %v1047
        %v2448 = vunpack.c.h.b16 %v1047
        %v2449 = vunpack.c.l.b16 %v1048
        %v2450 = vunpack.c.h.b16 %v1048
        %v2451 = vunpack.c.l.b16 %v1049
        %v2452 = vunpack.c.h.b16 %v1049
        %v2453 = vunpack.c.l.b16 %v1050
        %v2454 = vunpack.c.h.b16 %v1050
        %v2455 = vunpack.c.l.b16 %v1051
        %v2456 = vunpack.c.h.b16 %v1051
        %v2457 = vunpack.c.l.b16 %v1052
        %v2458 = vunpack.c.h.b16 %v1052
        %v2459 = vunpack.c.l.b16 %v1053
        %v2460 = vunpack.c.h.b16 %v1053
        %v2461 = vunpack.c.l.b16 %v1054
        %v2462 = vunpack.c.h.b16 %v1054
        %v2463 = vunpack.c.l.b16 %v1055
        %v2464 = vunpack.c.h.b16 %v1055
        %v2465 = vunpack.c.l.b16 %v1056
        %v2466 = vunpack.c.h.b16 %v1056
        %v2467 = vunpack.c.l.b16 %v1057
        %v2468 = vunpack.c.h.b16 %v1057
        %v2469 = vunpack.c.l.b16 %v1058
        %v2470 = vunpack.c.h.b16 %v1058
        %v2471 = vunpack.c.l.b16 %v1059
        %v2472 = vunpack.c.h.b16 %v1059
        %v2473 = vunpack.c.l.b16 %v1060
        %v2474 = vunpack.c.h.b16 %v1060
        %v2475 = vunpack.c.l.b16 %v1061
        %v2476 = vunpack.c.h.b16 %v1061
        %v2477 = vunpack.c.l.b16 %v1062
        %v2478 = vunpack.c.h.b16 %v1062
        %v2479 = vunpack.c.l.b16 %v1063
        %v2480 = vunpack.c.h.b16 %v1063
        %v2481 = vunpack.c.l.b16 %v1064
        %v2482 = vunpack.c.h.b16 %v1064
        %v2483 = vunpack.c.l.b16 %v1065
        %v2484 = vunpack.c.h.b16 %v1065
        %v2485 = vunpack.c.l.b16 %v1066
        %v2486 = vunpack.c.h.b16 %v1066
        %v2487 = vunpack.c.l.b16 %v1067
        %v2488 = vunpack.c.h.b16 %v1067
        %v2489 = vunpack.c.l.b16 %v1068
        %v2490 = vunpack.c.h.b16 %v1068
        %v2491 = vunpack.c.l.b16 %v1069
        %v2492 = vunpack.c.h.b16 %v1069
        %v2493 = vunpack.c.l.b16 %v1070
        %v2494 = vunpack.c.h.b16 %v1070
        %v2495 = vunpack.c.l.b16 %v1071
        %v2496 = vunpack.c.h.b16 %v1071
        %v2497 = vunpack.c.l.b16 %v1072
        %v2498 = vunpack.c.h.b16 %v1072
        %v2499 = vunpack.c.l.b16 %v1073
        %v2500 = vunpack.c.h.b16 %v1073
        %v2501 = vunpack.c.l.b16 %v1074
        %v2502 = vunpack.c.h.b16 %v1074
        %v2503 = vunpack.c.l.b16 %v1075
        %v2504 = vunpack.c.h.b16 %v1075
        %v2505 = vunpack.c.l.b16 %v1076
        %v2506 = vunpack.c.h.b16 %v1076
        %v2507 = vunpack.c.l.b16 %v1077
        %v2508 = vunpack.c.h.b16 %v1077
        %v2509 = vunpack.c.l.b16 %v1078
        %v2510 = vunpack.c.h.b16 %v1078
        %v2511 = vunpack.c.l.b16 %v1079
        %v2512 = vunpack.c.h.b16 %v1079
        %v2513 = vunpack.c.l.b16 %v1080
        %v2514 = vunpack.c.h.b16 %v1080
        %v2515 = vunpack.c.l.b16 %v1081
        %v2516 = vunpack.c.h.b16 %v1081
        %v2517 = vunpack.c.l.b16 %v1082
        %v2518 = vunpack.c.h.b16 %v1082
        %v2519 = vunpack.c.l.b16 %v1083
        %v2520 = vunpack.c.h.b16 %v1083
        %v2521 = vunpack.c.l.b16 %v1084
        %v2522 = vunpack.c.h.b16 %v1084
        %v2523 = vunpack.c.l.b16 %v1085
        %v2524 = vunpack.c.h.b16 %v1085
        %v2525 = vunpack.c.l.b16 %v1086
        %v2526 = vunpack.c.h.b16 %v1086
        %v2527 = vunpack.c.l.b16 %v1087
        %v2528 = vunpack.c.h.b16 %v1087
        %v2529 = vunpack.c.l.b16 %v1088
        %v2530 = vunpack.c.h.b16 %v1088
        %v2531 = vunpack.c.l.b16 %v1089
        %v2532 = vunpack.c.h.b16 %v1089
        %v2533 = vunpack.c.l.b16 %v1090
        %v2534 = vunpack.c.h.b16 %v1090
        %v2535 = vunpack.c.l.b16 %v1091
        %v2536 = vunpack.c.h.b16 %v1091
        %v2537 = vunpack.c.l.b16 %v1092
        %v2538 = vunpack.c.h.b16 %v1092
        %v2539 = vunpack.c.l.b16 %v1093
        %v2540 = vunpack.c.h.b16 %v1093
        %v2541 = vunpack.c.l.b16 %v1094
        %v2542 = vunpack.c.h.b16 %v1094
        %v2543 = vunpack.c.l.b16 %v1095
        %v2544 = vunpack.c.h.b16 %v1095
        %v2545 = vunpack.c.l.b16 %v1096
        %v2546 = vunpack.c.h.b16 %v1096
        %v2547 = vunpack.c.l.b16 %v1097
        %v2548 = vunpack.c.h.b16 %v1097
        %v2549 = vunpack.c.l.b16 %v1098
        %v2550 = vunpack.c.h.b16 %v1098
        %v2551 = vunpack.c.l.b16 %v1099
        %v2552 = vunpack.c.h.b16 %v1099
        %v2553 = vunpack.c.l.b16 %v1100
        %v2554 = vunpack.c.h.b16 %v1100
        %v2555 = vunpack.c.l.b16 %v1101
        %v2556 = vunpack.c.h.b16 %v1101
        %v2557 = vunpack.c.l.b16 %v1102
        %v2558 = vunpack.c.h.b16 %v1102
        %v2559 = vunpack.c.l.b16 %v1103
        %v2560 = vunpack.c.h.b16 %v1103
        %v2561 = vunpack.c.l.b16 %v1104
        %v2562 = vunpack.c.h.b16 %v1104
        %v2563 = vunpack.c.l.b16 %v1105
        %v2564 = vunpack.c.h.b16 %v1105
        %v2565 = vunpack.c.l.b16 %v1106
        %v2566 = vunpack.c.h.b16 %v1106
        %v2567 = vunpack.c.l.b16 %v1107
        %v2568 = vunpack.c.h.b16 %v1107
        %v2569 = vunpack.c.l.b16 %v1108
        %v2570 = vunpack.c.h.b16 %v1108
        %v2571 = vunpack.c.l.b16 %v1109
        %v2572 = vunpack.c.h.b16 %v1109
        %v2573 = vunpack.c.l.b16 %v1110
        %v2574 = vunpack.c.h.b16 %v1110
        %v2575 = vunpack.c.l.b16 %v1111
        %v2576 = vunpack.c.h.b16 %v1111
        %v2577 = vpack.c.b16 %v1685, %v1681
        %v2578 = vpack.c.b16 %v1686, %v1682
        %v2579 = vpack.c.b16 %v1687, %v1683
        %v2580 = vpack.c.b16 %v1688, %v1684
        %v2581 = vpack.c.b16 %v1693, %v1689
        %v2582 = vpack.c.b16 %v1694, %v1690
        %v2583 = vpack.c.b16 %v1695, %v1691
        %v2584 = vpack.c.b16 %v1696, %v1692
        %v2585 = vpack.c.b16 %v1701, %v1697
        %v2586 = vpack.c.b16 %v1702, %v1698
        %v2587 = vpack.c.b16 %v1703, %v1699
        %v2588 = vpack.c.b16 %v1704, %v1700
        %v2589 = vpack.c.b16 %v1709, %v1705
        %v2590 = vpack.c.b16 %v1710, %v1706
        %v2591 = vpack.c.b16 %v1711, %v1707
        %v2592 = vpack.c.b16 %v1712, %v1708
        %v2593 = vpack.c.b16 %v1717, %v1713
        %v2594 = vpack.c.b16 %v1718, %v1714
        %v2595 = vpack.c.b16 %v1719, %v1715
        %v2596 = vpack.c.b16 %v1720, %v1716
        %v2597 = vpack.c.b16 %v1725, %v1721
        %v2598 = vpack.c.b16 %v1726, %v1722
        %v2599 = vpack.c.b16 %v1727, %v1723
        %v2600 = vpack.c.b16 %v1728, %v1724
        %v2601 = vpack.c.b16 %v1733, %v1729
        %v2602 = vpack.c.b16 %v1734, %v1730
        %v2603 = vpack.c.b16 %v1735, %v1731
        %v2604 = vpack.c.b16 %v1736, %v1732
        %v2605 = vpack.c.b16 %v1741, %v1737
        %v2606 = vpack.c.b16 %v1742, %v1738
        %v2607 = vpack.c.b16 %v1743, %v1739
        %v2608 = vpack.c.b16 %v1744, %v1740
        %v2609 = vpack.c.b16 %v1749, %v1745
        %v2610 = vpack.c.b16 %v1750, %v1746
        %v2611 = vpack.c.b16 %v1751, %v1747
        %v2612 = vpack.c.b16 %v1752, %v1748
        %v2613 = vpack.c.b16 %v1757, %v1753
        %v2614 = vpack.c.b16 %v1758, %v1754
        %v2615 = vpack.c.b16 %v1759, %v1755
        %v2616 = vpack.c.b16 %v1760, %v1756
        %v2617 = vpack.c.b16 %v1765, %v1761
        %v2618 = vpack.c.b16 %v1766, %v1762
        %v2619 = vpack.c.b16 %v1767, %v1763
        %v2620 = vpack.c.b16 %v1768, %v1764
        %v2621 = vpack.c.b16 %v1773, %v1769
        %v2622 = vpack.c.b16 %v1774, %v1770
        %v2623 = vpack.c.b16 %v1775, %v1771
        %v2624 = vpack.c.b16 %v1776, %v1772
        %v2625 = vpack.c.b16 %v1781, %v1777
        %v2626 = vpack.c.b16 %v1782, %v1778
        %v2627 = vpack.c.b16 %v1783, %v1779
        %v2628 = vpack.c.b16 %v1784, %v1780
        %v2629 = vpack.c.b16 %v1789, %v1785
        %v2630 = vpack.c.b16 %v1790, %v1786
        %v2631 = vpack.c.b16 %v1791, %v1787
        %v2632 = vpack.c.b16 %v1792, %v1788
        %v2633 = vpack.c.b16 %v1797, %v1793
        %v2634 = vpack.c.b16 %v1798, %v1794
        %v2635 = vpack.c.b16 %v1799, %v1795
        %v2636 = vpack.c.b16 %v1800, %v1796
        %v2637 = vpack.c.b16 %v1805, %v1801
        %v2638 = vpack.c.b16 %v1806, %v1802
        %v2639 = vpack.c.b16 %v1807, %v1803
        %v2640 = vpack.c.b16 %v1808, %v1804
        %v2641 = vpack.c.b16 %v1813, %v1809
        %v2642 = vpack.c.b16 %v1814, %v1810
        %v2643 = vpack.c.b16 %v1815, %v1811
        %v2644 = vpack.c.b16 %v1816, %v1812
        %v2645 = vpack.c.b16 %v1821, %v1817
        %v2646 = vpack.c.b16 %v1822, %v1818
        %v2647 = vpack.c.b16 %v1823, %v1819
        %v2648 = vpack.c.b16 %v1824, %v1820
        %v2649 = vpack.c.b16 %v1829, %v1825
        %v2650 = vpack.c.b16 %v1830, %v1826
        %v2651 = vpack.c.b16 %v1831, %v1827
        %v2652 = vpack.c.b16 %v1832, %v1828
        %v2653 = vpack.c.b16 %v1837, %v1833
        %v2654 = vpack.c.b16 %v1838, %v1834
        %v2655 = vpack.c.b16 %v1839, %v1835
        %v2656 = vpack.c.b16 %v1840, %v1836
        %v2657 = vpack.c.b16 %v1845, %v1841
        %v2658 = vpack.c.b16 %v1846, %v1842
        %v2659 = vpack.c.b16 %v1847, %v1843
        %v2660 = vpack.c.b16 %v1848, %v1844
        %v2661 = vpack.c.b16 %v1853, %v1849
        %v2662 = vpack.c.b16 %v1854, %v1850
        %v2663 = vpack.c.b16 %v1855, %v1851
        %v2664 = vpack.c.b16 %v1856, %v1852
        %v2665 = vpack.c.b16 %v1861, %v1857
        %v2666 = vpack.c.b16 %v1862, %v1858
        %v2667 = vpack.c.b16 %v1863, %v1859
        %v2668 = vpack.c.b16 %v1864, %v1860
        %v2669 = vpack.c.b16 %v1869, %v1865
        %v2670 = vpack.c.b16 %v1870, %v1866
        %v2671 = vpack.c.b16 %v1871, %v1867
        %v2672 = vpack.c.b16 %v1872, %v1868
        %v2673 = vpack.c.b16 %v1877, %v1873
        %v2674 = vpack.c.b16 %v1878, %v1874
        %v2675 = vpack.c.b16 %v1879, %v1875
        %v2676 = vpack.c.b16 %v1880, %v1876
        %v2677 = vpack.c.b16 %v1885, %v1881
        %v2678 = vpack.c.b16 %v1886, %v1882
        %v2679 = vpack.c.b16 %v1887, %v1883
        %v2680 = vpack.c.b16 %v1888, %v1884
        %v2681 = vpack.c.b16 %v1893, %v1889
        %v2682 = vpack.c.b16 %v1894, %v1890
        %v2683 = vpack.c.b16 %v1895, %v1891
        %v2684 = vpack.c.b16 %v1896, %v1892
        %v2685 = vpack.c.b16 %v1901, %v1897
        %v2686 = vpack.c.b16 %v1902, %v1898
        %v2687 = vpack.c.b16 %v1903, %v1899
        %v2688 = vpack.c.b16 %v1904, %v1900
        %v2689 = vpack.c.b16 %v1909, %v1905
        %v2690 = vpack.c.b16 %v1910, %v1906
        %v2691 = vpack.c.b16 %v1911, %v1907
        %v2692 = vpack.c.b16 %v1912, %v1908
        %v2693 = vpack.c.b16 %v1917, %v1913
        %v2694 = vpack.c.b16 %v1918, %v1914
        %v2695 = vpack.c.b16 %v1919, %v1915
        %v2696 = vpack.c.b16 %v1920, %v1916
        %v2697 = vpack.c.b16 %v1925, %v1921
        %v2698 = vpack.c.b16 %v1926, %v1922
        %v2699 = vpack.c.b16 %v1927, %v1923
        %v2700 = vpack.c.b16 %v1928, %v1924
        %v2701 = vpack.c.b16 %v1933, %v1929
        %v2702 = vpack.c.b16 %v1934, %v1930
        %v2703 = vpack.c.b16 %v1935, %v1931
        %v2704 = vpack.c.b16 %v1936, %v1932
        %v2705 = vpack.c.b16 %v1941, %v1937
        %v2706 = vpack.c.b16 %v1942, %v1938
        %v2707 = vpack.c.b16 %v1943, %v1939
        %v2708 = vpack.c.b16 %v1944, %v1940
        %v2709 = vpack.c.b16 %v1949, %v1945
        %v2710 = vpack.c.b16 %v1950, %v1946
        %v2711 = vpack.c.b16 %v1951, %v1947
        %v2712 = vpack.c.b16 %v1952, %v1948
        %v2713 = vpack.c.b16 %v1957, %v1953
        %v2714 = vpack.c.b16 %v1958, %v1954
        %v2715 = vpack.c.b16 %v1959, %v1955
        %v2716 = vpack.c.b16 %v1960, %v1956
        %v2717 = vpack.c.b16 %v1965, %v1961
        %v2718 = vpack.c.b16 %v1966, %v1962
        %v2719 = vpack.c.b16 %v1967, %v1963
        %v2720 = vpack.c.b16 %v1968, %v1964
        %v2721 = vpack.c.b16 %v1973, %v1969
        %v2722 = vpack.c.b16 %v1974, %v1970
        %v2723 = vpack.c.b16 %v1975, %v1971
        %v2724 = vpack.c.b16 %v1976, %v1972
        %v2725 = vpack.c.b16 %v1981, %v1977
        %v2726 = vpack.c.b16 %v1982, %v1978
        %v2727 = vpack.c.b16 %v1983, %v1979
        %v2728 = vpack.c.b16 %v1984, %v1980
        %v2729 = vpack.c.b16 %v1989, %v1985
        %v2730 = vpack.c.b16 %v1990, %v1986
        %v2731 = vpack.c.b16 %v1991, %v1987
        %v2732 = vpack.c.b16 %v1992, %v1988
        %v2733 = vpack.c.b16 %v1997, %v1993
        %v2734 = vpack.c.b16 %v1998, %v1994
        %v2735 = vpack.c.b16 %v1999, %v1995
        %v2736 = vpack.c.b16 %v2000, %v1996
        %v2737 = vpack.c.b16 %v2005, %v2001
        %v2738 = vpack.c.b16 %v2006, %v2002
        %v2739 = vpack.c.b16 %v2007, %v2003
        %v2740 = vpack.c.b16 %v2008, %v2004
        %v2741 = vpack.c.b16 %v2013, %v2009
        %v2742 = vpack.c.b16 %v2014, %v2010
        %v2743 = vpack.c.b16 %v2015, %v2011
        %v2744 = vpack.c.b16 %v2016, %v2012
        %v2745 = vpack.c.b16 %v2021, %v2017
        %v2746 = vpack.c.b16 %v2022, %v2018
        %v2747 = vpack.c.b16 %v2023, %v2019
        %v2748 = vpack.c.b16 %v2024, %v2020
        %v2749 = vpack.c.b16 %v2029, %v2025
        %v2750 = vpack.c.b16 %v2030, %v2026
        %v2751 = vpack.c.b16 %v2031, %v2027
        %v2752 = vpack.c.b16 %v2032, %v2028
        %v2753 = vpack.c.b16 %v2037, %v2033
        %v2754 = vpack.c.b16 %v2038, %v2034
        %v2755 = vpack.c.b16 %v2039, %v2035
        %v2756 = vpack.c.b16 %v2040, %v2036
        %v2757 = vpack.c.b16 %v2045, %v2041
        %v2758 = vpack.c.b16 %v2046, %v2042
        %v2759 = vpack.c.b16 %v2047, %v2043
        %v2760 = vpack.c.b16 %v2048, %v2044
        %v2761 = vpack.c.b16 %v2053, %v2049
        %v2762 = vpack.c.b16 %v2054, %v2050
        %v2763 = vpack.c.b16 %v2055, %v2051
        %v2764 = vpack.c.b16 %v2056, %v2052
        %v2765 = vpack.c.b16 %v2061, %v2057
        %v2766 = vpack.c.b16 %v2062, %v2058
        %v2767 = vpack.c.b16 %v2063, %v2059
        %v2768 = vpack.c.b16 %v2064, %v2060
        %v2769 = vpack.c.b16 %v2069, %v2065
        %v2770 = vpack.c.b16 %v2070, %v2066
        %v2771 = vpack.c.b16 %v2071, %v2067
        %v2772 = vpack.c.b16 %v2072, %v2068
        %v2773 = vpack.c.b16 %v2077, %v2073
        %v2774 = vpack.c.b16 %v2078, %v2074
        %v2775 = vpack.c.b16 %v2079, %v2075
        %v2776 = vpack.c.b16 %v2080, %v2076
        %v2777 = vpack.c.b16 %v2085, %v2081
        %v2778 = vpack.c.b16 %v2086, %v2082
        %v2779 = vpack.c.b16 %v2087, %v2083
        %v2780 = vpack.c.b16 %v2088, %v2084
        %v2781 = vpack.c.b16 %v2093, %v2089
        %v2782 = vpack.c.b16 %v2094, %v2090
        %v2783 = vpack.c.b16 %v2095, %v2091
        %v2784 = vpack.c.b16 %v2096, %v2092
        %v2785 = vpack.c.b16 %v2101, %v2097
        %v2786 = vpack.c.b16 %v2102, %v2098
        %v2787 = vpack.c.b16 %v2103, %v2099
        %v2788 = vpack.c.b16 %v2104, %v2100
        %v2789 = vpack.c.b16 %v2109, %v2105
        %v2790 = vpack.c.b16 %v2110, %v2106
        %v2791 = vpack.c.b16 %v2111, %v2107
        %v2792 = vpack.c.b16 %v2112, %v2108
        %v2793 = vpack.c.b16 %v2117, %v2113
        %v2794 = vpack.c.b16 %v2118, %v2114
        %v2795 = vpack.c.b16 %v2119, %v2115
        %v2796 = vpack.c.b16 %v2120, %v2116
        %v2797 = vpack.c.b16 %v2125, %v2121
        %v2798 = vpack.c.b16 %v2126, %v2122
        %v2799 = vpack.c.b16 %v2127, %v2123
        %v2800 = vpack.c.b16 %v2128, %v2124
        %v2801 = vpack.c.b16 %v2133, %v2129
        %v2802 = vpack.c.b16 %v2134, %v2130
        %v2803 = vpack.c.b16 %v2135, %v2131
        %v2804 = vpack.c.b16 %v2136, %v2132
        %v2805 = vpack.c.b16 %v2141, %v2137
        %v2806 = vpack.c.b16 %v2142, %v2138
        %v2807 = vpack.c.b16 %v2143, %v2139
        %v2808 = vpack.c.b16 %v2144, %v2140
        %v2809 = vpack.c.b16 %v2149, %v2145
        %v2810 = vpack.c.b16 %v2150, %v2146
        %v2811 = vpack.c.b16 %v2151, %v2147
        %v2812 = vpack.c.b16 %v2152, %v2148
        %v2813 = vpack.c.b16 %v2157, %v2153
        %v2814 = vpack.c.b16 %v2158, %v2154
        %v2815 = vpack.c.b16 %v2159, %v2155
        %v2816 = vpack.c.b16 %v2160, %v2156
        %v2817 = vpack.c.b16 %v2165, %v2161
        %v2818 = vpack.c.b16 %v2166, %v2162
        %v2819 = vpack.c.b16 %v2167, %v2163
        %v2820 = vpack.c.b16 %v2168, %v2164
        %v2821 = vpack.c.b16 %v2173, %v2169
        %v2822 = vpack.c.b16 %v2174, %v2170
        %v2823 = vpack.c.b16 %v2175, %v2171
        %v2824 = vpack.c.b16 %v2176, %v2172
        %v2825 = vpack.c.b16 %v2181, %v2177
        %v2826 = vpack.c.b16 %v2182, %v2178
        %v2827 = vpack.c.b16 %v2183, %v2179
        %v2828 = vpack.c.b16 %v2184, %v2180
        %v2829 = vpack.c.b16 %v2189, %v2185
        %v2830 = vpack.c.b16 %v2190, %v2186
        %v2831 = vpack.c.b16 %v2191, %v2187
        %v2832 = vpack.c.b16 %v2192, %v2188
        %v2833 = vpack.c.b16 %v2197, %v2193
        %v2834 = vpack.c.b16 %v2198, %v2194
        %v2835 = vpack.c.b16 %v2199, %v2195
        %v2836 = vpack.c.b16 %v2200, %v2196
        %v2837 = vpack.c.b16 %v2205, %v2201
        %v2838 = vpack.c.b16 %v2206, %v2202
        %v2839 = vpack.c.b16 %v2207, %v2203
        %v2840 = vpack.c.b16 %v2208, %v2204
        %v2841 = vpack.c.b16 %v2213, %v2209
        %v2842 = vpack.c.b16 %v2214, %v2210
        %v2843 = vpack.c.b16 %v2215, %v2211
        %v2844 = vpack.c.b16 %v2216, %v2212
        %v2845 = vpack.c.b16 %v2221, %v2217
        %v2846 = vpack.c.b16 %v2222, %v2218
        %v2847 = vpack.c.b16 %v2223, %v2219
        %v2848 = vpack.c.b16 %v2224, %v2220
        %v2849 = vpack.c.b16 %v2229, %v2225
        %v2850 = vpack.c.b16 %v2230, %v2226
        %v2851 = vpack.c.b16 %v2231, %v2227
        %v2852 = vpack.c.b16 %v2232, %v2228
        %v2853 = vpack.c.b16 %v2237, %v2233
        %v2854 = vpack.c.b16 %v2238, %v2234
        %v2855 = vpack.c.b16 %v2239, %v2235
        %v2856 = vpack.c.b16 %v2240, %v2236
        %v2857 = vpack.c.b16 %v2245, %v2241
        %v2858 = vpack.c.b16 %v2246, %v2242
        %v2859 = vpack.c.b16 %v2247, %v2243
        %v2860 = vpack.c.b16 %v2248, %v2244
        %v2861 = vpack.c.b16 %v2253, %v2249
        %v2862 = vpack.c.b16 %v2254, %v2250
        %v2863 = vpack.c.b16 %v2255, %v2251
        %v2864 = vpack.c.b16 %v2256, %v2252
        %v2865 = vpack.c.b16 %v2261, %v2257
        %v2866 = vpack.c.b16 %v2262, %v2258
        %v2867 = vpack.c.b16 %v2263, %v2259
        %v2868 = vpack.c.b16 %v2264, %v2260
        %v2869 = vpack.c.b16 %v2269, %v2265
        %v2870 = vpack.c.b16 %v2270, %v2266
        %v2871 = vpack.c.b16 %v2271, %v2267
        %v2872 = vpack.c.b16 %v2272, %v2268
        %v2873 = vpack.c.b16 %v2277, %v2273
        %v2874 = vpack.c.b16 %v2278, %v2274
        %v2875 = vpack.c.b16 %v2279, %v2275
        %v2876 = vpack.c.b16 %v2280, %v2276
        %v2877 = vpack.c.b16 %v2285, %v2281
        %v2878 = vpack.c.b16 %v2286, %v2282
        %v2879 = vpack.c.b16 %v2287, %v2283
        %v2880 = vpack.c.b16 %v2288, %v2284
        %v2881 = vpack.c.b16 %v2293, %v2289
        %v2882 = vpack.c.b16 %v2294, %v2290
        %v2883 = vpack.c.b16 %v2295, %v2291
        %v2884 = vpack.c.b16 %v2296, %v2292
        %v2885 = vpack.c.b16 %v2301, %v2297
        %v2886 = vpack.c.b16 %v2302, %v2298
        %v2887 = vpack.c.b16 %v2303, %v2299
        %v2888 = vpack.c.b16 %v2304, %v2300
        %v2889 = vpack.c.b16 %v2309, %v2305
        %v2890 = vpack.c.b16 %v2310, %v2306
        %v2891 = vpack.c.b16 %v2311, %v2307
        %v2892 = vpack.c.b16 %v2312, %v2308
        %v2893 = vpack.c.b16 %v2317, %v2313
        %v2894 = vpack.c.b16 %v2318, %v2314
        %v2895 = vpack.c.b16 %v2319, %v2315
        %v2896 = vpack.c.b16 %v2320, %v2316
        %v2897 = vpack.c.b16 %v2325, %v2321
        %v2898 = vpack.c.b16 %v2326, %v2322
        %v2899 = vpack.c.b16 %v2327, %v2323
        %v2900 = vpack.c.b16 %v2328, %v2324
        %v2901 = vpack.c.b16 %v2333, %v2329
        %v2902 = vpack.c.b16 %v2334, %v2330
        %v2903 = vpack.c.b16 %v2335, %v2331
        %v2904 = vpack.c.b16 %v2336, %v2332
        %v2905 = vpack.c.b16 %v2341, %v2337
        %v2906 = vpack.c.b16 %v2342, %v2338
        %v2907 = vpack.c.b16 %v2343, %v2339
        %v2908 = vpack.c.b16 %v2344, %v2340
        %v2909 = vpack.c.b16 %v2349, %v2345
        %v2910 = vpack.c.b16 %v2350, %v2346
        %v2911 = vpack.c.b16 %v2351, %v2347
        %v2912 = vpack.c.b16 %v2352, %v2348
        %v2913 = vpack.c.b16 %v2357, %v2353
        %v2914 = vpack.c.b16 %v2358, %v2354
        %v2915 = vpack.c.b16 %v2359, %v2355
        %v2916 = vpack.c.b16 %v2360, %v2356
        %v2917 = vpack.c.b16 %v2365, %v2361
        %v2918 = vpack.c.b16 %v2366, %v2362
        %v2919 = vpack.c.b16 %v2367, %v2363
        %v2920 = vpack.c.b16 %v2368, %v2364
        %v2921 = vpack.c.b16 %v2373, %v2369
        %v2922 = vpack.c.b16 %v2374, %v2370
        %v2923 = vpack.c.b16 %v2375, %v2371
        %v2924 = vpack.c.b16 %v2376, %v2372
        %v2925 = vpack.c.b16 %v2381, %v2377
        %v2926 = vpack.c.b16 %v2382, %v2378
        %v2927 = vpack.c.b16 %v2383, %v2379
        %v2928 = vpack.c.b16 %v2384, %v2380
        %v2929 = vpack.c.b16 %v2389, %v2385
        %v2930 = vpack.c.b16 %v2390, %v2386
        %v2931 = vpack.c.b16 %v2391, %v2387
        %v2932 = vpack.c.b16 %v2392, %v2388
        %v2933 = vpack.c.b16 %v2397, %v2393
        %v2934 = vpack.c.b16 %v2398, %v2394
        %v2935 = vpack.c.b16 %v2399, %v2395
        %v2936 = vpack.c.b16 %v2400, %v2396
        %v2937 = vpack.c.b16 %v2405, %v2401
        %v2938 = vpack.c.b16 %v2406, %v2402
        %v2939 = vpack.c.b16 %v2407, %v2403
        %v2940 = vpack.c.b16 %v2408, %v2404
        %v2941 = vpack.c.b16 %v2413, %v2409
        %v2942 = vpack.c.b16 %v2414, %v2410
        %v2943 = vpack.c.b16 %v2415, %v2411
        %v2944 = vpack.c.b16 %v2416, %v2412
        %v2945 = vpack.c.b16 %v2421, %v2417
        %v2946 = vpack.c.b16 %v2422, %v2418
        %v2947 = vpack.c.b16 %v2423, %v2419
        %v2948 = vpack.c.b16 %v2424, %v2420
        %v2949 = vpack.c.b16 %v2429, %v2425
        %v2950 = vpack.c.b16 %v2430, %v2426
        %v2951 = vpack.c.b16 %v2431, %v2427
        %v2952 = vpack.c.b16 %v2432, %v2428
        %v2953 = vpack.c.b16 %v2437, %v2433
        %v2954 = vpack.c.b16 %v2438, %v2434
        %v2955 = vpack.c.b16 %v2439, %v2435
        %v2956 = vpack.c.b16 %v2440, %v2436
        %v2957 = vpack.c.b16 %v2445, %v2441
        %v2958 = vpack.c.b16 %v2446, %v2442
        %v2959 = vpack.c.b16 %v2447, %v2443
        %v2960 = vpack.c.b16 %v2448, %v2444
        %v2961 = vpack.c.b16 %v2453, %v2449
        %v2962 = vpack.c.b16 %v2454, %v2450
        %v2963 = vpack.c.b16 %v2455, %v2451
        %v2964 = vpack.c.b16 %v2456, %v2452
        %v2965 = vpack.c.b16 %v2461, %v2457
        %v2966 = vpack.c.b16 %v2462, %v2458
        %v2967 = vpack.c.b16 %v2463, %v2459
        %v2968 = vpack.c.b16 %v2464, %v2460
        %v2969 = vpack.c.b16 %v2469, %v2465
        %v2970 = vpack.c.b16 %v2470, %v2466
        %v2971 = vpack.c.b16 %v2471, %v2467
        %v2972 = vpack.c.b16 %v2472, %v2468
        %v2973 = vpack.c.b16 %v2477, %v2473
        %v2974 = vpack.c.b16 %v2478, %v2474
        %v2975 = vpack.c.b16 %v2479, %v2475
        %v2976 = vpack.c.b16 %v2480, %v2476
        %v2977 = vpack.c.b16 %v2485, %v2481
        %v2978 = vpack.c.b16 %v2486, %v2482
        %v2979 = vpack.c.b16 %v2487, %v2483
        %v2980 = vpack.c.b16 %v2488, %v2484
        %v2981 = vpack.c.b16 %v2493, %v2489
        %v2982 = vpack.c.b16 %v2494, %v2490
        %v2983 = vpack.c.b16 %v2495, %v2491
        %v2984 = vpack.c.b16 %v2496, %v2492
        %v2985 = vpack.c.b16 %v2501, %v2497
        %v2986 = vpack.c.b16 %v2502, %v2498
        %v2987 = vpack.c.b16 %v2503, %v2499
        %v2988 = vpack.c.b16 %v2504, %v2500
        %v2989 = vpack.c.b16 %v2509, %v2505
        %v2990 = vpack.c.b16 %v2510, %v2506
        %v2991 = vpack.c.b16 %v2511, %v2507
        %v2992 = vpack.c.b16 %v2512, %v2508
        %v2993 = vpack.c.b16 %v2517, %v2513
        %v2994 = vpack.c.b16 %v2518, %v2514
        %v2995 = vpack.c.b16 %v2519, %v2515
        %v2996 = vpack.c.b16 %v2520, %v2516
        %v2997 = vpack.c.b16 %v2525, %v2521
        %v2998 = vpack.c.b16 %v2526, %v2522
        %v2999 = vpack.c.b16 %v2527, %v2523
        %v3000 = vpack.c.b16 %v2528, %v2524
        %v3001 = vpack.c.b16 %v2533, %v2529
        %v3002 = vpack.c.b16 %v2534, %v2530
        %v3003 = vpack.c.b16 %v2535, %v2531
        %v3004 = vpack.c.b16 %v2536, %v2532
        %v3005 = vpack.c.b16 %v2541, %v2537
        %v3006 = vpack.c.b16 %v2542, %v2538
        %v3007 = vpack.c.b16 %v2543, %v2539
        %v3008 = vpack.c.b16 %v2544, %v2540
        %v3009 = vpack.c.b16 %v2549, %v2545
        %v3010 = vpack.c.b16 %v2550, %v2546
        %v3011 = vpack.c.b16 %v2551, %v2547
        %v3012 = vpack.c.b16 %v2552, %v2548
        %v3013 = vpack.c.b16 %v2557, %v2553
        %v3014 = vpack.c.b16 %v2558, %v2554
        %v3015 = vpack.c.b16 %v2559, %v2555
        %v3016 = vpack.c.b16 %v2560, %v2556
        %v3017 = vpack.c.b16 %v2565, %v2561
        %v3018 = vpack.c.b16 %v2566, %v2562
        %v3019 = vpack.c.b16 %v2567, %v2563
        %v3020 = vpack.c.b16 %v2568, %v2564
        %v3021 = vpack.c.b16 %v2573, %v2569
        %v3022 = vpack.c.b16 %v2574, %v2570
        %v3023 = vpack.c.b16 %v2575, %v2571
        %v3024 = vpack.c.b16 %v2576, %v2572
        %3473 = vmatprep.subr.bf16.mxu0 %v2606
        %3474 = vmatpush1.bf16.msra.mxu0 %v2605
        %3475 = vmatprep.subr.bf16.mxu0 %v2602
        %3476 = vmatpush1.bf16.msra.mxu0 %v2601
        %3477 = vmatprep.subr.bf16.mxu0 %v2598
        %3478 = vmatpush1.bf16.msra.mxu0 %v2597
        %3479 = vmatprep.subr.bf16.mxu0 %v2594
        %3480 = vmatpush1.bf16.msra.mxu0 %v2593
        %3481 = vmatprep.subr.bf16.mxu0 %v2590
        %3482 = vmatpush1.bf16.msra.mxu0 %v2589
        %3483 = vmatprep.subr.bf16.mxu0 %v2586
        %3484 = vmatpush1.bf16.msra.mxu0 %v2585
        %3485 = vmatprep.subr.bf16.mxu0 %v2582
        %3486 = vmatpush1.bf16.msra.mxu0 %v2581
        %3487 = vmatprep.subr.bf16.mxu0 %v2578
        %3488 = vmatpush1.bf16.msra.mxu0 %v2577
        %3489 = vmatprep.subr.bf16.mxu0 %v2638
        %3490 = vmatpush2.bf16.msra.mxu0 %v2637
        %3491 = vmatprep.subr.bf16.mxu0 %v2634
        %3492 = vmatpush2.bf16.msra.mxu0 %v2633
        %3493 = vmatprep.subr.bf16.mxu0 %v2630
        %3494 = vmatpush2.bf16.msra.mxu0 %v2629
        %3495 = vmatprep.subr.bf16.mxu0 %v2626
        %3496 = vmatpush2.bf16.msra.mxu0 %v2625
        %3497 = vmatprep.subr.bf16.mxu0 %v2622
        %3498 = vmatpush2.bf16.msra.mxu0 %v2621
        %3499 = vmatprep.subr.bf16.mxu0 %v2618
        %3500 = vmatpush2.bf16.msra.mxu0 %v2617
        %3501 = vmatprep.subr.bf16.mxu0 %v2614
        %3502 = vmatpush2.bf16.msra.mxu0 %v2613
        %3503 = vmatprep.subr.bf16.mxu0 %v2610
        %3504 = vmatpush2.bf16.msra.mxu0 %v2609
        %3505 = vmatprep.mubr.bf16.mxu0 %v1206
        %3506 = vmatmul.mubr.bf16.gmra.mxu0 %v1205
        %v3507 = vpop.f32.mrf.mxu0
        %v3508 = vadd.f32 %v1117, %v3507
        %v3509 = vpop.f32.mrf.mxu0
        %v3510 = vadd.f32 %v1121, %v3509
        %v3511 = vpop.f32.mrf.mxu0
        %v3512 = vpop.f32.mrf.mxu0
        %3513 = vdwg.mxu0
        %3514 = vmatprep.subr.bf16.mxu0 %v2670
        %3515 = vmatpush1.bf16.msra.mxu0 %v2669
        %3516 = vmatprep.subr.bf16.mxu0 %v2666
        %3517 = vmatpush1.bf16.msra.mxu0 %v2665
        %3518 = vmatprep.subr.bf16.mxu0 %v2662
        %3519 = vmatpush1.bf16.msra.mxu0 %v2661
        %3520 = vmatprep.subr.bf16.mxu0 %v2658
        %3521 = vmatpush1.bf16.msra.mxu0 %v2657
        %3522 = vmatprep.subr.bf16.mxu0 %v2654
        %3523 = vmatpush1.bf16.msra.mxu0 %v2653
        %3524 = vmatprep.subr.bf16.mxu0 %v2650
        %3525 = vmatpush1.bf16.msra.mxu0 %v2649
        %3526 = vmatprep.subr.bf16.mxu0 %v2646
        %3527 = vmatpush1.bf16.msra.mxu0 %v2645
        %3528 = vmatprep.subr.bf16.mxu0 %v2642
        %3529 = vmatpush1.bf16.msra.mxu0 %v2641
        %3530 = vmatprep.subr.bf16.mxu0 %v2702
        %3531 = vmatpush2.bf16.msra.mxu0 %v2701
        %3532 = vmatprep.subr.bf16.mxu0 %v2698
        %3533 = vmatpush2.bf16.msra.mxu0 %v2697
        %3534 = vmatprep.subr.bf16.mxu0 %v2694
        %3535 = vmatpush2.bf16.msra.mxu0 %v2693
        %3536 = vmatprep.subr.bf16.mxu0 %v2690
        %3537 = vmatpush2.bf16.msra.mxu0 %v2689
        %3538 = vmatprep.subr.bf16.mxu0 %v2686
        %3539 = vmatpush2.bf16.msra.mxu0 %v2685
        %3540 = vmatprep.subr.bf16.mxu0 %v2682
        %3541 = vmatpush2.bf16.msra.mxu0 %v2681
        %3542 = vmatprep.subr.bf16.mxu0 %v2678
        %3543 = vmatpush2.bf16.msra.mxu0 %v2677
        %3544 = vmatprep.subr.bf16.mxu0 %v2674
        %3545 = vmatpush2.bf16.msra.mxu0 %v2673
        %3546 = vmatprep.mubr.bf16.mxu0 %v1208
        %3547 = vmatmul.mubr.bf16.gmra.mxu0 %v1207
        %v3548 = vpop.f32.mrf.mxu0
        %v3549 = vadd.f32 %v3508, %v3548
        %v3550 = vpop.f32.mrf.mxu0
        %v3551 = vadd.f32 %v3510, %v3550
        %v3552 = vpop.f32.mrf.mxu0
        %v3553 = vpop.f32.mrf.mxu0
        %3554 = vdwg.mxu0
        %3555 = vmatprep.subr.bf16.mxu0 %v2734
        %3556 = vmatpush1.bf16.msra.mxu0 %v2733
        %3557 = vmatprep.subr.bf16.mxu0 %v2730
        %3558 = vmatpush1.bf16.msra.mxu0 %v2729
        %3559 = vmatprep.subr.bf16.mxu0 %v2726
        %3560 = vmatpush1.bf16.msra.mxu0 %v2725
        %3561 = vmatprep.subr.bf16.mxu0 %v2722
        %3562 = vmatpush1.bf16.msra.mxu0 %v2721
        %3563 = vmatprep.subr.bf16.mxu0 %v2718
        %3564 = vmatpush1.bf16.msra.mxu0 %v2717
        %3565 = vmatprep.subr.bf16.mxu0 %v2714
        %3566 = vmatpush1.bf16.msra.mxu0 %v2713
        %3567 = vmatprep.subr.bf16.mxu0 %v2710
        %3568 = vmatpush1.bf16.msra.mxu0 %v2709
        %3569 = vmatprep.subr.bf16.mxu0 %v2706
        %3570 = vmatpush1.bf16.msra.mxu0 %v2705
        %3571 = vmatprep.subr.bf16.mxu0 %v2766
        %3572 = vmatpush2.bf16.msra.mxu0 %v2765
        %3573 = vmatprep.subr.bf16.mxu0 %v2762
        %3574 = vmatpush2.bf16.msra.mxu0 %v2761
        %3575 = vmatprep.subr.bf16.mxu0 %v2758
        %3576 = vmatpush2.bf16.msra.mxu0 %v2757
        %3577 = vmatprep.subr.bf16.mxu0 %v2754
        %3578 = vmatpush2.bf16.msra.mxu0 %v2753
        %3579 = vmatprep.subr.bf16.mxu0 %v2750
        %3580 = vmatpush2.bf16.msra.mxu0 %v2749
        %3581 = vmatprep.subr.bf16.mxu0 %v2746
        %3582 = vmatpush2.bf16.msra.mxu0 %v2745
        %3583 = vmatprep.subr.bf16.mxu0 %v2742
        %3584 = vmatpush2.bf16.msra.mxu0 %v2741
        %3585 = vmatprep.subr.bf16.mxu0 %v2738
        %3586 = vmatpush2.bf16.msra.mxu0 %v2737
        %3587 = vmatprep.mubr.bf16.mxu0 %v1210
        %3588 = vmatmul.mubr.bf16.gmra.mxu0 %v1209
        %v3589 = vpop.f32.mrf.mxu0
        %v3590 = vadd.f32 %v3549, %v3589
        %v3591 = vpop.f32.mrf.mxu0
        %v3592 = vadd.f32 %v3551, %v3591
        %v3593 = vpop.f32.mrf.mxu0
        %v3594 = vpop.f32.mrf.mxu0
        %3595 = vdwg.mxu0
        %3596 = vmatprep.subr.bf16.mxu0 %v2798
        %3597 = vmatpush1.bf16.msra.mxu0 %v2797
        %3598 = vmatprep.subr.bf16.mxu0 %v2794
        %3599 = vmatpush1.bf16.msra.mxu0 %v2793
        %3600 = vmatprep.subr.bf16.mxu0 %v2790
        %3601 = vmatpush1.bf16.msra.mxu0 %v2789
        %3602 = vmatprep.subr.bf16.mxu0 %v2786
        %3603 = vmatpush1.bf16.msra.mxu0 %v2785
        %3604 = vmatprep.subr.bf16.mxu0 %v2782
        %3605 = vmatpush1.bf16.msra.mxu0 %v2781
        %3606 = vmatprep.subr.bf16.mxu0 %v2778
        %3607 = vmatpush1.bf16.msra.mxu0 %v2777
        %3608 = vmatprep.subr.bf16.mxu0 %v2774
        %3609 = vmatpush1.bf16.msra.mxu0 %v2773
        %3610 = vmatprep.subr.bf16.mxu0 %v2770
        %3611 = vmatpush1.bf16.msra.mxu0 %v2769
        %3612 = vmatprep.subr.bf16.mxu0 %v2830
        %3613 = vmatpush2.bf16.msra.mxu0 %v2829
        %3614 = vmatprep.subr.bf16.mxu0 %v2826
        %3615 = vmatpush2.bf16.msra.mxu0 %v2825
        %3616 = vmatprep.subr.bf16.mxu0 %v2822
        %3617 = vmatpush2.bf16.msra.mxu0 %v2821
        %3618 = vmatprep.subr.bf16.mxu0 %v2818
        %3619 = vmatpush2.bf16.msra.mxu0 %v2817
        %3620 = vmatprep.subr.bf16.mxu0 %v2814
        %3621 = vmatpush2.bf16.msra.mxu0 %v2813
        %3622 = vmatprep.subr.bf16.mxu0 %v2810
        %3623 = vmatpush2.bf16.msra.mxu0 %v2809
        %3624 = vmatprep.subr.bf16.mxu0 %v2806
        %3625 = vmatpush2.bf16.msra.mxu0 %v2805
        %3626 = vmatprep.subr.bf16.mxu0 %v2802
        %3627 = vmatpush2.bf16.msra.mxu0 %v2801
        %3628 = vmatprep.mubr.bf16.mxu0 %v1212
        %3629 = vmatmul.mubr.bf16.gmra.mxu0 %v1211
        %v3630 = vpop.f32.mrf.mxu0
        %v3631 = vadd.f32 %v3590, %v3630
        %v3632 = vpop.f32.mrf.mxu0
        %v3633 = vadd.f32 %v3592, %v3632
        %v3634 = vpop.f32.mrf.mxu0
        %v3635 = vpop.f32.mrf.mxu0
        %3636 = vdwg.mxu0
        %3637 = vmatprep.subr.bf16.mxu0 %v2862
        %3638 = vmatpush1.bf16.msra.mxu0 %v2861
        %3639 = vmatprep.subr.bf16.mxu0 %v2858
        %3640 = vmatpush1.bf16.msra.mxu0 %v2857
        %3641 = vmatprep.subr.bf16.mxu0 %v2854
        %3642 = vmatpush1.bf16.msra.mxu0 %v2853
        %3643 = vmatprep.subr.bf16.mxu0 %v2850
        %3644 = vmatpush1.bf16.msra.mxu0 %v2849
        %3645 = vmatprep.subr.bf16.mxu0 %v2846
        %3646 = vmatpush1.bf16.msra.mxu0 %v2845
        %3647 = vmatprep.subr.bf16.mxu0 %v2842
        %3648 = vmatpush1.bf16.msra.mxu0 %v2841
        %3649 = vmatprep.subr.bf16.mxu0 %v2838
        %3650 = vmatpush1.bf16.msra.mxu0 %v2837
        %3651 = vmatprep.subr.bf16.mxu0 %v2834
        %3652 = vmatpush1.bf16.msra.mxu0 %v2833
        %3653 = vmatprep.subr.bf16.mxu0 %v2894
        %3654 = vmatpush2.bf16.msra.mxu0 %v2893
        %3655 = vmatprep.subr.bf16.mxu0 %v2890
        %3656 = vmatpush2.bf16.msra.mxu0 %v2889
        %3657 = vmatprep.subr.bf16.mxu0 %v2886
        %3658 = vmatpush2.bf16.msra.mxu0 %v2885
        %3659 = vmatprep.subr.bf16.mxu0 %v2882
        %3660 = vmatpush2.bf16.msra.mxu0 %v2881
        %3661 = vmatprep.subr.bf16.mxu0 %v2878
        %3662 = vmatpush2.bf16.msra.mxu0 %v2877
        %3663 = vmatprep.subr.bf16.mxu0 %v2874
        %3664 = vmatpush2.bf16.msra.mxu0 %v2873
        %3665 = vmatprep.subr.bf16.mxu0 %v2870
        %3666 = vmatpush2.bf16.msra.mxu0 %v2869
        %3667 = vmatprep.subr.bf16.mxu0 %v2866
        %3668 = vmatpush2.bf16.msra.mxu0 %v2865
        %3669 = vmatprep.mubr.bf16.mxu0 %v1214
        %3670 = vmatmul.mubr.bf16.gmra.mxu0 %v1213
        %v3671 = vpop.f32.mrf.mxu0
        %v3672 = vadd.f32 %v3631, %v3671
        %v3673 = vpop.f32.mrf.mxu0
        %v3674 = vadd.f32 %v3633, %v3673
        %v3675 = vpop.f32.mrf.mxu0
        %v3676 = vpop.f32.mrf.mxu0
        %3677 = vdwg.mxu0
        %3678 = vmatprep.subr.bf16.mxu0 %v2926
        %3679 = vmatpush1.bf16.msra.mxu0 %v2925
        %3680 = vmatprep.subr.bf16.mxu0 %v2922
        %3681 = vmatpush1.bf16.msra.mxu0 %v2921
        %3682 = vmatprep.subr.bf16.mxu0 %v2918
        %3683 = vmatpush1.bf16.msra.mxu0 %v2917
        %3684 = vmatprep.subr.bf16.mxu0 %v2914
        %3685 = vmatpush1.bf16.msra.mxu0 %v2913
        %3686 = vmatprep.subr.bf16.mxu0 %v2910
        %3687 = vmatpush1.bf16.msra.mxu0 %v2909
        %3688 = vmatprep.subr.bf16.mxu0 %v2906
        %3689 = vmatpush1.bf16.msra.mxu0 %v2905
        %3690 = vmatprep.subr.bf16.mxu0 %v2902
        %3691 = vmatpush1.bf16.msra.mxu0 %v2901
        %3692 = vmatprep.subr.bf16.mxu0 %v2898
        %3693 = vmatpush1.bf16.msra.mxu0 %v2897
        %3694 = vmatprep.subr.bf16.mxu0 %v2958
        %3695 = vmatpush2.bf16.msra.mxu0 %v2957
        %3696 = vmatprep.subr.bf16.mxu0 %v2954
        %3697 = vmatpush2.bf16.msra.mxu0 %v2953
        %3698 = vmatprep.subr.bf16.mxu0 %v2950
        %3699 = vmatpush2.bf16.msra.mxu0 %v2949
        %3700 = vmatprep.subr.bf16.mxu0 %v2946
        %3701 = vmatpush2.bf16.msra.mxu0 %v2945
        %3702 = vmatprep.subr.bf16.mxu0 %v2942
        %3703 = vmatpush2.bf16.msra.mxu0 %v2941
        %3704 = vmatprep.subr.bf16.mxu0 %v2938
        %3705 = vmatpush2.bf16.msra.mxu0 %v2937
        %3706 = vmatprep.subr.bf16.mxu0 %v2934
        %3707 = vmatpush2.bf16.msra.mxu0 %v2933
        %3708 = vmatprep.subr.bf16.mxu0 %v2930
        %3709 = vmatpush2.bf16.msra.mxu0 %v2929
        %3710 = vmatprep.mubr.bf16.mxu0 %v1216
        %3711 = vmatmul.mubr.bf16.gmra.mxu0 %v1215
        %v3712 = vpop.f32.mrf.mxu0
        %v3713 = vadd.f32 %v3672, %v3712
        %v3714 = vpop.f32.mrf.mxu0
        %v3715 = vadd.f32 %v3674, %v3714
        %v3716 = vpop.f32.mrf.mxu0
        %v3717 = vpop.f32.mrf.mxu0
        %3718 = vdwg.mxu0
        %3719 = vmatprep.subr.bf16.mxu0 %v2990
        %3720 = vmatpush1.bf16.msra.mxu0 %v2989
        %3721 = vmatprep.subr.bf16.mxu0 %v2986
        %3722 = vmatpush1.bf16.msra.mxu0 %v2985
        %3723 = vmatprep.subr.bf16.mxu0 %v2982
        %3724 = vmatpush1.bf16.msra.mxu0 %v2981
        %3725 = vmatprep.subr.bf16.mxu0 %v2978
        %3726 = vmatpush1.bf16.msra.mxu0 %v2977
        %3727 = vmatprep.subr.bf16.mxu0 %v2974
        %3728 = vmatpush1.bf16.msra.mxu0 %v2973
        %3729 = vmatprep.subr.bf16.mxu0 %v2970
        %3730 = vmatpush1.bf16.msra.mxu0 %v2969
        %3731 = vmatprep.subr.bf16.mxu0 %v2966
        %3732 = vmatpush1.bf16.msra.mxu0 %v2965
        %3733 = vmatprep.subr.bf16.mxu0 %v2962
        %3734 = vmatpush1.bf16.msra.mxu0 %v2961
        %3735 = vmatprep.subr.bf16.mxu0 %v3022
        %3736 = vmatpush2.bf16.msra.mxu0 %v3021
        %3737 = vmatprep.subr.bf16.mxu0 %v3018
        %3738 = vmatpush2.bf16.msra.mxu0 %v3017
        %3739 = vmatprep.subr.bf16.mxu0 %v3014
        %3740 = vmatpush2.bf16.msra.mxu0 %v3013
        %3741 = vmatprep.subr.bf16.mxu0 %v3010
        %3742 = vmatpush2.bf16.msra.mxu0 %v3009
        %3743 = vmatprep.subr.bf16.mxu0 %v3006
        %3744 = vmatpush2.bf16.msra.mxu0 %v3005
        %3745 = vmatprep.subr.bf16.mxu0 %v3002
        %3746 = vmatpush2.bf16.msra.mxu0 %v3001
        %3747 = vmatprep.subr.bf16.mxu0 %v2998
        %3748 = vmatpush2.bf16.msra.mxu0 %v2997
        %3749 = vmatprep.subr.bf16.mxu0 %v2994
        %3750 = vmatpush2.bf16.msra.mxu0 %v2993
        %3751 = vmatprep.mubr.bf16.mxu0 %v1218
        %3752 = vmatmul.mubr.bf16.gmra.mxu0 %v1217
        %v3753 = vpop.f32.mrf.mxu0
        %v3754 = vadd.f32 %v3713, %v3753
        %v3755 = vpop.f32.mrf.mxu0
        %v3756 = vadd.f32 %v3715, %v3755
        %v3757 = vpop.f32.mrf.mxu0
        %v3758 = vpop.f32.mrf.mxu0
        %3759 = vdwg.mxu0
        %3760 = vmatprep.subr.bf16.mxu0 %v2608
        %3761 = vmatpush1.bf16.msra.mxu0 %v2607
        %3762 = vmatprep.subr.bf16.mxu0 %v2604
        %3763 = vmatpush1.bf16.msra.mxu0 %v2603
        %3764 = vmatprep.subr.bf16.mxu0 %v2600
        %3765 = vmatpush1.bf16.msra.mxu0 %v2599
        %3766 = vmatprep.subr.bf16.mxu0 %v2596
        %3767 = vmatpush1.bf16.msra.mxu0 %v2595
        %3768 = vmatprep.subr.bf16.mxu0 %v2592
        %3769 = vmatpush1.bf16.msra.mxu0 %v2591
        %3770 = vmatprep.subr.bf16.mxu0 %v2588
        %3771 = vmatpush1.bf16.msra.mxu0 %v2587
        %3772 = vmatprep.subr.bf16.mxu0 %v2584
        %3773 = vmatpush1.bf16.msra.mxu0 %v2583
        %3774 = vmatprep.subr.bf16.mxu0 %v2580
        %3775 = vmatpush1.bf16.msra.mxu0 %v2579
        %3776 = vmatprep.subr.bf16.mxu0 %v2640
        %3777 = vmatpush2.bf16.msra.mxu0 %v2639
        %3778 = vmatprep.subr.bf16.mxu0 %v2636
        %3779 = vmatpush2.bf16.msra.mxu0 %v2635
        %3780 = vmatprep.subr.bf16.mxu0 %v2632
        %3781 = vmatpush2.bf16.msra.mxu0 %v2631
        %3782 = vmatprep.subr.bf16.mxu0 %v2628
        %3783 = vmatpush2.bf16.msra.mxu0 %v2627
        %3784 = vmatprep.subr.bf16.mxu0 %v2624
        %3785 = vmatpush2.bf16.msra.mxu0 %v2623
        %3786 = vmatprep.subr.bf16.mxu0 %v2620
        %3787 = vmatpush2.bf16.msra.mxu0 %v2619
        %3788 = vmatprep.subr.bf16.mxu0 %v2616
        %3789 = vmatpush2.bf16.msra.mxu0 %v2615
        %3790 = vmatprep.subr.bf16.mxu0 %v2612
        %3791 = vmatpush2.bf16.msra.mxu0 %v2611
        %3792 = vmatprep.mubr.bf16.mxu0 %v1206
        %3793 = vmatmul.mubr.bf16.gmra.mxu0 %v1205
        %v3794 = vpop.f32.mrf.mxu0
        %v3795 = vadd.f32 %v1125, %v3794
        %v3796 = vpop.f32.mrf.mxu0
        %v3797 = vadd.f32 %v1129, %v3796
        %v3798 = vpop.f32.mrf.mxu0
        %v3799 = vpop.f32.mrf.mxu0
        %3800 = vdwg.mxu0
        %3801 = vmatprep.subr.bf16.mxu0 %v2672
        %3802 = vmatpush1.bf16.msra.mxu0 %v2671
        %3803 = vmatprep.subr.bf16.mxu0 %v2668
        %3804 = vmatpush1.bf16.msra.mxu0 %v2667
        %3805 = vmatprep.subr.bf16.mxu0 %v2664
        %3806 = vmatpush1.bf16.msra.mxu0 %v2663
        %3807 = vmatprep.subr.bf16.mxu0 %v2660
        %3808 = vmatpush1.bf16.msra.mxu0 %v2659
        %3809 = vmatprep.subr.bf16.mxu0 %v2656
        %3810 = vmatpush1.bf16.msra.mxu0 %v2655
        %3811 = vmatprep.subr.bf16.mxu0 %v2652
        %3812 = vmatpush1.bf16.msra.mxu0 %v2651
        %3813 = vmatprep.subr.bf16.mxu0 %v2648
        %3814 = vmatpush1.bf16.msra.mxu0 %v2647
        %3815 = vmatprep.subr.bf16.mxu0 %v2644
        %3816 = vmatpush1.bf16.msra.mxu0 %v2643
        %3817 = vmatprep.subr.bf16.mxu0 %v2704
        %3818 = vmatpush2.bf16.msra.mxu0 %v2703
        %3819 = vmatprep.subr.bf16.mxu0 %v2700
        %3820 = vmatpush2.bf16.msra.mxu0 %v2699
        %3821 = vmatprep.subr.bf16.mxu0 %v2696
        %3822 = vmatpush2.bf16.msra.mxu0 %v2695
        %3823 = vmatprep.subr.bf16.mxu0 %v2692
        %3824 = vmatpush2.bf16.msra.mxu0 %v2691
        %3825 = vmatprep.subr.bf16.mxu0 %v2688
        %3826 = vmatpush2.bf16.msra.mxu0 %v2687
        %3827 = vmatprep.subr.bf16.mxu0 %v2684
        %3828 = vmatpush2.bf16.msra.mxu0 %v2683
        %3829 = vmatprep.subr.bf16.mxu0 %v2680
        %3830 = vmatpush2.bf16.msra.mxu0 %v2679
        %3831 = vmatprep.subr.bf16.mxu0 %v2676
        %3832 = vmatpush2.bf16.msra.mxu0 %v2675
        %3833 = vmatprep.mubr.bf16.mxu0 %v1208
        %3834 = vmatmul.mubr.bf16.gmra.mxu0 %v1207
        %v3835 = vpop.f32.mrf.mxu0
        %v3836 = vadd.f32 %v3795, %v3835
        %v3837 = vpop.f32.mrf.mxu0
        %v3838 = vadd.f32 %v3797, %v3837
        %v3839 = vpop.f32.mrf.mxu0
        %v3840 = vpop.f32.mrf.mxu0
        %3841 = vdwg.mxu0
        %3842 = vmatprep.subr.bf16.mxu0 %v2736
        %3843 = vmatpush1.bf16.msra.mxu0 %v2735
        %3844 = vmatprep.subr.bf16.mxu0 %v2732
        %3845 = vmatpush1.bf16.msra.mxu0 %v2731
        %3846 = vmatprep.subr.bf16.mxu0 %v2728
        %3847 = vmatpush1.bf16.msra.mxu0 %v2727
        %3848 = vmatprep.subr.bf16.mxu0 %v2724
        %3849 = vmatpush1.bf16.msra.mxu0 %v2723
        %3850 = vmatprep.subr.bf16.mxu0 %v2720
        %3851 = vmatpush1.bf16.msra.mxu0 %v2719
        %3852 = vmatprep.subr.bf16.mxu0 %v2716
        %3853 = vmatpush1.bf16.msra.mxu0 %v2715
        %3854 = vmatprep.subr.bf16.mxu0 %v2712
        %3855 = vmatpush1.bf16.msra.mxu0 %v2711
        %3856 = vmatprep.subr.bf16.mxu0 %v2708
        %3857 = vmatpush1.bf16.msra.mxu0 %v2707
        %3858 = vmatprep.subr.bf16.mxu0 %v2768
        %3859 = vmatpush2.bf16.msra.mxu0 %v2767
        %3860 = vmatprep.subr.bf16.mxu0 %v2764
        %3861 = vmatpush2.bf16.msra.mxu0 %v2763
        %3862 = vmatprep.subr.bf16.mxu0 %v2760
        %3863 = vmatpush2.bf16.msra.mxu0 %v2759
        %3864 = vmatprep.subr.bf16.mxu0 %v2756
        %3865 = vmatpush2.bf16.msra.mxu0 %v2755
        %3866 = vmatprep.subr.bf16.mxu0 %v2752
        %3867 = vmatpush2.bf16.msra.mxu0 %v2751
        %3868 = vmatprep.subr.bf16.mxu0 %v2748
        %3869 = vmatpush2.bf16.msra.mxu0 %v2747
        %3870 = vmatprep.subr.bf16.mxu0 %v2744
        %3871 = vmatpush2.bf16.msra.mxu0 %v2743
        %3872 = vmatprep.subr.bf16.mxu0 %v2740
        %3873 = vmatpush2.bf16.msra.mxu0 %v2739
        %3874 = vmatprep.mubr.bf16.mxu0 %v1210
        %3875 = vmatmul.mubr.bf16.gmra.mxu0 %v1209
        %v3876 = vpop.f32.mrf.mxu0
        %v3877 = vadd.f32 %v3836, %v3876
        %v3878 = vpop.f32.mrf.mxu0
        %v3879 = vadd.f32 %v3838, %v3878
        %v3880 = vpop.f32.mrf.mxu0
        %v3881 = vpop.f32.mrf.mxu0
        %3882 = vdwg.mxu0
        %3883 = vmatprep.subr.bf16.mxu0 %v2800
        %3884 = vmatpush1.bf16.msra.mxu0 %v2799
        %3885 = vmatprep.subr.bf16.mxu0 %v2796
        %3886 = vmatpush1.bf16.msra.mxu0 %v2795
        %3887 = vmatprep.subr.bf16.mxu0 %v2792
        %3888 = vmatpush1.bf16.msra.mxu0 %v2791
        %3889 = vmatprep.subr.bf16.mxu0 %v2788
        %3890 = vmatpush1.bf16.msra.mxu0 %v2787
        %3891 = vmatprep.subr.bf16.mxu0 %v2784
        %3892 = vmatpush1.bf16.msra.mxu0 %v2783
        %3893 = vmatprep.subr.bf16.mxu0 %v2780
        %3894 = vmatpush1.bf16.msra.mxu0 %v2779
        %3895 = vmatprep.subr.bf16.mxu0 %v2776
        %3896 = vmatpush1.bf16.msra.mxu0 %v2775
        %3897 = vmatprep.subr.bf16.mxu0 %v2772
        %3898 = vmatpush1.bf16.msra.mxu0 %v2771
        %3899 = vmatprep.subr.bf16.mxu0 %v2832
        %3900 = vmatpush2.bf16.msra.mxu0 %v2831
        %3901 = vmatprep.subr.bf16.mxu0 %v2828
        %3902 = vmatpush2.bf16.msra.mxu0 %v2827
        %3903 = vmatprep.subr.bf16.mxu0 %v2824
        %3904 = vmatpush2.bf16.msra.mxu0 %v2823
        %3905 = vmatprep.subr.bf16.mxu0 %v2820
        %3906 = vmatpush2.bf16.msra.mxu0 %v2819
        %3907 = vmatprep.subr.bf16.mxu0 %v2816
        %3908 = vmatpush2.bf16.msra.mxu0 %v2815
        %3909 = vmatprep.subr.bf16.mxu0 %v2812
        %3910 = vmatpush2.bf16.msra.mxu0 %v2811
        %3911 = vmatprep.subr.bf16.mxu0 %v2808
        %3912 = vmatpush2.bf16.msra.mxu0 %v2807
        %3913 = vmatprep.subr.bf16.mxu0 %v2804
        %3914 = vmatpush2.bf16.msra.mxu0 %v2803
        %3915 = vmatprep.mubr.bf16.mxu0 %v1212
        %3916 = vmatmul.mubr.bf16.gmra.mxu0 %v1211
        %v3917 = vpop.f32.mrf.mxu0
        %v3918 = vadd.f32 %v3877, %v3917
        %v3919 = vpop.f32.mrf.mxu0
        %v3920 = vadd.f32 %v3879, %v3919
        %v3921 = vpop.f32.mrf.mxu0
        %v3922 = vpop.f32.mrf.mxu0
        %3923 = vdwg.mxu0
        %3924 = vmatprep.subr.bf16.mxu0 %v2864
        %3925 = vmatpush1.bf16.msra.mxu0 %v2863
        %3926 = vmatprep.subr.bf16.mxu0 %v2860
        %3927 = vmatpush1.bf16.msra.mxu0 %v2859
        %3928 = vmatprep.subr.bf16.mxu0 %v2856
        %3929 = vmatpush1.bf16.msra.mxu0 %v2855
        %3930 = vmatprep.subr.bf16.mxu0 %v2852
        %3931 = vmatpush1.bf16.msra.mxu0 %v2851
        %3932 = vmatprep.subr.bf16.mxu0 %v2848
        %3933 = vmatpush1.bf16.msra.mxu0 %v2847
        %3934 = vmatprep.subr.bf16.mxu0 %v2844
        %3935 = vmatpush1.bf16.msra.mxu0 %v2843
        %3936 = vmatprep.subr.bf16.mxu0 %v2840
        %3937 = vmatpush1.bf16.msra.mxu0 %v2839
        %3938 = vmatprep.subr.bf16.mxu0 %v2836
        %3939 = vmatpush1.bf16.msra.mxu0 %v2835
        %3940 = vmatprep.subr.bf16.mxu0 %v2896
        %3941 = vmatpush2.bf16.msra.mxu0 %v2895
        %3942 = vmatprep.subr.bf16.mxu0 %v2892
        %3943 = vmatpush2.bf16.msra.mxu0 %v2891
        %3944 = vmatprep.subr.bf16.mxu0 %v2888
        %3945 = vmatpush2.bf16.msra.mxu0 %v2887
        %3946 = vmatprep.subr.bf16.mxu0 %v2884
        %3947 = vmatpush2.bf16.msra.mxu0 %v2883
        %3948 = vmatprep.subr.bf16.mxu0 %v2880
        %3949 = vmatpush2.bf16.msra.mxu0 %v2879
        %3950 = vmatprep.subr.bf16.mxu0 %v2876
        %3951 = vmatpush2.bf16.msra.mxu0 %v2875
        %3952 = vmatprep.subr.bf16.mxu0 %v2872
        %3953 = vmatpush2.bf16.msra.mxu0 %v2871
        %3954 = vmatprep.subr.bf16.mxu0 %v2868
        %3955 = vmatpush2.bf16.msra.mxu0 %v2867
        %3956 = vmatprep.mubr.bf16.mxu0 %v1214
        %3957 = vmatmul.mubr.bf16.gmra.mxu0 %v1213
        %v3958 = vpop.f32.mrf.mxu0
        %v3959 = vadd.f32 %v3918, %v3958
        %v3960 = vpop.f32.mrf.mxu0
        %v3961 = vadd.f32 %v3920, %v3960
        %v3962 = vpop.f32.mrf.mxu0
        %v3963 = vpop.f32.mrf.mxu0
        %3964 = vdwg.mxu0
        %3965 = vmatprep.subr.bf16.mxu0 %v2928
        %3966 = vmatpush1.bf16.msra.mxu0 %v2927
        %3967 = vmatprep.subr.bf16.mxu0 %v2924
        %3968 = vmatpush1.bf16.msra.mxu0 %v2923
        %3969 = vmatprep.subr.bf16.mxu0 %v2920
        %3970 = vmatpush1.bf16.msra.mxu0 %v2919
        %3971 = vmatprep.subr.bf16.mxu0 %v2916
        %3972 = vmatpush1.bf16.msra.mxu0 %v2915
        %3973 = vmatprep.subr.bf16.mxu0 %v2912
        %3974 = vmatpush1.bf16.msra.mxu0 %v2911
        %3975 = vmatprep.subr.bf16.mxu0 %v2908
        %3976 = vmatpush1.bf16.msra.mxu0 %v2907
        %3977 = vmatprep.subr.bf16.mxu0 %v2904
        %3978 = vmatpush1.bf16.msra.mxu0 %v2903
        %3979 = vmatprep.subr.bf16.mxu0 %v2900
        %3980 = vmatpush1.bf16.msra.mxu0 %v2899
        %3981 = vmatprep.subr.bf16.mxu0 %v2960
        %3982 = vmatpush2.bf16.msra.mxu0 %v2959
        %3983 = vmatprep.subr.bf16.mxu0 %v2956
        %3984 = vmatpush2.bf16.msra.mxu0 %v2955
        %3985 = vmatprep.subr.bf16.mxu0 %v2952
        %3986 = vmatpush2.bf16.msra.mxu0 %v2951
        %3987 = vmatprep.subr.bf16.mxu0 %v2948
        %3988 = vmatpush2.bf16.msra.mxu0 %v2947
        %3989 = vmatprep.subr.bf16.mxu0 %v2944
        %3990 = vmatpush2.bf16.msra.mxu0 %v2943
        %3991 = vmatprep.subr.bf16.mxu0 %v2940
        %3992 = vmatpush2.bf16.msra.mxu0 %v2939
        %3993 = vmatprep.subr.bf16.mxu0 %v2936
        %3994 = vmatpush2.bf16.msra.mxu0 %v2935
        %3995 = vmatprep.subr.bf16.mxu0 %v2932
        %3996 = vmatpush2.bf16.msra.mxu0 %v2931
        %3997 = vmatprep.mubr.bf16.mxu0 %v1216
        %3998 = vmatmul.mubr.bf16.gmra.mxu0 %v1215
        %v3999 = vpop.f32.mrf.mxu0
        %v4000 = vadd.f32 %v3959, %v3999
        %v4001 = vpop.f32.mrf.mxu0
        %v4002 = vadd.f32 %v3961, %v4001
        %v4003 = vpop.f32.mrf.mxu0
        %v4004 = vpop.f32.mrf.mxu0
        %4005 = vdwg.mxu0
        %4006 = vmatprep.subr.bf16.mxu0 %v2992
        %4007 = vmatpush1.bf16.msra.mxu0 %v2991
        %4008 = vmatprep.subr.bf16.mxu0 %v2988
        %4009 = vmatpush1.bf16.msra.mxu0 %v2987
        %4010 = vmatprep.subr.bf16.mxu0 %v2984
        %4011 = vmatpush1.bf16.msra.mxu0 %v2983
        %4012 = vmatprep.subr.bf16.mxu0 %v2980
        %4013 = vmatpush1.bf16.msra.mxu0 %v2979
        %4014 = vmatprep.subr.bf16.mxu0 %v2976
        %4015 = vmatpush1.bf16.msra.mxu0 %v2975
        %4016 = vmatprep.subr.bf16.mxu0 %v2972
        %4017 = vmatpush1.bf16.msra.mxu0 %v2971
        %4018 = vmatprep.subr.bf16.mxu0 %v2968
        %4019 = vmatpush1.bf16.msra.mxu0 %v2967
        %4020 = vmatprep.subr.bf16.mxu0 %v2964
        %4021 = vmatpush1.bf16.msra.mxu0 %v2963
        %4022 = vmatprep.subr.bf16.mxu0 %v3024
        %4023 = vmatpush2.bf16.msra.mxu0 %v3023
        %4024 = vmatprep.subr.bf16.mxu0 %v3020
        %4025 = vmatpush2.bf16.msra.mxu0 %v3019
        %4026 = vmatprep.subr.bf16.mxu0 %v3016
        %4027 = vmatpush2.bf16.msra.mxu0 %v3015
        %4028 = vmatprep.subr.bf16.mxu0 %v3012
        %4029 = vmatpush2.bf16.msra.mxu0 %v3011
        %4030 = vmatprep.subr.bf16.mxu0 %v3008
        %4031 = vmatpush2.bf16.msra.mxu0 %v3007
        %4032 = vmatprep.subr.bf16.mxu0 %v3004
        %4033 = vmatpush2.bf16.msra.mxu0 %v3003
        %4034 = vmatprep.subr.bf16.mxu0 %v3000
        %4035 = vmatpush2.bf16.msra.mxu0 %v2999
        %4036 = vmatprep.subr.bf16.mxu0 %v2996
        %4037 = vmatpush2.bf16.msra.mxu0 %v2995
        %4038 = vmatprep.mubr.bf16.mxu0 %v1218
        %4039 = vmatmul.mubr.bf16.gmra.mxu0 %v1217
        %v4040 = vpop.f32.mrf.mxu0
        %v4041 = vadd.f32 %v4000, %v4040
        %v4042 = vpop.f32.mrf.mxu0
        %v4043 = vadd.f32 %v4002, %v4042
        %v4044 = vpop.f32.mrf.mxu0
        %v4045 = vpop.f32.mrf.mxu0
        %4046 = vdwg.mxu0
        %v4047 = vmax.f32 %v3754, 0.0
        %v4048 = vmax.f32 %v3756, 0.0
        %v4049 = vmax.f32 %v4041, 0.0
        %v4050 = vmax.f32 %v4043, 0.0
        %v4051 = vpack.c.bf16 %v4047, %v4047
        %v4052 = vpack.c.bf16 %v4048, %v4048
        %v4053 = vpack.c.bf16 %v4049, %v4049
        %v4054 = vpack.c.bf16 %v4050, %v4050
        %v4055 = vld [vmem:[%s300] sm:$0xf]
        %v4056 = vld [vmem:[%s300 + $0x4] sm:$0xf]
        %v4057 = vld [vmem:[%s300 + $0x8] sm:$0xf]
        %v4058 = vld [vmem:[%s300 + $0xc] sm:$0xf]
        %v4059 = vld [vmem:[%s300 + $0x10] sm:$0xf]
        %v4060 = vld [vmem:[%s300 + $0x14] sm:$0xf]
        %v4061 = vld [vmem:[%s300 + $0x18] sm:$0xf]
        %v4062 = vld [vmem:[%s300 + $0x1c] sm:$0xf]
        %v4063 = vld [vmem:[%s300 + $0x20] sm:$0xf]
        %v4064 = vld [vmem:[%s300 + $0x24] sm:$0xf]
        %v4065 = vld [vmem:[%s300 + $0x28] sm:$0xf]
        %v4066 = vld [vmem:[%s300 + $0x2c] sm:$0xf]
        %v4067 = vld [vmem:[%s300 + $0x30] sm:$0xf]
        %v4068 = vld [vmem:[%s300 + $0x34] sm:$0xf]
        %v4069 = vld [vmem:[%s300 + $0x38] sm:$0xf]
        %v4070 = vld [vmem:[%s300 + $0x3c] sm:$0xf]
        %v4071 = vld [vmem:[%s300 + $0x40] sm:$0xf]
        %v4072 = vld [vmem:[%s300 + $0x44] sm:$0xf]
        %v4073 = vld [vmem:[%s300 + $0x48] sm:$0xf]
        %v4074 = vld [vmem:[%s300 + $0x4c] sm:$0xf]
        %v4075 = vld [vmem:[%s300 + $0x50] sm:$0xf]
        %v4076 = vld [vmem:[%s300 + $0x54] sm:$0xf]
        %v4077 = vld [vmem:[%s300 + $0x58] sm:$0xf]
        %v4078 = vld [vmem:[%s300 + $0x5c] sm:$0xf]
        %v4079 = vld [vmem:[%s300 + $0x60] sm:$0xf]
        %v4080 = vld [vmem:[%s300 + $0x64] sm:$0xf]
        %v4081 = vld [vmem:[%s300 + $0x68] sm:$0xf]
        %v4082 = vld [vmem:[%s300 + $0x6c] sm:$0xf]
        %v4083 = vld [vmem:[%s300 + $0x70] sm:$0xf]
        %v4084 = vld [vmem:[%s300 + $0x74] sm:$0xf]
        %v4085 = vld [vmem:[%s300 + $0x78] sm:$0xf]
        %v4086 = vld [vmem:[%s300 + $0x7c] sm:$0xf]
        %v4087 = vld [vmem:[%s300 + $0x80] sm:$0xf]
        %v4088 = vld [vmem:[%s300 + $0x84] sm:$0xf]
        %v4089 = vld [vmem:[%s300 + $0x88] sm:$0xf]
        %v4090 = vld [vmem:[%s300 + $0x8c] sm:$0xf]
        %v4091 = vld [vmem:[%s300 + $0x90] sm:$0xf]
        %v4092 = vld [vmem:[%s300 + $0x94] sm:$0xf]
        %v4093 = vld [vmem:[%s300 + $0x98] sm:$0xf]
        %v4094 = vld [vmem:[%s300 + $0x9c] sm:$0xf]
        %v4095 = vld [vmem:[%s300 + $0xa0] sm:$0xf]
        %v4096 = vld [vmem:[%s300 + $0xa4] sm:$0xf]
        %v4097 = vld [vmem:[%s300 + $0xa8] sm:$0xf]
        %v4098 = vld [vmem:[%s300 + $0xac] sm:$0xf]
        %v4099 = vld [vmem:[%s300 + $0xb0] sm:$0xf]
        %v4100 = vld [vmem:[%s300 + $0xb4] sm:$0xf]
        %v4101 = vld [vmem:[%s300 + $0xb8] sm:$0xf]
        %v4102 = vld [vmem:[%s300 + $0xbc] sm:$0xf]
        %v4103 = vld [vmem:[%s300 + $0xc0] sm:$0xf]
        %v4104 = vld [vmem:[%s300 + $0xc4] sm:$0xf]
        %v4105 = vld [vmem:[%s300 + $0xc8] sm:$0xf]
        %v4106 = vld [vmem:[%s300 + $0xcc] sm:$0xf]
        %v4107 = vld [vmem:[%s300 + $0xd0] sm:$0xf]
        %v4108 = vld [vmem:[%s300 + $0xd4] sm:$0xf]
        %v4109 = vld [vmem:[%s300 + $0xd8] sm:$0xf]
        %v4110 = vld [vmem:[%s300 + $0xdc] sm:$0xf]
        %v4111 = vld [vmem:[%s300 + $0xe0] sm:$0xf]
        %v4112 = vld [vmem:[%s300 + $0xe4] sm:$0xf]
        %v4113 = vld [vmem:[%s300 + $0xe8] sm:$0xf]
        %v4114 = vld [vmem:[%s300 + $0xec] sm:$0xf]
        %v4115 = vld [vmem:[%s300 + $0xf0] sm:$0xf]
        %v4116 = vld [vmem:[%s300 + $0xf4] sm:$0xf]
        %v4117 = vld [vmem:[%s300 + $0xf8] sm:$0xf]
        %v4118 = vld [vmem:[%s300 + $0xfc] sm:$0xf]
        %v4119 = vld [vmem:[%s308] sm:$0x1]
        %v4121 = vlaneseq
        %v4122 = vshrl.u32 %v4121, 7
        %v4123 = vsub.s32 0, %v4122
        %v4124 = vrot.slane %v4119, %v4123
        %v4190 = vunpack.c.l.b16 %v4055
        %v4191 = vunpack.c.l.b16 %v4056
        %v4192 = vunpack.c.l.b16 %v4057
        %v4193 = vunpack.c.l.b16 %v4058
        %v4194 = vunpack.c.l.b16 %v4059
        %v4195 = vunpack.c.l.b16 %v4060
        %v4196 = vunpack.c.l.b16 %v4061
        %v4197 = vunpack.c.l.b16 %v4062
        %v4198 = vunpack.c.l.b16 %v4063
        %v4199 = vunpack.c.l.b16 %v4064
        %v4200 = vunpack.c.l.b16 %v4065
        %v4201 = vunpack.c.l.b16 %v4066
        %v4202 = vunpack.c.l.b16 %v4067
        %v4203 = vunpack.c.l.b16 %v4068
        %v4204 = vunpack.c.l.b16 %v4069
        %v4205 = vunpack.c.l.b16 %v4070
        %v4206 = vunpack.c.l.b16 %v4071
        %v4207 = vunpack.c.l.b16 %v4072
        %v4208 = vunpack.c.l.b16 %v4073
        %v4209 = vunpack.c.l.b16 %v4074
        %v4210 = vunpack.c.l.b16 %v4075
        %v4211 = vunpack.c.l.b16 %v4076
        %v4212 = vunpack.c.l.b16 %v4077
        %v4213 = vunpack.c.l.b16 %v4078
        %v4214 = vunpack.c.l.b16 %v4079
        %v4215 = vunpack.c.l.b16 %v4080
        %v4216 = vunpack.c.l.b16 %v4081
        %v4217 = vunpack.c.l.b16 %v4082
        %v4218 = vunpack.c.l.b16 %v4083
        %v4219 = vunpack.c.l.b16 %v4084
        %v4220 = vunpack.c.l.b16 %v4085
        %v4221 = vunpack.c.l.b16 %v4086
        %v4222 = vunpack.c.l.b16 %v4087
        %v4223 = vunpack.c.l.b16 %v4088
        %v4224 = vunpack.c.l.b16 %v4089
        %v4225 = vunpack.c.l.b16 %v4090
        %v4226 = vunpack.c.l.b16 %v4091
        %v4227 = vunpack.c.l.b16 %v4092
        %v4228 = vunpack.c.l.b16 %v4093
        %v4229 = vunpack.c.l.b16 %v4094
        %v4230 = vunpack.c.l.b16 %v4095
        %v4231 = vunpack.c.l.b16 %v4096
        %v4232 = vunpack.c.l.b16 %v4097
        %v4233 = vunpack.c.l.b16 %v4098
        %v4234 = vunpack.c.l.b16 %v4099
        %v4235 = vunpack.c.l.b16 %v4100
        %v4236 = vunpack.c.l.b16 %v4101
        %v4237 = vunpack.c.l.b16 %v4102
        %v4238 = vunpack.c.l.b16 %v4103
        %v4239 = vunpack.c.l.b16 %v4104
        %v4240 = vunpack.c.l.b16 %v4105
        %v4241 = vunpack.c.l.b16 %v4106
        %v4242 = vunpack.c.l.b16 %v4107
        %v4243 = vunpack.c.l.b16 %v4108
        %v4244 = vunpack.c.l.b16 %v4109
        %v4245 = vunpack.c.l.b16 %v4110
        %v4246 = vunpack.c.l.b16 %v4111
        %v4247 = vunpack.c.l.b16 %v4112
        %v4248 = vunpack.c.l.b16 %v4113
        %v4249 = vunpack.c.l.b16 %v4114
        %v4250 = vunpack.c.l.b16 %v4115
        %v4251 = vunpack.c.l.b16 %v4116
        %v4252 = vunpack.c.l.b16 %v4117
        %v4253 = vunpack.c.l.b16 %v4118
        %v4254 = vpack.c.b16 %v4191, %v4190
        %v4255 = vpack.c.b16 %v4193, %v4192
        %v4256 = vpack.c.b16 %v4195, %v4194
        %v4257 = vpack.c.b16 %v4197, %v4196
        %v4258 = vpack.c.b16 %v4199, %v4198
        %v4259 = vpack.c.b16 %v4201, %v4200
        %v4260 = vpack.c.b16 %v4203, %v4202
        %v4261 = vpack.c.b16 %v4205, %v4204
        %v4262 = vpack.c.b16 %v4207, %v4206
        %v4263 = vpack.c.b16 %v4209, %v4208
        %v4264 = vpack.c.b16 %v4211, %v4210
        %v4265 = vpack.c.b16 %v4213, %v4212
        %v4266 = vpack.c.b16 %v4215, %v4214
        %v4267 = vpack.c.b16 %v4217, %v4216
        %v4268 = vpack.c.b16 %v4219, %v4218
        %v4269 = vpack.c.b16 %v4221, %v4220
        %v4270 = vpack.c.b16 %v4223, %v4222
        %v4271 = vpack.c.b16 %v4225, %v4224
        %v4272 = vpack.c.b16 %v4227, %v4226
        %v4273 = vpack.c.b16 %v4229, %v4228
        %v4274 = vpack.c.b16 %v4231, %v4230
        %v4275 = vpack.c.b16 %v4233, %v4232
        %v4276 = vpack.c.b16 %v4235, %v4234
        %v4277 = vpack.c.b16 %v4237, %v4236
        %v4278 = vpack.c.b16 %v4239, %v4238
        %v4279 = vpack.c.b16 %v4241, %v4240
        %v4280 = vpack.c.b16 %v4243, %v4242
        %v4281 = vpack.c.b16 %v4245, %v4244
        %v4282 = vpack.c.b16 %v4247, %v4246
        %v4283 = vpack.c.b16 %v4249, %v4248
        %v4284 = vpack.c.b16 %v4251, %v4250
        %v4285 = vpack.c.b16 %v4253, %v4252
        %4318 = vmatprep.subr.bf16.mxu0 0
        %4319 = vmatpush1.bf16.msra.mxu0 %v4261
        %4320 = vmatprep.subr.bf16.mxu0 0
        %4321 = vmatpush1.bf16.msra.mxu0 %v4260
        %4322 = vmatprep.subr.bf16.mxu0 0
        %4323 = vmatpush1.bf16.msra.mxu0 %v4259
        %4324 = vmatprep.subr.bf16.mxu0 0
        %4325 = vmatpush1.bf16.msra.mxu0 %v4258
        %4326 = vmatprep.subr.bf16.mxu0 0
        %4327 = vmatpush1.bf16.msra.mxu0 %v4257
        %4328 = vmatprep.subr.bf16.mxu0 0
        %4329 = vmatpush1.bf16.msra.mxu0 %v4256
        %4330 = vmatprep.subr.bf16.mxu0 0
        %4331 = vmatpush1.bf16.msra.mxu0 %v4255
        %4332 = vmatprep.subr.bf16.mxu0 0
        %4333 = vmatpush1.bf16.msra.mxu0 %v4254
        %4334 = vmatprep.subr.bf16.mxu0 0
        %4335 = vmatpush2.bf16.msra.mxu0 %v4269
        %4336 = vmatprep.subr.bf16.mxu0 0
        %4337 = vmatpush2.bf16.msra.mxu0 %v4268
        %4338 = vmatprep.subr.bf16.mxu0 0
        %4339 = vmatpush2.bf16.msra.mxu0 %v4267
        %4340 = vmatprep.subr.bf16.mxu0 0
        %4341 = vmatpush2.bf16.msra.mxu0 %v4266
        %4342 = vmatprep.subr.bf16.mxu0 0
        %4343 = vmatpush2.bf16.msra.mxu0 %v4265
        %4344 = vmatprep.subr.bf16.mxu0 0
        %4345 = vmatpush2.bf16.msra.mxu0 %v4264
        %4346 = vmatprep.subr.bf16.mxu0 0
        %4347 = vmatpush2.bf16.msra.mxu0 %v4263
        %4348 = vmatprep.subr.bf16.mxu0 0
        %4349 = vmatpush2.bf16.msra.mxu0 %v4262
        %4350 = vmatprep.mubr.bf16.mxu0 %v4052
        %4351 = vmatmul.mubr.bf16.gmra.mxu0 %v4051
        %v4352 = vpop.f32.mrf.mxu0
        %v4353 = vadd.f32 %v4124, %v4352
        %v4354 = vpop.f32.mrf.mxu0
        %v4355 = vpop.f32.mrf.mxu0
        %v4356 = vpop.f32.mrf.mxu0
        %4357 = vdwg.mxu0
        %4358 = vmatprep.subr.bf16.mxu0 0
        %4359 = vmatpush1.bf16.msra.mxu0 %v4277
        %4360 = vmatprep.subr.bf16.mxu0 0
        %4361 = vmatpush1.bf16.msra.mxu0 %v4276
        %4362 = vmatprep.subr.bf16.mxu0 0
        %4363 = vmatpush1.bf16.msra.mxu0 %v4275
        %4364 = vmatprep.subr.bf16.mxu0 0
        %4365 = vmatpush1.bf16.msra.mxu0 %v4274
        %4366 = vmatprep.subr.bf16.mxu0 0
        %4367 = vmatpush1.bf16.msra.mxu0 %v4273
        %4368 = vmatprep.subr.bf16.mxu0 0
        %4369 = vmatpush1.bf16.msra.mxu0 %v4272
        %4370 = vmatprep.subr.bf16.mxu0 0
        %4371 = vmatpush1.bf16.msra.mxu0 %v4271
        %4372 = vmatprep.subr.bf16.mxu0 0
        %4373 = vmatpush1.bf16.msra.mxu0 %v4270
        %4374 = vmatprep.subr.bf16.mxu0 0
        %4375 = vmatpush2.bf16.msra.mxu0 %v4285
        %4376 = vmatprep.subr.bf16.mxu0 0
        %4377 = vmatpush2.bf16.msra.mxu0 %v4284
        %4378 = vmatprep.subr.bf16.mxu0 0
        %4379 = vmatpush2.bf16.msra.mxu0 %v4283
        %4380 = vmatprep.subr.bf16.mxu0 0
        %4381 = vmatpush2.bf16.msra.mxu0 %v4282
        %4382 = vmatprep.subr.bf16.mxu0 0
        %4383 = vmatpush2.bf16.msra.mxu0 %v4281
        %4384 = vmatprep.subr.bf16.mxu0 0
        %4385 = vmatpush2.bf16.msra.mxu0 %v4280
        %4386 = vmatprep.subr.bf16.mxu0 0
        %4387 = vmatpush2.bf16.msra.mxu0 %v4279
        %4388 = vmatprep.subr.bf16.mxu0 0
        %4389 = vmatpush2.bf16.msra.mxu0 %v4278
        %4390 = vmatprep.mubr.bf16.mxu0 %v4054
        %4391 = vmatmul.mubr.bf16.gmra.mxu0 %v4053
        %v4392 = vpop.f32.mrf.mxu0
        %v4393 = vadd.f32 %v4353, %v4392
        %v4394 = vpop.f32.mrf.mxu0
        %v4395 = vpop.f32.mrf.mxu0
        %v4396 = vpop.f32.mrf.mxu0
        %4397 = vdwg.mxu0
        %4398 = vst [vmem:[%s354] sm:$0x3] %v4393
        %p4399 = scmp.lt.s32.totalorder %s25, 1
        %s4400 = scalar_select %p4399, %s25, 1
        %s4401 = smul.addr %s4400, 2
        %s4402 = scalar_lea.vmem %s5, %s4401
        // Predicated region
        $region57: #{efficientnet_mart_head.1} parent=39 // pred_check
          %p4403 = pneg %p168
        $region58: #{efficientnet_mart_head.1} parent=39 // pred_check_branch
          %4405 = sbr.rel (%p4403) target = $region60
        $region59: #{efficientnet_mart_head.1} parent=39 // pred_region
          _
        $region60: #{efficientnet_mart_head.1} parent=39 // pred_fallthru
          _
      $region40: #{efficientnet_mart_head.1} parent=5 // pred_fallthru
        _
      %p4406 = scmp.le.s32.totalorder 2, %s20
      // Predicated region
      $region61: #{efficientnet_mart_head.1} parent=5 // pred_check
        %p4407 = pneg %p4406
      $region62: #{efficientnet_mart_head.1} parent=5 // pred_check_branch
        %4409 = sbr.rel (%p4407) target = $region64
      $region63: #{efficientnet_mart_head.1} parent=5 // pred_region
        %s4410 = ssub.s32 %s20, 2
        // Predicated region
        $region65: #{efficientnet_mart_head.1} parent=63 // pred_check
          %p4411 = pneg %p174
        $region66: #{efficientnet_mart_head.1} parent=63 // pred_check_branch
          %4413 = sbr.rel (%p4411) target = $region68
        $region67: #{efficientnet_mart_head.1} parent=63 // pred_region
          %p4414 = scmp.lt.s32.totalorder %s26, 1
          %s4415 = scalar_select %p4414, %s26, 1
          %s4416 = smul.addr %s4415, 2
          %s4417 = scalar_lea.vmem %s5, %s4416
        $region68: #{efficientnet_mart_head.1} parent=63 // pred_fallthru
          _
      $region64: #{efficientnet_mart_head.1} parent=5 // pred_fallthru
        _
    $region6: #{efficientnet_mart_head.1} parent=1 // loop_footer
      %s24 = sadd.s32 1, %s20
    $region7: #{efficientnet_mart_head.1} parent=1 // loop_footer_branch
      %19 = sbr.rel target = $region3
    $region8: #{efficientnet_mart_head.1} parent=1 // loop_exit
      _
    %4418 = vsyncpa [#allocation3], 1
    %s4419 = scalar_lea.sflag [#allocation3], 1
    %4420 = vsyncpa %s4419, 1
    %4421 = vsyncpa [#allocation5], 1
    %s4422 = scalar_lea.sflag [#allocation5], 1
    %4423 = vsyncpa %s4422, 1
    %4424 = vsyncpa [#allocation8], 1
    %s4425 = scalar_lea.sflag [#allocation8], 1
    %4426 = vsyncpa %s4425, 1

</llo_original>
